<compile_context>
chip_gen: v7x
topology: tpu7x:2x2x1
jax: 0.10.0
libtpu: 0.0.40
codegen_flags: <defaults>
</compile_context>

<pallas_src>
import math
import jax
import jax.numpy as jnp
from jax.experimental import pallas as pl
from jax.experimental.pallas import tpu as pltpu

ROWS = 32     # args.rows == d_model (feature dim)
COLS = 8      # args.cols == TopK k == decoder sequence length
N_NODES = 16  # number of graph nodes in prev_Z
D_FF = 2048   # FeedForward default hidden size
EPS = 1e-6


# ---------------------------------------------------------------- kernel helpers
def _layer_norm(x, alpha, bias):
    d = x.shape[-1]
    mean = jnp.mean(x, axis=-1, keepdims=True)
    # torch.Tensor.std is unbiased (divides by d-1)
    var = jnp.sum((x - mean) ** 2, axis=-1, keepdims=True) / (d - 1)
    return alpha * (x - mean) / (jnp.sqrt(var) + EPS) + bias


def _softmax(x):
    m = jnp.max(x, axis=-1, keepdims=True)
    e = jnp.exp(x - m)
    return e / jnp.sum(e, axis=-1, keepdims=True)


def _attn_core(q, k, v, wo, bo):
    # single head: d_k == d_model; q/k/v are already projected.
    d_k = q.shape[-1]
    # q @ k.T without materializing a transpose: contract last dim of both.
    scores = jax.lax.dot_general(q, k, (((1,), (1,)), ((), ())),
                                 preferred_element_type=jnp.float32)
    scores = scores * (1.0 / math.sqrt(d_k))
    probs = _softmax(scores)
    out = jnp.dot(probs, v, preferred_element_type=jnp.float32)
    return jnp.dot(out, wo, preferred_element_type=jnp.float32) + bo


# ---------------------------------------------------------------- fused Pallas kernel
def decoder_kernel(idx_ref,                                   # [COLS] int32 (SMEM, scalar-prefetched)
                   q_ref, z_ref, s_ref,
                   n1a_ref, n1b_ref, n2a_ref, n2b_ref, n3a_ref, n3b_ref,
                   wqkv1_ref, bqkv1_ref, wo1_ref, bo1_ref,
                   wq2_ref, bq2_ref, wkv2_ref, bkv2_ref, wo2_ref, bo2_ref,
                   w1_ref, b1_ref, w2_ref, b2_ref,
                   out_ref):
    d = q_ref.shape[0]      # d_model == rows
    cols = q_ref.shape[1]   # seq length == k

    # ---- TopK tail: gather prev_Z rows by top-k indices (SMEM scalars, static unroll) ----
    z_rows = [z_ref[pl.ds(idx_ref[j], 1), :] for j in range(cols)]
    z_sel = jnp.concatenate(z_rows, axis=0)                   # [cols, rows]
    e = z_sel * jnp.tanh(s_ref[...])                          # [cols, rows]  (f32 elementwise)

    # e-path K/V projections hoisted before attn-1 (independent of x -> hides MXU latency)
    kv2 = jnp.dot(e, wkv2_ref[...], preferred_element_type=jnp.float32) + bkv2_ref[...]
    k2 = kv2[:, :d]
    v2 = kv2[:, d:]

    # In-kernel transpose: decoder operates on x = prev_Q.T  ([cols, rows])
    x = q_ref[...].T

    # ---- block 1: self-attention (packed QKV projection, one wide matmul) ----
    x2 = _layer_norm(x, n1a_ref[...], n1b_ref[...])
    qkv = jnp.dot(x2, wqkv1_ref[...], preferred_element_type=jnp.float32) + bqkv1_ref[...]
    a = _attn_core(qkv[:, :d], qkv[:, d:2 * d], qkv[:, 2 * d:],
                   wo1_ref[...], bo1_ref[...])
    x = x + a

    # ---- block 2: cross-attention with the TopK embeddings ----
    x2 = _layer_norm(x, n2a_ref[...], n2b_ref[...])
    q2 = jnp.dot(x2, wq2_ref[...], preferred_element_type=jnp.float32) + bq2_ref[...]
    b = _attn_core(q2, k2, v2, wo2_ref[...], bo2_ref[...])
    x = x + b

    # ---- block 3: feed-forward (bf16 weights / operands, f32 accumulation) ----
    x2 = _layer_norm(x, n3a_ref[...], n3b_ref[...])
    h = jnp.dot(x2.astype(jnp.bfloat16), w1_ref[...],
                preferred_element_type=jnp.float32) + b1_ref[...]
    h = jnp.maximum(h, 0.0)
    ff = jnp.dot(h.astype(jnp.bfloat16), w2_ref[...],
                 preferred_element_type=jnp.float32) + b2_ref[...]

    out_ref[...] = (x + ff).T                                 # new_Q: [rows, cols]


# ---------------------------------------------------------------- params & wrapper
def init_params(key):
    def lin(k, in_dim, out_dim):
        k1, k2 = jax.random.split(k)
        bound = 1.0 / math.sqrt(in_dim)
        w = jax.random.uniform(k1, (out_dim, in_dim), jnp.float32, -bound, bound)
        b = jax.random.uniform(k2, (out_dim,), jnp.float32, -bound, bound)
        return w.T, b.reshape(1, out_dim)           # pre-transposed: y = x @ Wt + b

    keys = jax.random.split(key, 12)
    p = {}
    bound = 1.0 / math.sqrt(ROWS)
    scorer = jax.random.uniform(keys[0], (ROWS, 1), jnp.float32, -bound, bound)
    # Hoisted normalization:  Z @ scorer / ||scorer||  ==  Z @ (scorer / ||scorer||)
    p['scorer_n'] = scorer / jnp.sqrt(jnp.sum(scorer * scorer))

    # Norm params (torch init: ones / zeros)
    for i in ('1', '2', '3'):
        p['n%sa' % i] = jnp.ones((1, ROWS), jnp.float32)
        p['n%sb' % i] = jnp.zeros((1, ROWS), jnp.float32)

    wq1, bq1 = lin(keys[1], ROWS, ROWS)
    wk1, bk1 = lin(keys[2], ROWS, ROWS)
    wv1, bv1 = lin(keys[3], ROWS, ROWS)
    p['wo1'], p['bo1'] = lin(keys[4], ROWS, ROWS)
    p['wq2'], p['bq2'] = lin(keys[5], ROWS, ROWS)
    wk2, bk2 = lin(keys[6], ROWS, ROWS)
    wv2, bv2 = lin(keys[7], ROWS, ROWS)
    p['wo2'], p['bo2'] = lin(keys[8], ROWS, ROWS)

    # Packed projections: one wide MXU push instead of 3 (resp. 2) narrow ones.
    p['wqkv1'] = jnp.concatenate([wq1, wk1, wv1], axis=1)     # [ROWS, 3*ROWS]
    p['bqkv1'] = jnp.concatenate([bq1, bk1, bv1], axis=1)     # [1, 3*ROWS]
    p['wkv2'] = jnp.concatenate([wk2, wv2], axis=1)           # [ROWS, 2*ROWS]
    p['bkv2'] = jnp.concatenate([bk2, bv2], axis=1)           # [1, 2*ROWS]

    # FeedForward: rows -> d_ff -> rows; weights stored bf16 (halves HBM->VMEM DMA)
    w1, b1 = lin(keys[9], ROWS, D_FF)
    w2, b2 = lin(keys[10], D_FF, ROWS)
    p['w1'], p['b1'] = w1.astype(jnp.bfloat16), b1            # biases stay f32
    p['w2'], p['b2'] = w2.astype(jnp.bfloat16), b2
    return p


@jax.jit
def mat_transformer_cell(prev_Q, prev_Z, mask, params):
    rows, cols = prev_Q.shape
    p = params

    # ---- TopK scoring + selection (plain JAX: tiny matvec + sort) ----
    scores = (jnp.dot(prev_Z, p['scorer_n']) + mask).reshape(-1)      # [n]
    vals, idx = jax.lax.top_k(scores, cols)
    # TODO(synk): pad_with_last_val / `vals > -inf` filter skipped (mask is finite
    # in this synthetic setup, so top_k always yields k valid indices).
    s_sel = vals.reshape(cols, 1)                                     # scores[idx]

    inputs = (prev_Q, prev_Z, s_sel,
              p['n1a'], p['n1b'], p['n2a'], p['n2b'], p['n3a'], p['n3b'],
              p['wqkv1'], p['bqkv1'], p['wo1'], p['bo1'],
              p['wq2'], p['bq2'], p['wkv2'], p['bkv2'], p['wo2'], p['bo2'],
              p['w1'], p['b1'], p['w2'], p['b2'])

    vmem_spec = pl.BlockSpec(memory_space=pltpu.MemorySpace.VMEM)
    new_Q = pl.pallas_call(
        decoder_kernel,
        out_shape=jax.ShapeDtypeStruct((rows, cols), jnp.float32),
        grid_spec=pltpu.PrefetchScalarGridSpec(
            num_scalar_prefetch=1,                 # idx -> SMEM, read inside the kernel
            grid=(1,),                             # single block — don't grid a tiny problem
            in_specs=[vmem_spec] * len(inputs),
            out_specs=vmem_spec),
        compiler_params=pltpu.CompilerParams(
            dimension_semantics=("arbitrary",),
            vmem_limit_bytes=4 * 1024 * 1024),     # resident data ~0.7 MiB; keep scoped VMEM tight
    )(idx, *inputs)
    return new_Q                                    # [rows, cols]


if __name__ == "__main__":
    key = jax.random.PRNGKey(0)
    kq, kz, kp = jax.random.split(key, 3)
    prev_Q = jax.random.normal(kq, (ROWS, COLS), jnp.float32)      # GCN weight matrix
    prev_Z = jax.random.normal(kz, (N_NODES, ROWS), jnp.float32)   # node embeddings
    mask = jnp.zeros((N_NODES, 1), jnp.float32)                    # all nodes active
    params = init_params(kp)

    new_Q = mat_transformer_cell(prev_Q, prev_Z, mask, params)
    jax.block_until_ready(new_Q)
    assert new_Q.shape == (ROWS, COLS) and new_Q.dtype == jnp.float32
    print("KERNEL_OK")
</pallas_src>

<mosaic_0001>
module attributes {stable_mosaic.version = 11 : i64} {
  func.func @decoder_kernel(%arg0: i32, %arg1: memref<8xi32, #tpu.memory_space<smem>>, %arg2: memref<32x8xf32, #tpu.memory_space<vmem>>, %arg3: memref<16x32xf32, #tpu.memory_space<vmem>>, %arg4: memref<8x1xf32, #tpu.memory_space<vmem>>, %arg5: memref<1x32xf32, #tpu.memory_space<vmem>>, %arg6: memref<1x32xf32, #tpu.memory_space<vmem>>, %arg7: memref<1x32xf32, #tpu.memory_space<vmem>>, %arg8: memref<1x32xf32, #tpu.memory_space<vmem>>, %arg9: memref<1x32xf32, #tpu.memory_space<vmem>>, %arg10: memref<1x32xf32, #tpu.memory_space<vmem>>, %arg11: memref<32x96xf32, #tpu.memory_space<vmem>>, %arg12: memref<1x96xf32, #tpu.memory_space<vmem>>, %arg13: memref<32x32xf32, #tpu.memory_space<vmem>>, %arg14: memref<1x32xf32, #tpu.memory_space<vmem>>, %arg15: memref<32x32xf32, #tpu.memory_space<vmem>>, %arg16: memref<1x32xf32, #tpu.memory_space<vmem>>, %arg17: memref<32x64xf32, #tpu.memory_space<vmem>>, %arg18: memref<1x64xf32, #tpu.memory_space<vmem>>, %arg19: memref<32x32xf32, #tpu.memory_space<vmem>>, %arg20: memref<1x32xf32, #tpu.memory_space<vmem>>, %arg21: memref<32x2048xbf16, #tpu.memory_space<vmem>>, %arg22: memref<1x2048xf32, #tpu.memory_space<vmem>>, %arg23: memref<2048x32xbf16, #tpu.memory_space<vmem>>, %arg24: memref<1x32xf32, #tpu.memory_space<vmem>>, %arg25: memref<32x8xf32, #tpu.memory_space<vmem>>) attributes {dimension_semantics = [#tpu.dimension_semantics<arbitrary>], iteration_bounds = array<i64: 1>, scalar_prefetch = 1 : i64, scratch_operands = 0 : i64, tpu.core_type = #tpu.core_type<tc>, window_params = [{pipeline_mode = #tpu.pipeline_mode<synchronous>, transform_indices = @transform_0, window_bounds = array<i64: 32, 8>}, {pipeline_mode = #tpu.pipeline_mode<synchronous>, transform_indices = @transform_1, window_bounds = array<i64: 16, 32>}, {pipeline_mode = #tpu.pipeline_mode<synchronous>, transform_indices = @transform_2, window_bounds = array<i64: 8, 1>}, {pipeline_mode = #tpu.pipeline_mode<synchronous>, transform_indices = @transform_3, window_bounds = array<i64: 1, 32>}, {pipeline_mode = #tpu.pipeline_mode<synchronous>, transform_indices = @transform_4, window_bounds = array<i64: 1, 32>}, {pipeline_mode = #tpu.pipeline_mode<synchronous>, transform_indices = @transform_5, window_bounds = array<i64: 1, 32>}, {pipeline_mode = #tpu.pipeline_mode<synchronous>, transform_indices = @transform_6, window_bounds = array<i64: 1, 32>}, {pipeline_mode = #tpu.pipeline_mode<synchronous>, transform_indices = @transform_7, window_bounds = array<i64: 1, 32>}, {pipeline_mode = #tpu.pipeline_mode<synchronous>, transform_indices = @transform_8, window_bounds = array<i64: 1, 32>}, {pipeline_mode = #tpu.pipeline_mode<synchronous>, transform_indices = @transform_9, window_bounds = array<i64: 32, 96>}, {pipeline_mode = #tpu.pipeline_mode<synchronous>, transform_indices = @transform_10, window_bounds = array<i64: 1, 96>}, {pipeline_mode = #tpu.pipeline_mode<synchronous>, transform_indices = @transform_11, window_bounds = array<i64: 32, 32>}, {pipeline_mode = #tpu.pipeline_mode<synchronous>, transform_indices = @transform_12, window_bounds = array<i64: 1, 32>}, {pipeline_mode = #tpu.pipeline_mode<synchronous>, transform_indices = @transform_13, window_bounds = array<i64: 32, 32>}, {pipeline_mode = #tpu.pipeline_mode<synchronous>, transform_indices = @transform_14, window_bounds = array<i64: 1, 32>}, {pipeline_mode = #tpu.pipeline_mode<synchronous>, transform_indices = @transform_15, window_bounds = array<i64: 32, 64>}, {pipeline_mode = #tpu.pipeline_mode<synchronous>, transform_indices = @transform_16, window_bounds = array<i64: 1, 64>}, {pipeline_mode = #tpu.pipeline_mode<synchronous>, transform_indices = @transform_17, window_bounds = array<i64: 32, 32>}, {pipeline_mode = #tpu.pipeline_mode<synchronous>, transform_indices = @transform_18, window_bounds = array<i64: 1, 32>}, {pipeline_mode = #tpu.pipeline_mode<synchronous>, transform_indices = @transform_19, window_bounds = array<i64: 32, 2048>}, {pipeline_mode = #tpu.pipeline_mode<synchronous>, transform_indices = @transform_20, window_bounds = array<i64: 1, 2048>}, {pipeline_mode = #tpu.pipeline_mode<synchronous>, transform_indices = @transform_21, window_bounds = array<i64: 2048, 32>}, {pipeline_mode = #tpu.pipeline_mode<synchronous>, transform_indices = @transform_22, window_bounds = array<i64: 1, 32>}, {pipeline_mode = #tpu.pipeline_mode<synchronous>, transform_indices = @transform_23, window_bounds = array<i64: 32, 8>}]} {
    %c0 = arith.constant 0 : index
    %0 = memref.load %arg1[%c0] : memref<8xi32, #tpu.memory_space<smem>>
    %1 = arith.index_cast %0 : i32 to index
    %c0_0 = arith.constant 0 : index
    %2 = vector.load %arg3[%1, %c0_0] : memref<16x32xf32, #tpu.memory_space<vmem>>, vector<1x32xf32>
    %c1 = arith.constant 1 : index
    %3 = memref.load %arg1[%c1] : memref<8xi32, #tpu.memory_space<smem>>
    %4 = arith.index_cast %3 : i32 to index
    %c0_1 = arith.constant 0 : index
    %5 = vector.load %arg3[%4, %c0_1] : memref<16x32xf32, #tpu.memory_space<vmem>>, vector<1x32xf32>
    %c2 = arith.constant 2 : index
    %6 = memref.load %arg1[%c2] : memref<8xi32, #tpu.memory_space<smem>>
    %7 = arith.index_cast %6 : i32 to index
    %c0_2 = arith.constant 0 : index
    %8 = vector.load %arg3[%7, %c0_2] : memref<16x32xf32, #tpu.memory_space<vmem>>, vector<1x32xf32>
    %c3 = arith.constant 3 : index
    %9 = memref.load %arg1[%c3] : memref<8xi32, #tpu.memory_space<smem>>
    %10 = arith.index_cast %9 : i32 to index
    %c0_3 = arith.constant 0 : index
    %11 = vector.load %arg3[%10, %c0_3] : memref<16x32xf32, #tpu.memory_space<vmem>>, vector<1x32xf32>
    %c4 = arith.constant 4 : index
    %12 = memref.load %arg1[%c4] : memref<8xi32, #tpu.memory_space<smem>>
    %13 = arith.index_cast %12 : i32 to index
    %c0_4 = arith.constant 0 : index
    %14 = vector.load %arg3[%13, %c0_4] : memref<16x32xf32, #tpu.memory_space<vmem>>, vector<1x32xf32>
    %c5 = arith.constant 5 : index
    %15 = memref.load %arg1[%c5] : memref<8xi32, #tpu.memory_space<smem>>
    %16 = arith.index_cast %15 : i32 to index
    %c0_5 = arith.constant 0 : index
    %17 = vector.load %arg3[%16, %c0_5] : memref<16x32xf32, #tpu.memory_space<vmem>>, vector<1x32xf32>
    %c6 = arith.constant 6 : index
    %18 = memref.load %arg1[%c6] : memref<8xi32, #tpu.memory_space<smem>>
    %19 = arith.index_cast %18 : i32 to index
    %c0_6 = arith.constant 0 : index
    %20 = vector.load %arg3[%19, %c0_6] : memref<16x32xf32, #tpu.memory_space<vmem>>, vector<1x32xf32>
    %c7 = arith.constant 7 : index
    %21 = memref.load %arg1[%c7] : memref<8xi32, #tpu.memory_space<smem>>
    %22 = arith.index_cast %21 : i32 to index
    %c0_7 = arith.constant 0 : index
    %23 = vector.load %arg3[%22, %c0_7] : memref<16x32xf32, #tpu.memory_space<vmem>>, vector<1x32xf32>
    %24 = tpu.concatenate %2, %5, %8, %11, %14, %17, %20, %23 in 0 : vector<1x32xf32>, vector<1x32xf32>, vector<1x32xf32>, vector<1x32xf32>, vector<1x32xf32>, vector<1x32xf32>, vector<1x32xf32>, vector<1x32xf32> -> vector<8x32xf32>
    %c0_8 = arith.constant 0 : index
    %c0_9 = arith.constant 0 : index
    %25 = vector.load %arg4[%c0_8, %c0_9] : memref<8x1xf32, #tpu.memory_space<vmem>>, vector<8x1xf32>
    %26 = math.tanh %25 : vector<8x1xf32>
    %27 = vector.broadcast %26 : vector<8x1xf32> to vector<8x32xf32>
    %28 = arith.mulf %24, %27 : vector<8x32xf32>
    %c0_10 = arith.constant 0 : index
    %c0_11 = arith.constant 0 : index
    %29 = vector.load %arg17[%c0_10, %c0_11] : memref<32x64xf32, #tpu.memory_space<vmem>>, vector<32x64xf32>
    %cst = arith.constant dense<0.000000e+00> : vector<8x64xf32>
    %30 = tpu.matmul %28, %29, %cst {dimension_numbers = #tpu.dot_dimension_numbers<[1], [0], [0], [1], [0, 0, 1, 1], [], []>} : vector<8x32xf32>, vector<32x64xf32>, vector<8x64xf32> -> vector<8x64xf32>
    %c0_12 = arith.constant 0 : index
    %c0_13 = arith.constant 0 : index
    %31 = vector.load %arg18[%c0_12, %c0_13] : memref<1x64xf32, #tpu.memory_space<vmem>>, vector<1x64xf32>
    %32 = vector.broadcast %31 : vector<1x64xf32> to vector<8x64xf32>
    %33 = arith.addf %30, %32 : vector<8x64xf32>
    %34 = vector.extract_strided_slice %33 {offsets = [0, 0], sizes = [8, 32], strides = [1, 1]} : vector<8x64xf32> to vector<8x32xf32>
    %35 = vector.extract_strided_slice %33 {offsets = [0, 32], sizes = [8, 32], strides = [1, 1]} : vector<8x64xf32> to vector<8x32xf32>
    %c0_14 = arith.constant 0 : index
    %c0_15 = arith.constant 0 : index
    %36 = vector.load %arg2[%c0_14, %c0_15] : memref<32x8xf32, #tpu.memory_space<vmem>>, vector<32x8xf32>
    %37 = tpu.transpose %36, [1, 0] : vector<32x8xf32> -> vector<8x32xf32>
    %c0_16 = arith.constant 0 : index
    %c0_17 = arith.constant 0 : index
    %38 = vector.load %arg5[%c0_16, %c0_17] : memref<1x32xf32, #tpu.memory_space<vmem>>, vector<1x32xf32>
    %c0_18 = arith.constant 0 : index
    %c0_19 = arith.constant 0 : index
    %39 = vector.load %arg6[%c0_18, %c0_19] : memref<1x32xf32, #tpu.memory_space<vmem>>, vector<1x32xf32>
    %cst_20 = arith.constant dense<0.000000e+00> : vector<8xf32>
    %40 = vector.multi_reduction <add>, %37, %cst_20 [1] : vector<8x32xf32> to vector<8xf32>
    %41 = vector.shape_cast %40 : vector<8xf32> to vector<8x1xf32>
    %cst_21 = arith.constant 3.200000e+01 : f32
    %42 = vector.broadcast %cst_21 : f32 to vector<8x1xf32>
    %43 = arith.divf %41, %42 : vector<8x1xf32>
    %44 = vector.broadcast %43 : vector<8x1xf32> to vector<8x32xf32>
    %45 = arith.subf %37, %44 : vector<8x32xf32>
    %46 = arith.mulf %45, %45 : vector<8x32xf32>
    %cst_22 = arith.constant dense<0.000000e+00> : vector<8xf32>
    %47 = vector.multi_reduction <add>, %46, %cst_22 [1] : vector<8x32xf32> to vector<8xf32>
    %48 = vector.shape_cast %47 : vector<8xf32> to vector<8x1xf32>
    %cst_23 = arith.constant 3.100000e+01 : f32
    %49 = vector.broadcast %cst_23 : f32 to vector<8x1xf32>
    %50 = arith.divf %48, %49 : vector<8x1xf32>
    %51 = vector.broadcast %43 : vector<8x1xf32> to vector<8x32xf32>
    %52 = arith.subf %37, %51 : vector<8x32xf32>
    %53 = vector.broadcast %38 : vector<1x32xf32> to vector<8x32xf32>
    %54 = arith.mulf %53, %52 : vector<8x32xf32>
    %55 = math.sqrt %50 : vector<8x1xf32>
    %cst_24 = arith.constant 9.99999997E-7 : f32
    %56 = vector.broadcast %cst_24 : f32 to vector<8x1xf32>
    %57 = arith.addf %55, %56 : vector<8x1xf32>
    %58 = vector.broadcast %57 : vector<8x1xf32> to vector<8x32xf32>
    %59 = arith.divf %54, %58 : vector<8x32xf32>
    %60 = vector.broadcast %39 : vector<1x32xf32> to vector<8x32xf32>
    %61 = arith.addf %59, %60 : vector<8x32xf32>
    %c0_25 = arith.constant 0 : index
    %c0_26 = arith.constant 0 : index
    %62 = vector.load %arg11[%c0_25, %c0_26] : memref<32x96xf32, #tpu.memory_space<vmem>>, vector<32x96xf32>
    %cst_27 = arith.constant dense<0.000000e+00> : vector<8x96xf32>
    %63 = tpu.matmul %61, %62, %cst_27 {dimension_numbers = #tpu.dot_dimension_numbers<[1], [0], [0], [1], [0, 0, 1, 1], [], []>} : vector<8x32xf32>, vector<32x96xf32>, vector<8x96xf32> -> vector<8x96xf32>
    %c0_28 = arith.constant 0 : index
    %c0_29 = arith.constant 0 : index
    %64 = vector.load %arg12[%c0_28, %c0_29] : memref<1x96xf32, #tpu.memory_space<vmem>>, vector<1x96xf32>
    %65 = vector.broadcast %64 : vector<1x96xf32> to vector<8x96xf32>
    %66 = arith.addf %63, %65 : vector<8x96xf32>
    %67 = vector.extract_strided_slice %66 {offsets = [0, 0], sizes = [8, 32], strides = [1, 1]} : vector<8x96xf32> to vector<8x32xf32>
    %68 = vector.extract_strided_slice %66 {offsets = [0, 32], sizes = [8, 32], strides = [1, 1]} : vector<8x96xf32> to vector<8x32xf32>
    %69 = vector.extract_strided_slice %66 {offsets = [0, 64], sizes = [8, 32], strides = [1, 1]} : vector<8x96xf32> to vector<8x32xf32>
    %c0_30 = arith.constant 0 : index
    %c0_31 = arith.constant 0 : index
    %70 = vector.load %arg13[%c0_30, %c0_31] : memref<32x32xf32, #tpu.memory_space<vmem>>, vector<32x32xf32>
    %c0_32 = arith.constant 0 : index
    %c0_33 = arith.constant 0 : index
    %71 = vector.load %arg14[%c0_32, %c0_33] : memref<1x32xf32, #tpu.memory_space<vmem>>, vector<1x32xf32>
    %cst_34 = arith.constant dense<0.000000e+00> : vector<8x8xf32>
    %72 = tpu.matmul %67, %68, %cst_34 {dimension_numbers = #tpu.dot_dimension_numbers<[1], [1], [0], [0], [0, 0, 1, 0], [], []>} : vector<8x32xf32>, vector<8x32xf32>, vector<8x8xf32> -> vector<8x8xf32>
    %cst_35 = arith.constant 0.176776692 : f32
    %73 = vector.broadcast %cst_35 : f32 to vector<8x8xf32>
    %74 = arith.mulf %72, %73 : vector<8x8xf32>
    %cst_36 = arith.constant dense<0xFF800000> : vector<8xf32>
    %75 = vector.multi_reduction <maximumf>, %74, %cst_36 [1] : vector<8x8xf32> to vector<8xf32>
    %76 = vector.shape_cast %75 : vector<8xf32> to vector<8x1xf32>
    %77 = vector.broadcast %76 : vector<8x1xf32> to vector<8x8xf32>
    %78 = arith.subf %74, %77 : vector<8x8xf32>
    %79 = math.exp %78 : vector<8x8xf32>
    %cst_37 = arith.constant dense<0.000000e+00> : vector<8xf32>
    %80 = vector.multi_reduction <add>, %79, %cst_37 [1] : vector<8x8xf32> to vector<8xf32>
    %81 = vector.shape_cast %80 : vector<8xf32> to vector<8x1xf32>
    %82 = vector.broadcast %81 : vector<8x1xf32> to vector<8x8xf32>
    %83 = arith.divf %79, %82 : vector<8x8xf32>
    %cst_38 = arith.constant dense<0.000000e+00> : vector<8x32xf32>
    %84 = tpu.matmul %83, %69, %cst_38 {dimension_numbers = #tpu.dot_dimension_numbers<[1], [0], [0], [1], [0, 0, 1, 1], [], []>} : vector<8x8xf32>, vector<8x32xf32>, vector<8x32xf32> -> vector<8x32xf32>
    %cst_39 = arith.constant dense<0.000000e+00> : vector<8x32xf32>
    %85 = tpu.matmul %84, %70, %cst_39 {dimension_numbers = #tpu.dot_dimension_numbers<[1], [0], [0], [1], [0, 0, 1, 1], [], []>} : vector<8x32xf32>, vector<32x32xf32>, vector<8x32xf32> -> vector<8x32xf32>
    %86 = vector.broadcast %71 : vector<1x32xf32> to vector<8x32xf32>
    %87 = arith.addf %85, %86 : vector<8x32xf32>
    %88 = arith.addf %37, %87 : vector<8x32xf32>
    %c0_40 = arith.constant 0 : index
    %c0_41 = arith.constant 0 : index
    %89 = vector.load %arg7[%c0_40, %c0_41] : memref<1x32xf32, #tpu.memory_space<vmem>>, vector<1x32xf32>
    %c0_42 = arith.constant 0 : index
    %c0_43 = arith.constant 0 : index
    %90 = vector.load %arg8[%c0_42, %c0_43] : memref<1x32xf32, #tpu.memory_space<vmem>>, vector<1x32xf32>
    %cst_44 = arith.constant dense<0.000000e+00> : vector<8xf32>
    %91 = vector.multi_reduction <add>, %88, %cst_44 [1] : vector<8x32xf32> to vector<8xf32>
    %92 = vector.shape_cast %91 : vector<8xf32> to vector<8x1xf32>
    %cst_45 = arith.constant 3.200000e+01 : f32
    %93 = vector.broadcast %cst_45 : f32 to vector<8x1xf32>
    %94 = arith.divf %92, %93 : vector<8x1xf32>
    %95 = vector.broadcast %94 : vector<8x1xf32> to vector<8x32xf32>
    %96 = arith.subf %88, %95 : vector<8x32xf32>
    %97 = arith.mulf %96, %96 : vector<8x32xf32>
    %cst_46 = arith.constant dense<0.000000e+00> : vector<8xf32>
    %98 = vector.multi_reduction <add>, %97, %cst_46 [1] : vector<8x32xf32> to vector<8xf32>
    %99 = vector.shape_cast %98 : vector<8xf32> to vector<8x1xf32>
    %cst_47 = arith.constant 3.100000e+01 : f32
    %100 = vector.broadcast %cst_47 : f32 to vector<8x1xf32>
    %101 = arith.divf %99, %100 : vector<8x1xf32>
    %102 = vector.broadcast %94 : vector<8x1xf32> to vector<8x32xf32>
    %103 = arith.subf %88, %102 : vector<8x32xf32>
    %104 = vector.broadcast %89 : vector<1x32xf32> to vector<8x32xf32>
    %105 = arith.mulf %104, %103 : vector<8x32xf32>
    %106 = math.sqrt %101 : vector<8x1xf32>
    %cst_48 = arith.constant 9.99999997E-7 : f32
    %107 = vector.broadcast %cst_48 : f32 to vector<8x1xf32>
    %108 = arith.addf %106, %107 : vector<8x1xf32>
    %109 = vector.broadcast %108 : vector<8x1xf32> to vector<8x32xf32>
    %110 = arith.divf %105, %109 : vector<8x32xf32>
    %111 = vector.broadcast %90 : vector<1x32xf32> to vector<8x32xf32>
    %112 = arith.addf %110, %111 : vector<8x32xf32>
    %c0_49 = arith.constant 0 : index
    %c0_50 = arith.constant 0 : index
    %113 = vector.load %arg15[%c0_49, %c0_50] : memref<32x32xf32, #tpu.memory_space<vmem>>, vector<32x32xf32>
    %cst_51 = arith.constant dense<0.000000e+00> : vector<8x32xf32>
    %114 = tpu.matmul %112, %113, %cst_51 {dimension_numbers = #tpu.dot_dimension_numbers<[1], [0], [0], [1], [0, 0, 1, 1], [], []>} : vector<8x32xf32>, vector<32x32xf32>, vector<8x32xf32> -> vector<8x32xf32>
    %c0_52 = arith.constant 0 : index
    %c0_53 = arith.constant 0 : index
    %115 = vector.load %arg16[%c0_52, %c0_53] : memref<1x32xf32, #tpu.memory_space<vmem>>, vector<1x32xf32>
    %116 = vector.broadcast %115 : vector<1x32xf32> to vector<8x32xf32>
    %117 = arith.addf %114, %116 : vector<8x32xf32>
    %c0_54 = arith.constant 0 : index
    %c0_55 = arith.constant 0 : index
    %118 = vector.load %arg19[%c0_54, %c0_55] : memref<32x32xf32, #tpu.memory_space<vmem>>, vector<32x32xf32>
    %c0_56 = arith.constant 0 : index
    %c0_57 = arith.constant 0 : index
    %119 = vector.load %arg20[%c0_56, %c0_57] : memref<1x32xf32, #tpu.memory_space<vmem>>, vector<1x32xf32>
    %cst_58 = arith.constant dense<0.000000e+00> : vector<8x8xf32>
    %120 = tpu.matmul %117, %34, %cst_58 {dimension_numbers = #tpu.dot_dimension_numbers<[1], [1], [0], [0], [0, 0, 1, 0], [], []>} : vector<8x32xf32>, vector<8x32xf32>, vector<8x8xf32> -> vector<8x8xf32>
    %cst_59 = arith.constant 0.176776692 : f32
    %121 = vector.broadcast %cst_59 : f32 to vector<8x8xf32>
    %122 = arith.mulf %120, %121 : vector<8x8xf32>
    %cst_60 = arith.constant dense<0xFF800000> : vector<8xf32>
    %123 = vector.multi_reduction <maximumf>, %122, %cst_60 [1] : vector<8x8xf32> to vector<8xf32>
    %124 = vector.shape_cast %123 : vector<8xf32> to vector<8x1xf32>
    %125 = vector.broadcast %124 : vector<8x1xf32> to vector<8x8xf32>
    %126 = arith.subf %122, %125 : vector<8x8xf32>
    %127 = math.exp %126 : vector<8x8xf32>
    %cst_61 = arith.constant dense<0.000000e+00> : vector<8xf32>
    %128 = vector.multi_reduction <add>, %127, %cst_61 [1] : vector<8x8xf32> to vector<8xf32>
    %129 = vector.shape_cast %128 : vector<8xf32> to vector<8x1xf32>
    %130 = vector.broadcast %129 : vector<8x1xf32> to vector<8x8xf32>
    %131 = arith.divf %127, %130 : vector<8x8xf32>
    %cst_62 = arith.constant dense<0.000000e+00> : vector<8x32xf32>
    %132 = tpu.matmul %131, %35, %cst_62 {dimension_numbers = #tpu.dot_dimension_numbers<[1], [0], [0], [1], [0, 0, 1, 1], [], []>} : vector<8x8xf32>, vector<8x32xf32>, vector<8x32xf32> -> vector<8x32xf32>
    %cst_63 = arith.constant dense<0.000000e+00> : vector<8x32xf32>
    %133 = tpu.matmul %132, %118, %cst_63 {dimension_numbers = #tpu.dot_dimension_numbers<[1], [0], [0], [1], [0, 0, 1, 1], [], []>} : vector<8x32xf32>, vector<32x32xf32>, vector<8x32xf32> -> vector<8x32xf32>
    %134 = vector.broadcast %119 : vector<1x32xf32> to vector<8x32xf32>
    %135 = arith.addf %133, %134 : vector<8x32xf32>
    %136 = arith.addf %88, %135 : vector<8x32xf32>
    %c0_64 = arith.constant 0 : index
    %c0_65 = arith.constant 0 : index
    %137 = vector.load %arg9[%c0_64, %c0_65] : memref<1x32xf32, #tpu.memory_space<vmem>>, vector<1x32xf32>
    %c0_66 = arith.constant 0 : index
    %c0_67 = arith.constant 0 : index
    %138 = vector.load %arg10[%c0_66, %c0_67] : memref<1x32xf32, #tpu.memory_space<vmem>>, vector<1x32xf32>
    %cst_68 = arith.constant dense<0.000000e+00> : vector<8xf32>
    %139 = vector.multi_reduction <add>, %136, %cst_68 [1] : vector<8x32xf32> to vector<8xf32>
    %140 = vector.shape_cast %139 : vector<8xf32> to vector<8x1xf32>
    %cst_69 = arith.constant 3.200000e+01 : f32
    %141 = vector.broadcast %cst_69 : f32 to vector<8x1xf32>
    %142 = arith.divf %140, %141 : vector<8x1xf32>
    %143 = vector.broadcast %142 : vector<8x1xf32> to vector<8x32xf32>
    %144 = arith.subf %136, %143 : vector<8x32xf32>
    %145 = arith.mulf %144, %144 : vector<8x32xf32>
    %cst_70 = arith.constant dense<0.000000e+00> : vector<8xf32>
    %146 = vector.multi_reduction <add>, %145, %cst_70 [1] : vector<8x32xf32> to vector<8xf32>
    %147 = vector.shape_cast %146 : vector<8xf32> to vector<8x1xf32>
    %cst_71 = arith.constant 3.100000e+01 : f32
    %148 = vector.broadcast %cst_71 : f32 to vector<8x1xf32>
    %149 = arith.divf %147, %148 : vector<8x1xf32>
    %150 = vector.broadcast %142 : vector<8x1xf32> to vector<8x32xf32>
    %151 = arith.subf %136, %150 : vector<8x32xf32>
    %152 = vector.broadcast %137 : vector<1x32xf32> to vector<8x32xf32>
    %153 = arith.mulf %152, %151 : vector<8x32xf32>
    %154 = math.sqrt %149 : vector<8x1xf32>
    %cst_72 = arith.constant 9.99999997E-7 : f32
    %155 = vector.broadcast %cst_72 : f32 to vector<8x1xf32>
    %156 = arith.addf %154, %155 : vector<8x1xf32>
    %157 = vector.broadcast %156 : vector<8x1xf32> to vector<8x32xf32>
    %158 = arith.divf %153, %157 : vector<8x32xf32>
    %159 = vector.broadcast %138 : vector<1x32xf32> to vector<8x32xf32>
    %160 = arith.addf %158, %159 : vector<8x32xf32>
    %161 = arith.truncf %160 : vector<8x32xf32> to vector<8x32xbf16>
    %c0_73 = arith.constant 0 : index
    %c0_74 = arith.constant 0 : index
    %162 = vector.load %arg21[%c0_73, %c0_74] : memref<32x2048xbf16, #tpu.memory_space<vmem>>, vector<32x2048xbf16>
    %cst_75 = arith.constant dense<0.000000e+00> : vector<8x2048xf32>
    %163 = tpu.matmul %161, %162, %cst_75 {dimension_numbers = #tpu.dot_dimension_numbers<[1], [0], [0], [1], [0, 0, 1, 1], [], []>} : vector<8x32xbf16>, vector<32x2048xbf16>, vector<8x2048xf32> -> vector<8x2048xf32>
    %c0_76 = arith.constant 0 : index
    %c0_77 = arith.constant 0 : index
    %164 = vector.load %arg22[%c0_76, %c0_77] : memref<1x2048xf32, #tpu.memory_space<vmem>>, vector<1x2048xf32>
    %165 = vector.broadcast %164 : vector<1x2048xf32> to vector<8x2048xf32>
    %166 = arith.addf %163, %165 : vector<8x2048xf32>
    %cst_78 = arith.constant 0.000000e+00 : f32
    %167 = vector.broadcast %cst_78 : f32 to vector<8x2048xf32>
    %168 = arith.maximumf %166, %167 : vector<8x2048xf32>
    %169 = arith.truncf %168 : vector<8x2048xf32> to vector<8x2048xbf16>
    %c0_79 = arith.constant 0 : index
    %c0_80 = arith.constant 0 : index
    %170 = vector.load %arg23[%c0_79, %c0_80] : memref<2048x32xbf16, #tpu.memory_space<vmem>>, vector<2048x32xbf16>
    %cst_81 = arith.constant dense<0.000000e+00> : vector<8x32xf32>
    %171 = tpu.matmul %169, %170, %cst_81 {dimension_numbers = #tpu.dot_dimension_numbers<[1], [0], [0], [1], [0, 0, 1, 1], [], []>} : vector<8x2048xbf16>, vector<2048x32xbf16>, vector<8x32xf32> -> vector<8x32xf32>
    %c0_82 = arith.constant 0 : index
    %c0_83 = arith.constant 0 : index
    %172 = vector.load %arg24[%c0_82, %c0_83] : memref<1x32xf32, #tpu.memory_space<vmem>>, vector<1x32xf32>
    %173 = vector.broadcast %172 : vector<1x32xf32> to vector<8x32xf32>
    %174 = arith.addf %171, %173 : vector<8x32xf32>
    %175 = arith.addf %136, %174 : vector<8x32xf32>
    %176 = tpu.transpose %175, [1, 0] : vector<8x32xf32> -> vector<32x8xf32>
    %c0_84 = arith.constant 0 : index
    %c0_85 = arith.constant 0 : index
    %177 = vector.load %arg25[%c0_84, %c0_85] : memref<32x8xf32, #tpu.memory_space<vmem>>, vector<32x8xf32>
    tpu.vector_store %arg25[%c0_84, %c0_85], %176 {strides = array<i32>} : memref<32x8xf32, #tpu.memory_space<vmem>>, vector<32x8xf32>,
    return
  }
  func.func @transform_0(%arg0: i32, %arg1: memref<8xi32, #tpu.memory_space<smem>>) -> (i32, i32) {
    %c0_i32 = arith.constant 0 : i32
    %c0_i32_0 = arith.constant 0 : i32
    %c0_i32_1 = arith.constant 0 : i32
    return %c0_i32, %c0_i32_0 : i32, i32
  }
  func.func @transform_1(%arg0: i32, %arg1: memref<8xi32, #tpu.memory_space<smem>>) -> (i32, i32) {
    %c0_i32 = arith.constant 0 : i32
    %c0_i32_0 = arith.constant 0 : i32
    %c0_i32_1 = arith.constant 0 : i32
    return %c0_i32, %c0_i32_0 : i32, i32
  }
  func.func @transform_2(%arg0: i32, %arg1: memref<8xi32, #tpu.memory_space<smem>>) -> (i32, i32) {
    %c0_i32 = arith.constant 0 : i32
    %c0_i32_0 = arith.constant 0 : i32
    %c0_i32_1 = arith.constant 0 : i32
    return %c0_i32, %c0_i32_0 : i32, i32
  }
  func.func @transform_3(%arg0: i32, %arg1: memref<8xi32, #tpu.memory_space<smem>>) -> (i32, i32) {
    %c0_i32 = arith.constant 0 : i32
    %c0_i32_0 = arith.constant 0 : i32
    %c0_i32_1 = arith.constant 0 : i32
    return %c0_i32, %c0_i32_0 : i32, i32
  }
  func.func @transform_4(%arg0: i32, %arg1: memref<8xi32, #tpu.memory_space<smem>>) -> (i32, i32) {
    %c0_i32 = arith.constant 0 : i32
    %c0_i32_0 = arith.constant 0 : i32
    %c0_i32_1 = arith.constant 0 : i32
    return %c0_i32, %c0_i32_0 : i32, i32
  }
  func.func @transform_5(%arg0: i32, %arg1: memref<8xi32, #tpu.memory_space<smem>>) -> (i32, i32) {
    %c0_i32 = arith.constant 0 : i32
    %c0_i32_0 = arith.constant 0 : i32
    %c0_i32_1 = arith.constant 0 : i32
    return %c0_i32, %c0_i32_0 : i32, i32
  }
  func.func @transform_6(%arg0: i32, %arg1: memref<8xi32, #tpu.memory_space<smem>>) -> (i32, i32) {
    %c0_i32 = arith.constant 0 : i32
    %c0_i32_0 = arith.constant 0 : i32
    %c0_i32_1 = arith.constant 0 : i32
    return %c0_i32, %c0_i32_0 : i32, i32
  }
  func.func @transform_7(%arg0: i32, %arg1: memref<8xi32, #tpu.memory_space<smem>>) -> (i32, i32) {
    %c0_i32 = arith.constant 0 : i32
    %c0_i32_0 = arith.constant 0 : i32
    %c0_i32_1 = arith.constant 0 : i32
    return %c0_i32, %c0_i32_0 : i32, i32
  }
  func.func @transform_8(%arg0: i32, %arg1: memref<8xi32, #tpu.memory_space<smem>>) -> (i32, i32) {
    %c0_i32 = arith.constant 0 : i32
    %c0_i32_0 = arith.constant 0 : i32
    %c0_i32_1 = arith.constant 0 : i32
    return %c0_i32, %c0_i32_0 : i32, i32
  }
  func.func @transform_9(%arg0: i32, %arg1: memref<8xi32, #tpu.memory_space<smem>>) -> (i32, i32) {
    %c0_i32 = arith.constant 0 : i32
    %c0_i32_0 = arith.constant 0 : i32
    %c0_i32_1 = arith.constant 0 : i32
    return %c0_i32, %c0_i32_0 : i32, i32
  }
  func.func @transform_10(%arg0: i32, %arg1: memref<8xi32, #tpu.memory_space<smem>>) -> (i32, i32) {
    %c0_i32 = arith.constant 0 : i32
    %c0_i32_0 = arith.constant 0 : i32
    %c0_i32_1 = arith.constant 0 : i32
    return %c0_i32, %c0_i32_0 : i32, i32
  }
  func.func @transform_11(%arg0: i32, %arg1: memref<8xi32, #tpu.memory_space<smem>>) -> (i32, i32) {
    %c0_i32 = arith.constant 0 : i32
    %c0_i32_0 = arith.constant 0 : i32
    %c0_i32_1 = arith.constant 0 : i32
    return %c0_i32, %c0_i32_0 : i32, i32
  }
  func.func @transform_12(%arg0: i32, %arg1: memref<8xi32, #tpu.memory_space<smem>>) -> (i32, i32) {
    %c0_i32 = arith.constant 0 : i32
    %c0_i32_0 = arith.constant 0 : i32
    %c0_i32_1 = arith.constant 0 : i32
    return %c0_i32, %c0_i32_0 : i32, i32
  }
  func.func @transform_13(%arg0: i32, %arg1: memref<8xi32, #tpu.memory_space<smem>>) -> (i32, i32) {
    %c0_i32 = arith.constant 0 : i32
    %c0_i32_0 = arith.constant 0 : i32
    %c0_i32_1 = arith.constant 0 : i32
    return %c0_i32, %c0_i32_0 : i32, i32
  }
  func.func @transform_14(%arg0: i32, %arg1: memref<8xi32, #tpu.memory_space<smem>>) -> (i32, i32) {
    %c0_i32 = arith.constant 0 : i32
    %c0_i32_0 = arith.constant 0 : i32
    %c0_i32_1 = arith.constant 0 : i32
    return %c0_i32, %c0_i32_0 : i32, i32
  }
  func.func @transform_15(%arg0: i32, %arg1: memref<8xi32, #tpu.memory_space<smem>>) -> (i32, i32) {
    %c0_i32 = arith.constant 0 : i32
    %c0_i32_0 = arith.constant 0 : i32
    %c0_i32_1 = arith.constant 0 : i32
    return %c0_i32, %c0_i32_0 : i32, i32
  }
  func.func @transform_16(%arg0: i32, %arg1: memref<8xi32, #tpu.memory_space<smem>>) -> (i32, i32) {
    %c0_i32 = arith.constant 0 : i32
    %c0_i32_0 = arith.constant 0 : i32
    %c0_i32_1 = arith.constant 0 : i32
    return %c0_i32, %c0_i32_0 : i32, i32
  }
  func.func @transform_17(%arg0: i32, %arg1: memref<8xi32, #tpu.memory_space<smem>>) -> (i32, i32) {
    %c0_i32 = arith.constant 0 : i32
    %c0_i32_0 = arith.constant 0 : i32
    %c0_i32_1 = arith.constant 0 : i32
    return %c0_i32, %c0_i32_0 : i32, i32
  }
  func.func @transform_18(%arg0: i32, %arg1: memref<8xi32, #tpu.memory_space<smem>>) -> (i32, i32) {
    %c0_i32 = arith.constant 0 : i32
    %c0_i32_0 = arith.constant 0 : i32
    %c0_i32_1 = arith.constant 0 : i32
    return %c0_i32, %c0_i32_0 : i32, i32
  }
  func.func @transform_19(%arg0: i32, %arg1: memref<8xi32, #tpu.memory_space<smem>>) -> (i32, i32) {
    %c0_i32 = arith.constant 0 : i32
    %c0_i32_0 = arith.constant 0 : i32
    %c0_i32_1 = arith.constant 0 : i32
    return %c0_i32, %c0_i32_0 : i32, i32
  }
  func.func @transform_20(%arg0: i32, %arg1: memref<8xi32, #tpu.memory_space<smem>>) -> (i32, i32) {
    %c0_i32 = arith.constant 0 : i32
    %c0_i32_0 = arith.constant 0 : i32
    %c0_i32_1 = arith.constant 0 : i32
    return %c0_i32, %c0_i32_0 : i32, i32
  }
  func.func @transform_21(%arg0: i32, %arg1: memref<8xi32, #tpu.memory_space<smem>>) -> (i32, i32) {
    %c0_i32 = arith.constant 0 : i32
    %c0_i32_0 = arith.constant 0 : i32
    %c0_i32_1 = arith.constant 0 : i32
    return %c0_i32, %c0_i32_0 : i32, i32
  }
  func.func @transform_22(%arg0: i32, %arg1: memref<8xi32, #tpu.memory_space<smem>>) -> (i32, i32) {
    %c0_i32 = arith.constant 0 : i32
    %c0_i32_0 = arith.constant 0 : i32
    %c0_i32_1 = arith.constant 0 : i32
    return %c0_i32, %c0_i32_0 : i32, i32
  }
  func.func @transform_23(%arg0: i32, %arg1: memref<8xi32, #tpu.memory_space<smem>>) -> (i32, i32) {
    %c0_i32 = arith.constant 0 : i32
    %c0_i32_0 = arith.constant 0 : i32
    %c0_i32_1 = arith.constant 0 : i32
    return %c0_i32, %c0_i32_0 : i32, i32
  }
}

</mosaic_0001>

<llo_original>
// kernel: mat_transformer_cell.1
$region0: #{mat_transformer_cell.1}
  #allocation0 [shape = 'u32[]', space=smem, size = 0x4, offset = 0x4, fixed_abs, tag = 'smem constant byte address 0x4 - core index']
  #allocation1 [shape = 'u32[144,128]{1,0:T(1,128)}', space=vmem, size = 0x12000, scoped, tag = 'internal scratch']
  #allocation2 [shape = 's32[1]{0}', space=sflag, size = 0x4, scoped, tag = 'scoped memory for mat_transformer_cell.1']
  #allocation3 [shape = 'u8[512]{0}', space=smem, size = 0x200, scoped, tag = 'prefetched SMEM operand 0']
  %s0 = inlined_call_operand.vmem [shape: s32[8], index: 0, kind: input, shape index: {}]
  %s1 = inlined_call_operand.vmem [shape: f32[32,8], index: 1, kind: input, shape index: {}]
  %s2 = inlined_call_operand.vmem [shape: f32[16,32], index: 2, kind: input, shape index: {}]
  %s3 = inlined_call_operand.vmem [shape: f32[8,1], index: 3, kind: input, shape index: {}]
  %s4 = inlined_call_operand.vmem [shape: f32[1,32], index: 4, kind: input, shape index: {}]
  %s5 = inlined_call_operand.vmem [shape: f32[1,32], index: 5, kind: input, shape index: {}]
  %s6 = inlined_call_operand.vmem [shape: f32[1,32], index: 6, kind: input, shape index: {}]
  %s7 = inlined_call_operand.vmem [shape: f32[1,32], index: 7, kind: input, shape index: {}]
  %s8 = inlined_call_operand.vmem [shape: f32[1,32], index: 8, kind: input, shape index: {}]
  %s9 = inlined_call_operand.vmem [shape: f32[1,32], index: 9, kind: input, shape index: {}]
  %s10 = inlined_call_operand.vmem [shape: f32[32,96], index: 10, kind: input, shape index: {}]
  %s11 = inlined_call_operand.vmem [shape: f32[1,96], index: 11, kind: input, shape index: {}]
  %s12 = inlined_call_operand.vmem [shape: f32[32,32], index: 12, kind: input, shape index: {}]
  %s13 = inlined_call_operand.vmem [shape: f32[1,32], index: 13, kind: input, shape index: {}]
  %s14 = inlined_call_operand.vmem [shape: f32[32,32], index: 14, kind: input, shape index: {}]
  %s15 = inlined_call_operand.vmem [shape: f32[1,32], index: 15, kind: input, shape index: {}]
  %s16 = inlined_call_operand.vmem [shape: f32[32,64], index: 16, kind: input, shape index: {}]
  %s17 = inlined_call_operand.vmem [shape: f32[1,64], index: 17, kind: input, shape index: {}]
  %s18 = inlined_call_operand.vmem [shape: f32[32,32], index: 18, kind: input, shape index: {}]
  %s19 = inlined_call_operand.vmem [shape: f32[1,32], index: 19, kind: input, shape index: {}]
  %s20 = inlined_call_operand.vmem [shape: bf16[32,2048], index: 20, kind: input, shape index: {}]
  %s21 = inlined_call_operand.vmem [shape: f32[1,2048], index: 21, kind: input, shape index: {}]
  %s22 = inlined_call_operand.vmem [shape: bf16[2048,32], index: 22, kind: input, shape index: {}]
  %s23 = inlined_call_operand.vmem [shape: f32[1,32], index: 23, kind: input, shape index: {}]
  %s24 = inlined_call_operand.vmem [shape: f32[32,8], index: 24, kind: output, shape index: {}]
  %s25 = sld [smem:[#allocation0]]
  $region102: #{mat_transformer_cell.1} parent=0
    _
  %s27 = ssub.s32 1, %s25
  %s28 = scalar_select 0, %s27, %s25
  %s29 = sshll.u32 %s0, 4
  %s30 = int_to_ptr.vmem [resolvable:$true] %s29
  %32 = dma.vmem_to_smem %s30, 16, [#allocation3], [#allocation2]
  %33 = dma.done [#allocation2], 16
  %34 = sfence
  // Predicated region
  $region2: #{mat_transformer_cell.1} parent=0 // pred_check
    _
  $region3: #{mat_transformer_cell.1} parent=0 // pred_check_branch
    %36 = sbr.rel (0) target = $region5
  $region4: #{mat_transformer_cell.1} parent=0 // pred_region
    _
  $region5: #{mat_transformer_cell.1} parent=0 // pred_fallthru
    _
  // Predicated region
  $region6: #{mat_transformer_cell.1} parent=0 // pred_check
    _
  $region7: #{mat_transformer_cell.1} parent=0 // pred_check_branch
    %38 = sbr.rel (0) target = $region9
  $region8: #{mat_transformer_cell.1} parent=0 // pred_region
    _
  $region9: #{mat_transformer_cell.1} parent=0 // pred_fallthru
    _
  // Predicated region
  $region10: #{mat_transformer_cell.1} parent=0 // pred_check
    _
  $region11: #{mat_transformer_cell.1} parent=0 // pred_check_branch
    %40 = sbr.rel (0) target = $region13
  $region12: #{mat_transformer_cell.1} parent=0 // pred_region
    _
  $region13: #{mat_transformer_cell.1} parent=0 // pred_fallthru
    _
  // Predicated region
  $region14: #{mat_transformer_cell.1} parent=0 // pred_check
    _
  $region15: #{mat_transformer_cell.1} parent=0 // pred_check_branch
    %42 = sbr.rel (0) target = $region17
  $region16: #{mat_transformer_cell.1} parent=0 // pred_region
    _
  $region17: #{mat_transformer_cell.1} parent=0 // pred_fallthru
    _
  // Predicated region
  $region18: #{mat_transformer_cell.1} parent=0 // pred_check
    _
  $region19: #{mat_transformer_cell.1} parent=0 // pred_check_branch
    %44 = sbr.rel (0) target = $region21
  $region20: #{mat_transformer_cell.1} parent=0 // pred_region
    _
  $region21: #{mat_transformer_cell.1} parent=0 // pred_fallthru
    _
  // Predicated region
  $region22: #{mat_transformer_cell.1} parent=0 // pred_check
    _
  $region23: #{mat_transformer_cell.1} parent=0 // pred_check_branch
    %46 = sbr.rel (0) target = $region25
  $region24: #{mat_transformer_cell.1} parent=0 // pred_region
    _
  $region25: #{mat_transformer_cell.1} parent=0 // pred_fallthru
    _
  // Predicated region
  $region26: #{mat_transformer_cell.1} parent=0 // pred_check
    _
  $region27: #{mat_transformer_cell.1} parent=0 // pred_check_branch
    %48 = sbr.rel (0) target = $region29
  $region28: #{mat_transformer_cell.1} parent=0 // pred_region
    _
  $region29: #{mat_transformer_cell.1} parent=0 // pred_fallthru
    _
  // Predicated region
  $region30: #{mat_transformer_cell.1} parent=0 // pred_check
    _
  $region31: #{mat_transformer_cell.1} parent=0 // pred_check_branch
    %50 = sbr.rel (0) target = $region33
  $region32: #{mat_transformer_cell.1} parent=0 // pred_region
    _
  $region33: #{mat_transformer_cell.1} parent=0 // pred_fallthru
    _
  // Predicated region
  $region34: #{mat_transformer_cell.1} parent=0 // pred_check
    _
  $region35: #{mat_transformer_cell.1} parent=0 // pred_check_branch
    %52 = sbr.rel (0) target = $region37
  $region36: #{mat_transformer_cell.1} parent=0 // pred_region
    _
  $region37: #{mat_transformer_cell.1} parent=0 // pred_fallthru
    _
  // Predicated region
  $region38: #{mat_transformer_cell.1} parent=0 // pred_check
    _
  $region39: #{mat_transformer_cell.1} parent=0 // pred_check_branch
    %54 = sbr.rel (0) target = $region41
  $region40: #{mat_transformer_cell.1} parent=0 // pred_region
    _
  $region41: #{mat_transformer_cell.1} parent=0 // pred_fallthru
    _
  // Predicated region
  $region42: #{mat_transformer_cell.1} parent=0 // pred_check
    _
  $region43: #{mat_transformer_cell.1} parent=0 // pred_check_branch
    %56 = sbr.rel (0) target = $region45
  $region44: #{mat_transformer_cell.1} parent=0 // pred_region
    _
  $region45: #{mat_transformer_cell.1} parent=0 // pred_fallthru
    _
  // Predicated region
  $region46: #{mat_transformer_cell.1} parent=0 // pred_check
    _
  $region47: #{mat_transformer_cell.1} parent=0 // pred_check_branch
    %58 = sbr.rel (0) target = $region49
  $region48: #{mat_transformer_cell.1} parent=0 // pred_region
    _
  $region49: #{mat_transformer_cell.1} parent=0 // pred_fallthru
    _
  // Predicated region
  $region50: #{mat_transformer_cell.1} parent=0 // pred_check
    _
  $region51: #{mat_transformer_cell.1} parent=0 // pred_check_branch
    %60 = sbr.rel (0) target = $region53
  $region52: #{mat_transformer_cell.1} parent=0 // pred_region
    _
  $region53: #{mat_transformer_cell.1} parent=0 // pred_fallthru
    _
  // Predicated region
  $region54: #{mat_transformer_cell.1} parent=0 // pred_check
    _
  $region55: #{mat_transformer_cell.1} parent=0 // pred_check_branch
    %62 = sbr.rel (0) target = $region57
  $region56: #{mat_transformer_cell.1} parent=0 // pred_region
    _
  $region57: #{mat_transformer_cell.1} parent=0 // pred_fallthru
    _
  // Predicated region
  $region58: #{mat_transformer_cell.1} parent=0 // pred_check
    _
  $region59: #{mat_transformer_cell.1} parent=0 // pred_check_branch
    %64 = sbr.rel (0) target = $region61
  $region60: #{mat_transformer_cell.1} parent=0 // pred_region
    _
  $region61: #{mat_transformer_cell.1} parent=0 // pred_fallthru
    _
  // Predicated region
  $region62: #{mat_transformer_cell.1} parent=0 // pred_check
    _
  $region63: #{mat_transformer_cell.1} parent=0 // pred_check_branch
    %66 = sbr.rel (0) target = $region65
  $region64: #{mat_transformer_cell.1} parent=0 // pred_region
    _
  $region65: #{mat_transformer_cell.1} parent=0 // pred_fallthru
    _
  // Predicated region
  $region66: #{mat_transformer_cell.1} parent=0 // pred_check
    _
  $region67: #{mat_transformer_cell.1} parent=0 // pred_check_branch
    %68 = sbr.rel (0) target = $region69
  $region68: #{mat_transformer_cell.1} parent=0 // pred_region
    _
  $region69: #{mat_transformer_cell.1} parent=0 // pred_fallthru
    _
  // Predicated region
  $region70: #{mat_transformer_cell.1} parent=0 // pred_check
    _
  $region71: #{mat_transformer_cell.1} parent=0 // pred_check_branch
    %70 = sbr.rel (0) target = $region73
  $region72: #{mat_transformer_cell.1} parent=0 // pred_region
    _
  $region73: #{mat_transformer_cell.1} parent=0 // pred_fallthru
    _
  // Predicated region
  $region74: #{mat_transformer_cell.1} parent=0 // pred_check
    _
  $region75: #{mat_transformer_cell.1} parent=0 // pred_check_branch
    %72 = sbr.rel (0) target = $region77
  $region76: #{mat_transformer_cell.1} parent=0 // pred_region
    _
  $region77: #{mat_transformer_cell.1} parent=0 // pred_fallthru
    _
  // Predicated region
  $region78: #{mat_transformer_cell.1} parent=0 // pred_check
    _
  $region79: #{mat_transformer_cell.1} parent=0 // pred_check_branch
    %74 = sbr.rel (0) target = $region81
  $region80: #{mat_transformer_cell.1} parent=0 // pred_region
    _
  $region81: #{mat_transformer_cell.1} parent=0 // pred_fallthru
    _
  // Predicated region
  $region82: #{mat_transformer_cell.1} parent=0 // pred_check
    _
  $region83: #{mat_transformer_cell.1} parent=0 // pred_check_branch
    %76 = sbr.rel (0) target = $region85
  $region84: #{mat_transformer_cell.1} parent=0 // pred_region
    _
  $region85: #{mat_transformer_cell.1} parent=0 // pred_fallthru
    _
  // Predicated region
  $region86: #{mat_transformer_cell.1} parent=0 // pred_check
    _
  $region87: #{mat_transformer_cell.1} parent=0 // pred_check_branch
    %78 = sbr.rel (0) target = $region89
  $region88: #{mat_transformer_cell.1} parent=0 // pred_region
    _
  $region89: #{mat_transformer_cell.1} parent=0 // pred_fallthru
    _
  // Predicated region
  $region90: #{mat_transformer_cell.1} parent=0 // pred_check
    _
  $region91: #{mat_transformer_cell.1} parent=0 // pred_check_branch
    %80 = sbr.rel (0) target = $region93
  $region92: #{mat_transformer_cell.1} parent=0 // pred_region
    _
  $region93: #{mat_transformer_cell.1} parent=0 // pred_fallthru
    _
  %s82 = sld [smem:[#allocation3]]
  %s83 = scalar_lea.vmem %s2, %s82
  %v84 = vld [vmem:[%s83] sm:$0x1]
  %s85 = sld [smem:[#allocation3 + $0x1]]
  %s86 = scalar_lea.vmem %s2, %s85
  %v87 = vld [vmem:[%s86] sm:$0x1]
  %s88 = sld [smem:[#allocation3 + $0x2]]
  %s89 = scalar_lea.vmem %s2, %s88
  %v90 = vld [vmem:[%s89] sm:$0x1]
  %s91 = sld [smem:[#allocation3 + $0x3]]
  %s92 = scalar_lea.vmem %s2, %s91
  %v93 = vld [vmem:[%s92] sm:$0x1]
  %s94 = sld [smem:[#allocation3 + $0x4]]
  %s95 = scalar_lea.vmem %s2, %s94
  %v96 = vld [vmem:[%s95] sm:$0x1]
  %s97 = sld [smem:[#allocation3 + $0x5]]
  %s98 = scalar_lea.vmem %s2, %s97
  %v99 = vld [vmem:[%s98] sm:$0x1]
  %s100 = sld [smem:[#allocation3 + $0x6]]
  %s101 = scalar_lea.vmem %s2, %s100
  %v102 = vld [vmem:[%s101] sm:$0x1]
  %s103 = sld [smem:[#allocation3 + $0x7]]
  %s104 = scalar_lea.vmem %s2, %s103
  %v105 = vld [vmem:[%s104] sm:$0x1]
  %v107 = vrot.slane %v87, 7
  %v110 = vrot.slane %v90, 6
  %v113 = vrot.slane %v93, 5
  %v116 = vrot.slane %v96, 4
  %v119 = vrot.slane %v99, 3
  %v122 = vrot.slane %v102, 2
  %v125 = vrot.slane %v105, 1
  %vm127 = vcmask 1040384
  %v128 = vsel %vm127, %v84, %v107
  %vm129 = vcmask 1041408
  %v130 = vsel %vm129, %v128, %v110
  %vm131 = vcmask 1042432
  %v132 = vsel %vm131, %v130, %v113
  %vm133 = vcmask 1043456
  %v134 = vsel %vm133, %v132, %v116
  %vm135 = vcmask 1044480
  %v136 = vsel %vm135, %v134, %v119
  %vm137 = vcmask 1045504
  %v138 = vsel %vm137, %v136, %v122
  %vm139 = vcmask 1046528
  %v140 = vsel %vm139, %v138, %v125
  %v141 = vld [vmem:[%s3] sm:$0xff]
  %v142 = vtanh.pop %v141
  %144 = vset.pattern.permute.xlu0 0
  %145 = vperm.xlu0 %144, %v142
  %v146 = vpop.permute.xlu0 %145
  %v148 = vmul.f32 %v140, %v146
  %v149 = vld [vmem:[%s16] sm:$0xff]
  %v150 = vld [vmem:[%s16 + $0x8] sm:$0xff]
  %v151 = vld [vmem:[%s16 + $0x10] sm:$0xff]
  %v152 = vld [vmem:[%s16 + $0x18] sm:$0xff]
  %v153 = vld [vmem:[%s17] sm:$0x1]
  %v155 = vlaneseq
  %v156 = vshrl.u32 %v155, 7
  %v157 = vsub.s32 0, %v156
  %v158 = vrot.slane %v153, %v157
  %vm160 = vcmask 261120
  %v162 = vsel %vm160, %v148, 0
  %164 = vmatprep.subr.mxu0 0.0
  %165 = vmatpush1.msra.mxu0 %v149
  %166 = vmatprep.subr.mxu0 0.0
  %167 = vmatpush1.msra.mxu0 %v150
  %168 = vmatprep.subr.mxu0 0.0
  %169 = vmatpush1.msra.mxu0 %v151
  %170 = vmatprep.subr.mxu0 0.0
  %171 = vmatpush1.msra.mxu0 %v152
  %172 = vmatprep.subr.mxu0 0.0
  %173 = vmatpush1.msra.mxu0 0.0
  %174 = vmatprep.subr.mxu0 0.0
  %175 = vmatpush1.msra.mxu0 0.0
  %176 = vmatprep.subr.mxu0 0.0
  %177 = vmatpush1.msra.mxu0 0.0
  %178 = vmatprep.subr.mxu0 0.0
  %179 = vmatpush1.msra.mxu0 0.0
  %180 = vmatprep.subr.mxu0 0.0
  %181 = vmatpush1.msra.mxu0 0.0
  %182 = vmatprep.subr.mxu0 0.0
  %183 = vmatpush1.msra.mxu0 0.0
  %184 = vmatprep.subr.mxu0 0.0
  %185 = vmatpush1.msra.mxu0 0.0
  %186 = vmatprep.subr.mxu0 0.0
  %187 = vmatpush1.msra.mxu0 0.0
  %188 = vmatprep.subr.mxu0 0.0
  %189 = vmatpush1.msra.mxu0 0.0
  %190 = vmatprep.subr.mxu0 0.0
  %191 = vmatpush1.msra.mxu0 0.0
  %192 = vmatprep.subr.mxu0 0.0
  %193 = vmatpush1.msra.mxu0 0.0
  %194 = vmatprep.subr.mxu0 0.0
  %195 = vmatpush1.msra.mxu0 0.0
  %196 = vmatprep.subr.mxu0 0.0
  %197 = vmatpush1.msra.mxu0 0.0
  %198 = vmatprep.subr.mxu0 0.0
  %199 = vmatpush1.msra.mxu0 0.0
  %200 = vmatprep.subr.mxu0 0.0
  %201 = vmatpush1.msra.mxu0 0.0
  %202 = vmatprep.subr.mxu0 0.0
  %203 = vmatpush1.msra.mxu0 0.0
  %204 = vmatprep.subr.mxu0 0.0
  %205 = vmatpush1.msra.mxu0 0.0
  %206 = vmatprep.subr.mxu0 0.0
  %207 = vmatpush1.msra.mxu0 0.0
  %208 = vmatprep.subr.mxu0 0.0
  %209 = vmatpush1.msra.mxu0 0.0
  %210 = vmatprep.subr.mxu0 0.0
  %211 = vmatpush1.msra.mxu0 0.0
  %212 = vmatprep.subr.mxu0 0.0
  %213 = vmatpush1.msra.mxu0 0.0
  %214 = vmatprep.subr.mxu0 0.0
  %215 = vmatpush1.msra.mxu0 0.0
  %216 = vmatprep.subr.mxu0 0.0
  %217 = vmatpush1.msra.mxu0 0.0
  %218 = vmatprep.subr.mxu0 0.0
  %219 = vmatpush1.msra.mxu0 0.0
  %220 = vmatprep.subr.mxu0 0.0
  %221 = vmatpush1.msra.mxu0 0.0
  %222 = vmatprep.subr.mxu0 0.0
  %223 = vmatpush1.msra.mxu0 0.0
  %224 = vmatprep.subr.mxu0 0.0
  %225 = vmatpush1.msra.mxu0 0.0
  %226 = vmatprep.subr.mxu0 0.0
  %227 = vmatpush1.msra.mxu0 0.0
  %228 = vmatprep.mubr.f32.mxu0 0.0
  %229 = vmatmul.mubr.f32.gmra.mrb[0].mxu0 %v162
  %v230 = vpop.f32.mrb[0].mxu0
  %v231 = vadd.f32 %v158, %v230
  %v232 = vpop.f32.mrb[0].mxu0
  %233 = vdwg.mxu0
  %v234 = vld [vmem:[%s1] sm:$0xff]
  %v235 = vld [vmem:[%s1 + $0x8] sm:$0xff]
  %v236 = vld [vmem:[%s1 + $0x10] sm:$0xff]
  %v237 = vld [vmem:[%s1 + $0x18] sm:$0xff]
  %238 = vxpose.xlu0.b32.start [1/16] %v234, 128
  %239 = vxpose.xlu0.b32.cont [2/16] %v235, 128
  %240 = vxpose.xlu0.b32.cont [3/16] %v236, 128
  %241 = vxpose.xlu0.b32.cont [4/16] %v237, 128
  %242 = vxpose.xlu0.b32.cont [5/16] 0.0, 128
  %243 = vxpose.xlu0.b32.cont [6/16] 0.0, 128
  %244 = vxpose.xlu0.b32.cont [7/16] 0.0, 128
  %245 = vxpose.xlu0.b32.cont [8/16] 0.0, 128
  %246 = vxpose.xlu0.b32.cont [9/16] 0.0, 128
  %247 = vxpose.xlu0.b32.cont [10/16] 0.0, 128
  %248 = vxpose.xlu0.b32.cont [11/16] 0.0, 128
  %249 = vxpose.xlu0.b32.cont [12/16] 0.0, 128
  %250 = vxpose.xlu0.b32.cont [13/16] 0.0, 128
  %251 = vxpose.xlu0.b32.cont [14/16] 0.0, 128
  %252 = vxpose.xlu0.b32.cont [15/16] 0.0, 128
  %253 = vxpose.xlu0.b32.end [16/16] 0.0, 128
  %v254 = vpop.trf.xlu0
  %v255 = vpop.trf.xlu0
  %v256 = vpop.trf.xlu0
  %v257 = vpop.trf.xlu0
  %v258 = vpop.trf.xlu0
  %v259 = vpop.trf.xlu0
  %v260 = vpop.trf.xlu0
  %v261 = vpop.trf.xlu0
  %v262 = vpop.trf.xlu0
  %v263 = vpop.trf.xlu0
  %v264 = vpop.trf.xlu0
  %v265 = vpop.trf.xlu0
  %v266 = vpop.trf.xlu0
  %v267 = vpop.trf.xlu0
  %v268 = vpop.trf.xlu0
  %v269 = vpop.trf.xlu0
  %v270 = vld [vmem:[%s4] sm:$0x1]
  %v271 = vld [vmem:[%s5] sm:$0x1]
  %v272 = vsel %vm160, %v254, 0.0
  %273 = vadd.xlane.f32.xlu0 %v272
  %v274 = vpop.xlane.xlu0 %273
  %v275 = vrcp.pop 32.0
  %v276 = vmul.f32 %v274, %v275
  %v277 = vsub.f32 %v254, %v276
  %v278 = vmul.f32 %v277, %v277
  %v279 = vsel %vm160, %v278, 0.0
  %280 = vadd.xlane.f32.xlu0 %v279
  %v281 = vpop.xlane.xlu0 %280
  %v282 = vrcp.pop 31.0
  %v283 = vmul.f32 %v281, %v282
  %v285 = vlaneseq
  %v286 = vshrl.u32 %v285, 7
  %v287 = vsub.s32 0, %v286
  %v288 = vrot.slane %v270, %v287
  %v290 = vmul.f32 %v288, %v277
  %v291 = vrsqrt.pop %v283
  %v292 = vmul.f32 %v283, %v291
  %vm293 = vcmp.eq.f32.partialorder %v283, inf
  %v294 = vsel %vm293, %v283, %v292
  %vm295 = vcmp.eq.f32.partialorder %v283, 0.0
  %v296 = vand.u32 %v283, 2147483648
  %v297 = vsel %vm295, %v296, %v294
  %v298 = vadd.f32 %v297, 1e-06
  %v299 = vrcp.pop %v298
  %v300 = vmul.f32 %v290, %v299
  %v302 = vlaneseq
  %v303 = vshrl.u32 %v302, 7
  %v304 = vsub.s32 0, %v303
  %v305 = vrot.slane %v271, %v304
  %v307 = vadd.f32 %v300, %v305
  %v308 = vld [vmem:[%s10] sm:$0xff]
  %v309 = vld [vmem:[%s10 + $0x8] sm:$0xff]
  %v310 = vld [vmem:[%s10 + $0x10] sm:$0xff]
  %v311 = vld [vmem:[%s10 + $0x18] sm:$0xff]
  %v312 = vld [vmem:[%s11] sm:$0x1]
  %v314 = vlaneseq
  %v315 = vshrl.u32 %v314, 7
  %v316 = vsub.s32 0, %v315
  %v317 = vrot.slane %v312, %v316
  %v320 = vsel %vm160, %v307, 0
  %322 = vmatprep.subr.mxu0 0.0
  %323 = vmatpush1.msra.mxu0 %v308
  %324 = vmatprep.subr.mxu0 0.0
  %325 = vmatpush1.msra.mxu0 %v309
  %326 = vmatprep.subr.mxu0 0.0
  %327 = vmatpush1.msra.mxu0 %v310
  %328 = vmatprep.subr.mxu0 0.0
  %329 = vmatpush1.msra.mxu0 %v311
  %330 = vmatprep.subr.mxu0 0.0
  %331 = vmatpush1.msra.mxu0 0.0
  %332 = vmatprep.subr.mxu0 0.0
  %333 = vmatpush1.msra.mxu0 0.0
  %334 = vmatprep.subr.mxu0 0.0
  %335 = vmatpush1.msra.mxu0 0.0
  %336 = vmatprep.subr.mxu0 0.0
  %337 = vmatpush1.msra.mxu0 0.0
  %338 = vmatprep.subr.mxu0 0.0
  %339 = vmatpush1.msra.mxu0 0.0
  %340 = vmatprep.subr.mxu0 0.0
  %341 = vmatpush1.msra.mxu0 0.0
  %342 = vmatprep.subr.mxu0 0.0
  %343 = vmatpush1.msra.mxu0 0.0
  %344 = vmatprep.subr.mxu0 0.0
  %345 = vmatpush1.msra.mxu0 0.0
  %346 = vmatprep.subr.mxu0 0.0
  %347 = vmatpush1.msra.mxu0 0.0
  %348 = vmatprep.subr.mxu0 0.0
  %349 = vmatpush1.msra.mxu0 0.0
  %350 = vmatprep.subr.mxu0 0.0
  %351 = vmatpush1.msra.mxu0 0.0
  %352 = vmatprep.subr.mxu0 0.0
  %353 = vmatpush1.msra.mxu0 0.0
  %354 = vmatprep.subr.mxu0 0.0
  %355 = vmatpush1.msra.mxu0 0.0
  %356 = vmatprep.subr.mxu0 0.0
  %357 = vmatpush1.msra.mxu0 0.0
  %358 = vmatprep.subr.mxu0 0.0
  %359 = vmatpush1.msra.mxu0 0.0
  %360 = vmatprep.subr.mxu0 0.0
  %361 = vmatpush1.msra.mxu0 0.0
  %362 = vmatprep.subr.mxu0 0.0
  %363 = vmatpush1.msra.mxu0 0.0
  %364 = vmatprep.subr.mxu0 0.0
  %365 = vmatpush1.msra.mxu0 0.0
  %366 = vmatprep.subr.mxu0 0.0
  %367 = vmatpush1.msra.mxu0 0.0
  %368 = vmatprep.subr.mxu0 0.0
  %369 = vmatpush1.msra.mxu0 0.0
  %370 = vmatprep.subr.mxu0 0.0
  %371 = vmatpush1.msra.mxu0 0.0
  %372 = vmatprep.subr.mxu0 0.0
  %373 = vmatpush1.msra.mxu0 0.0
  %374 = vmatprep.subr.mxu0 0.0
  %375 = vmatpush1.msra.mxu0 0.0
  %376 = vmatprep.subr.mxu0 0.0
  %377 = vmatpush1.msra.mxu0 0.0
  %378 = vmatprep.subr.mxu0 0.0
  %379 = vmatpush1.msra.mxu0 0.0
  %380 = vmatprep.subr.mxu0 0.0
  %381 = vmatpush1.msra.mxu0 0.0
  %382 = vmatprep.subr.mxu0 0.0
  %383 = vmatpush1.msra.mxu0 0.0
  %384 = vmatprep.subr.mxu0 0.0
  %385 = vmatpush1.msra.mxu0 0.0
  %386 = vmatprep.mubr.f32.mxu0 0.0
  %387 = vmatmul.mubr.f32.gmra.mrb[0].mxu0 %v320
  %v388 = vpop.f32.mrb[0].mxu0
  %v389 = vadd.f32 %v317, %v388
  %v390 = vpop.f32.mrb[0].mxu0
  %391 = vdwg.mxu0
  %v392 = vld [vmem:[%s12] sm:$0xff]
  %v393 = vld [vmem:[%s12 + $0x8] sm:$0xff]
  %v394 = vld [vmem:[%s12 + $0x10] sm:$0xff]
  %v395 = vld [vmem:[%s12 + $0x18] sm:$0xff]
  %v396 = vld [vmem:[%s13] sm:$0x1]
  %398 = vrot.lane.b32.xlu0 %v389, 96
  %v399 = vpop.permute.xlu0 %398
  %v400 = vsel %vm160, %v389, 0
  %v402 = vsel %vm160, %v399, 0
  %404 = vmatprep.subr.mxu0 0.0
  %405 = vmatpush1.xpose.msra.mxu0 %v402
  %406 = vmatprep.subr.mxu0 0.0
  %407 = vmatpush1.xpose.msra.mxu0 0.0
  %408 = vmatprep.subr.mxu0 0.0
  %409 = vmatpush1.xpose.msra.mxu0 0.0
  %410 = vmatprep.subr.mxu0 0.0
  %411 = vmatpush1.xpose.msra.mxu0 0.0
  %412 = vmatprep.subr.mxu0 0.0
  %413 = vmatpush1.xpose.msra.mxu0 0.0
  %414 = vmatprep.subr.mxu0 0.0
  %415 = vmatpush1.xpose.msra.mxu0 0.0
  %416 = vmatprep.subr.mxu0 0.0
  %417 = vmatpush1.xpose.msra.mxu0 0.0
  %418 = vmatprep.subr.mxu0 0.0
  %419 = vmatpush1.xpose.msra.mxu0 0.0
  %420 = vmatprep.subr.mxu0 0.0
  %421 = vmatpush1.xpose.msra.mxu0 0.0
  %422 = vmatprep.subr.mxu0 0.0
  %423 = vmatpush1.xpose.msra.mxu0 0.0
  %424 = vmatprep.subr.mxu0 0.0
  %425 = vmatpush1.xpose.msra.mxu0 0.0
  %426 = vmatprep.subr.mxu0 0.0
  %427 = vmatpush1.xpose.msra.mxu0 0.0
  %428 = vmatprep.subr.mxu0 0.0
  %429 = vmatpush1.xpose.msra.mxu0 0.0
  %430 = vmatprep.subr.mxu0 0.0
  %431 = vmatpush1.xpose.msra.mxu0 0.0
  %432 = vmatprep.subr.mxu0 0.0
  %433 = vmatpush1.xpose.msra.mxu0 0.0
  %434 = vmatprep.subr.mxu0 0.0
  %435 = vmatpush1.xpose.msra.mxu0 0.0
  %436 = vmatprep.subr.mxu0 0.0
  %437 = vmatpush1.xpose.msra.mxu0 0.0
  %438 = vmatprep.subr.mxu0 0.0
  %439 = vmatpush1.xpose.msra.mxu0 0.0
  %440 = vmatprep.subr.mxu0 0.0
  %441 = vmatpush1.xpose.msra.mxu0 0.0
  %442 = vmatprep.subr.mxu0 0.0
  %443 = vmatpush1.xpose.msra.mxu0 0.0
  %444 = vmatprep.subr.mxu0 0.0
  %445 = vmatpush1.xpose.msra.mxu0 0.0
  %446 = vmatprep.subr.mxu0 0.0
  %447 = vmatpush1.xpose.msra.mxu0 0.0
  %448 = vmatprep.subr.mxu0 0.0
  %449 = vmatpush1.xpose.msra.mxu0 0.0
  %450 = vmatprep.subr.mxu0 0.0
  %451 = vmatpush1.xpose.msra.mxu0 0.0
  %452 = vmatprep.subr.mxu0 0.0
  %453 = vmatpush1.xpose.msra.mxu0 0.0
  %454 = vmatprep.subr.mxu0 0.0
  %455 = vmatpush1.xpose.msra.mxu0 0.0
  %456 = vmatprep.subr.mxu0 0.0
  %457 = vmatpush1.xpose.msra.mxu0 0.0
  %458 = vmatprep.subr.mxu0 0.0
  %459 = vmatpush1.xpose.msra.mxu0 0.0
  %460 = vmatprep.subr.mxu0 0.0
  %461 = vmatpush1.xpose.msra.mxu0 0.0
  %462 = vmatprep.subr.mxu0 0.0
  %463 = vmatpush1.xpose.msra.mxu0 0.0
  %464 = vmatprep.subr.mxu0 0.0
  %465 = vmatpush1.xpose.msra.mxu0 0.0
  %466 = vmatprep.subr.mxu0 0.0
  %467 = vmatpush1.xpose.msra.mxu0 0.0
  %468 = vmatprep.mubr.f32.mxu0 0.0
  %469 = vmatmul.mubr.f32.gmra.mrb[0].mxu0 %v400
  %v470 = vpop.f32.mrb[0].mxu0
  %v471 = vadd.f32 0.0, %v470
  %v472 = vpop.f32.mrb[0].mxu0
  %473 = vdwg.mxu0
  %v474 = vmul.f32 %v471, 0.17677669
  %vm475 = vcmask 64512
  %v476 = vsel %vm475, %v474, -inf
  %477 = vmax.xlane.f32.xlu0 %v476
  %v478 = vpop.xlane.xlu0 %477
  %v479 = vsub.f32 %v474, %v478
  %v480 = vmul.f32 %v479, 1.442695
  %v481 = vpow.pop %v480
  %v482 = vsel %vm475, %v481, 0.0
  %483 = vadd.xlane.f32.xlu0 %v482
  %v484 = vpop.xlane.xlu0 %483
  %v485 = vrcp.pop %v484
  %v486 = vmul.f32 %v481, %v485
  %487 = vrot.lane.b32.xlu0 %v389, 64
  %v488 = vpop.permute.xlu0 %487
  %v491 = vsel %vm475, %v486, 0
  %493 = vmatprep.subr.mxu0 0.0
  %494 = vmatpush1.msra.mxu0 %v488
  %495 = vmatprep.subr.mxu0 0.0
  %496 = vmatpush1.msra.mxu0 0.0
  %497 = vmatprep.subr.mxu0 0.0
  %498 = vmatpush1.msra.mxu0 0.0
  %499 = vmatprep.subr.mxu0 0.0
  %500 = vmatpush1.msra.mxu0 0.0
  %501 = vmatprep.subr.mxu0 0.0
  %502 = vmatpush1.msra.mxu0 0.0
  %503 = vmatprep.subr.mxu0 0.0
  %504 = vmatpush1.msra.mxu0 0.0
  %505 = vmatprep.subr.mxu0 0.0
  %506 = vmatpush1.msra.mxu0 0.0
  %507 = vmatprep.subr.mxu0 0.0
  %508 = vmatpush1.msra.mxu0 0.0
  %509 = vmatprep.subr.mxu0 0.0
  %510 = vmatpush1.msra.mxu0 0.0
  %511 = vmatprep.subr.mxu0 0.0
  %512 = vmatpush1.msra.mxu0 0.0
  %513 = vmatprep.subr.mxu0 0.0
  %514 = vmatpush1.msra.mxu0 0.0
  %515 = vmatprep.subr.mxu0 0.0
  %516 = vmatpush1.msra.mxu0 0.0
  %517 = vmatprep.subr.mxu0 0.0
  %518 = vmatpush1.msra.mxu0 0.0
  %519 = vmatprep.subr.mxu0 0.0
  %520 = vmatpush1.msra.mxu0 0.0
  %521 = vmatprep.subr.mxu0 0.0
  %522 = vmatpush1.msra.mxu0 0.0
  %523 = vmatprep.subr.mxu0 0.0
  %524 = vmatpush1.msra.mxu0 0.0
  %525 = vmatprep.subr.mxu0 0.0
  %526 = vmatpush1.msra.mxu0 0.0
  %527 = vmatprep.subr.mxu0 0.0
  %528 = vmatpush1.msra.mxu0 0.0
  %529 = vmatprep.subr.mxu0 0.0
  %530 = vmatpush1.msra.mxu0 0.0
  %531 = vmatprep.subr.mxu0 0.0
  %532 = vmatpush1.msra.mxu0 0.0
  %533 = vmatprep.subr.mxu0 0.0
  %534 = vmatpush1.msra.mxu0 0.0
  %535 = vmatprep.subr.mxu0 0.0
  %536 = vmatpush1.msra.mxu0 0.0
  %537 = vmatprep.subr.mxu0 0.0
  %538 = vmatpush1.msra.mxu0 0.0
  %539 = vmatprep.subr.mxu0 0.0
  %540 = vmatpush1.msra.mxu0 0.0
  %541 = vmatprep.subr.mxu0 0.0
  %542 = vmatpush1.msra.mxu0 0.0
  %543 = vmatprep.subr.mxu0 0.0
  %544 = vmatpush1.msra.mxu0 0.0
  %545 = vmatprep.subr.mxu0 0.0
  %546 = vmatpush1.msra.mxu0 0.0
  %547 = vmatprep.subr.mxu0 0.0
  %548 = vmatpush1.msra.mxu0 0.0
  %549 = vmatprep.subr.mxu0 0.0
  %550 = vmatpush1.msra.mxu0 0.0
  %551 = vmatprep.subr.mxu0 0.0
  %552 = vmatpush1.msra.mxu0 0.0
  %553 = vmatprep.subr.mxu0 0.0
  %554 = vmatpush1.msra.mxu0 0.0
  %555 = vmatprep.subr.mxu0 0.0
  %556 = vmatpush1.msra.mxu0 0.0
  %557 = vmatprep.mubr.f32.mxu0 0.0
  %558 = vmatmul.mubr.f32.gmra.mrb[0].mxu0 %v491
  %v559 = vpop.f32.mrb[0].mxu0
  %v560 = vadd.f32 0.0, %v559
  %v561 = vpop.f32.mrb[0].mxu0
  %562 = vdwg.mxu0
  %v564 = vlaneseq
  %v565 = vshrl.u32 %v564, 7
  %v566 = vsub.s32 0, %v565
  %v567 = vrot.slane %v396, %v566
  %v570 = vsel %vm160, %v560, 0
  %572 = vmatprep.subr.mxu0 0.0
  %573 = vmatpush1.msra.mxu0 %v392
  %574 = vmatprep.subr.mxu0 0.0
  %575 = vmatpush1.msra.mxu0 %v393
  %576 = vmatprep.subr.mxu0 0.0
  %577 = vmatpush1.msra.mxu0 %v394
  %578 = vmatprep.subr.mxu0 0.0
  %579 = vmatpush1.msra.mxu0 %v395
  %580 = vmatprep.subr.mxu0 0.0
  %581 = vmatpush1.msra.mxu0 0.0
  %582 = vmatprep.subr.mxu0 0.0
  %583 = vmatpush1.msra.mxu0 0.0
  %584 = vmatprep.subr.mxu0 0.0
  %585 = vmatpush1.msra.mxu0 0.0
  %586 = vmatprep.subr.mxu0 0.0
  %587 = vmatpush1.msra.mxu0 0.0
  %588 = vmatprep.subr.mxu0 0.0
  %589 = vmatpush1.msra.mxu0 0.0
  %590 = vmatprep.subr.mxu0 0.0
  %591 = vmatpush1.msra.mxu0 0.0
  %592 = vmatprep.subr.mxu0 0.0
  %593 = vmatpush1.msra.mxu0 0.0
  %594 = vmatprep.subr.mxu0 0.0
  %595 = vmatpush1.msra.mxu0 0.0
  %596 = vmatprep.subr.mxu0 0.0
  %597 = vmatpush1.msra.mxu0 0.0
  %598 = vmatprep.subr.mxu0 0.0
  %599 = vmatpush1.msra.mxu0 0.0
  %600 = vmatprep.subr.mxu0 0.0
  %601 = vmatpush1.msra.mxu0 0.0
  %602 = vmatprep.subr.mxu0 0.0
  %603 = vmatpush1.msra.mxu0 0.0
  %604 = vmatprep.subr.mxu0 0.0
  %605 = vmatpush1.msra.mxu0 0.0
  %606 = vmatprep.subr.mxu0 0.0
  %607 = vmatpush1.msra.mxu0 0.0
  %608 = vmatprep.subr.mxu0 0.0
  %609 = vmatpush1.msra.mxu0 0.0
  %610 = vmatprep.subr.mxu0 0.0
  %611 = vmatpush1.msra.mxu0 0.0
  %612 = vmatprep.subr.mxu0 0.0
  %613 = vmatpush1.msra.mxu0 0.0
  %614 = vmatprep.subr.mxu0 0.0
  %615 = vmatpush1.msra.mxu0 0.0
  %616 = vmatprep.subr.mxu0 0.0
  %617 = vmatpush1.msra.mxu0 0.0
  %618 = vmatprep.subr.mxu0 0.0
  %619 = vmatpush1.msra.mxu0 0.0
  %620 = vmatprep.subr.mxu0 0.0
  %621 = vmatpush1.msra.mxu0 0.0
  %622 = vmatprep.subr.mxu0 0.0
  %623 = vmatpush1.msra.mxu0 0.0
  %624 = vmatprep.subr.mxu0 0.0
  %625 = vmatpush1.msra.mxu0 0.0
  %626 = vmatprep.subr.mxu0 0.0
  %627 = vmatpush1.msra.mxu0 0.0
  %628 = vmatprep.subr.mxu0 0.0
  %629 = vmatpush1.msra.mxu0 0.0
  %630 = vmatprep.subr.mxu0 0.0
  %631 = vmatpush1.msra.mxu0 0.0
  %632 = vmatprep.subr.mxu0 0.0
  %633 = vmatpush1.msra.mxu0 0.0
  %634 = vmatprep.subr.mxu0 0.0
  %635 = vmatpush1.msra.mxu0 0.0
  %636 = vmatprep.mubr.f32.mxu0 0.0
  %637 = vmatmul.mubr.f32.gmra.mrb[0].mxu0 %v570
  %v638 = vpop.f32.mrb[0].mxu0
  %v639 = vadd.f32 %v567, %v638
  %v640 = vpop.f32.mrb[0].mxu0
  %641 = vdwg.mxu0
  %v642 = vadd.f32 %v254, %v639
  %v643 = vld [vmem:[%s6] sm:$0x1]
  %v644 = vld [vmem:[%s7] sm:$0x1]
  %v645 = vsel %vm160, %v642, 0.0
  %646 = vadd.xlane.f32.xlu0 %v645
  %v647 = vpop.xlane.xlu0 %646
  %v648 = vmul.f32 %v647, %v275
  %v649 = vsub.f32 %v642, %v648
  %v650 = vmul.f32 %v649, %v649
  %v651 = vsel %vm160, %v650, 0.0
  %652 = vadd.xlane.f32.xlu0 %v651
  %v653 = vpop.xlane.xlu0 %652
  %v654 = vmul.f32 %v653, %v282
  %v656 = vlaneseq
  %v657 = vshrl.u32 %v656, 7
  %v658 = vsub.s32 0, %v657
  %v659 = vrot.slane %v643, %v658
  %v661 = vmul.f32 %v659, %v649
  %v662 = vrsqrt.pop %v654
  %v663 = vmul.f32 %v654, %v662
  %vm664 = vcmp.eq.f32.partialorder %v654, inf
  %v665 = vsel %vm664, %v654, %v663
  %vm666 = vcmp.eq.f32.partialorder %v654, 0.0
  %v667 = vand.u32 %v654, 2147483648
  %v668 = vsel %vm666, %v667, %v665
  %v669 = vadd.f32 %v668, 1e-06
  %v670 = vrcp.pop %v669
  %v671 = vmul.f32 %v661, %v670
  %v673 = vlaneseq
  %v674 = vshrl.u32 %v673, 7
  %v675 = vsub.s32 0, %v674
  %v676 = vrot.slane %v644, %v675
  %v678 = vadd.f32 %v671, %v676
  %v679 = vld [vmem:[%s14] sm:$0xff]
  %v680 = vld [vmem:[%s14 + $0x8] sm:$0xff]
  %v681 = vld [vmem:[%s14 + $0x10] sm:$0xff]
  %v682 = vld [vmem:[%s14 + $0x18] sm:$0xff]
  %v683 = vld [vmem:[%s15] sm:$0x1]
  %v685 = vlaneseq
  %v686 = vshrl.u32 %v685, 7
  %v687 = vsub.s32 0, %v686
  %v688 = vrot.slane %v683, %v687
  %v691 = vsel %vm160, %v678, 0
  %693 = vmatprep.subr.mxu0 0.0
  %694 = vmatpush1.msra.mxu0 %v679
  %695 = vmatprep.subr.mxu0 0.0
  %696 = vmatpush1.msra.mxu0 %v680
  %697 = vmatprep.subr.mxu0 0.0
  %698 = vmatpush1.msra.mxu0 %v681
  %699 = vmatprep.subr.mxu0 0.0
  %700 = vmatpush1.msra.mxu0 %v682
  %701 = vmatprep.subr.mxu0 0.0
  %702 = vmatpush1.msra.mxu0 0.0
  %703 = vmatprep.subr.mxu0 0.0
  %704 = vmatpush1.msra.mxu0 0.0
  %705 = vmatprep.subr.mxu0 0.0
  %706 = vmatpush1.msra.mxu0 0.0
  %707 = vmatprep.subr.mxu0 0.0
  %708 = vmatpush1.msra.mxu0 0.0
  %709 = vmatprep.subr.mxu0 0.0
  %710 = vmatpush1.msra.mxu0 0.0
  %711 = vmatprep.subr.mxu0 0.0
  %712 = vmatpush1.msra.mxu0 0.0
  %713 = vmatprep.subr.mxu0 0.0
  %714 = vmatpush1.msra.mxu0 0.0
  %715 = vmatprep.subr.mxu0 0.0
  %716 = vmatpush1.msra.mxu0 0.0
  %717 = vmatprep.subr.mxu0 0.0
  %718 = vmatpush1.msra.mxu0 0.0
  %719 = vmatprep.subr.mxu0 0.0
  %720 = vmatpush1.msra.mxu0 0.0
  %721 = vmatprep.subr.mxu0 0.0
  %722 = vmatpush1.msra.mxu0 0.0
  %723 = vmatprep.subr.mxu0 0.0
  %724 = vmatpush1.msra.mxu0 0.0
  %725 = vmatprep.subr.mxu0 0.0
  %726 = vmatpush1.msra.mxu0 0.0
  %727 = vmatprep.subr.mxu0 0.0
  %728 = vmatpush1.msra.mxu0 0.0
  %729 = vmatprep.subr.mxu0 0.0
  %730 = vmatpush1.msra.mxu0 0.0
  %731 = vmatprep.subr.mxu0 0.0
  %732 = vmatpush1.msra.mxu0 0.0
  %733 = vmatprep.subr.mxu0 0.0
  %734 = vmatpush1.msra.mxu0 0.0
  %735 = vmatprep.subr.mxu0 0.0
  %736 = vmatpush1.msra.mxu0 0.0
  %737 = vmatprep.subr.mxu0 0.0
  %738 = vmatpush1.msra.mxu0 0.0
  %739 = vmatprep.subr.mxu0 0.0
  %740 = vmatpush1.msra.mxu0 0.0
  %741 = vmatprep.subr.mxu0 0.0
  %742 = vmatpush1.msra.mxu0 0.0
  %743 = vmatprep.subr.mxu0 0.0
  %744 = vmatpush1.msra.mxu0 0.0
  %745 = vmatprep.subr.mxu0 0.0
  %746 = vmatpush1.msra.mxu0 0.0
  %747 = vmatprep.subr.mxu0 0.0
  %748 = vmatpush1.msra.mxu0 0.0
  %749 = vmatprep.subr.mxu0 0.0
  %750 = vmatpush1.msra.mxu0 0.0
  %751 = vmatprep.subr.mxu0 0.0
  %752 = vmatpush1.msra.mxu0 0.0
  %753 = vmatprep.subr.mxu0 0.0
  %754 = vmatpush1.msra.mxu0 0.0
  %755 = vmatprep.subr.mxu0 0.0
  %756 = vmatpush1.msra.mxu0 0.0
  %757 = vmatprep.mubr.f32.mxu0 0.0
  %758 = vmatmul.mubr.f32.gmra.mrb[0].mxu0 %v691
  %v759 = vpop.f32.mrb[0].mxu0
  %v760 = vadd.f32 %v688, %v759
  %v761 = vpop.f32.mrb[0].mxu0
  %762 = vdwg.mxu0
  %v763 = vld [vmem:[%s18] sm:$0xff]
  %v764 = vld [vmem:[%s18 + $0x8] sm:$0xff]
  %v765 = vld [vmem:[%s18 + $0x10] sm:$0xff]
  %v766 = vld [vmem:[%s18 + $0x18] sm:$0xff]
  %v767 = vld [vmem:[%s19] sm:$0x1]
  %v769 = vsel %vm160, %v760, 0
  %v772 = vsel %vm160, %v231, 0
  %774 = vmatprep.subr.mxu0 0.0
  %775 = vmatpush1.xpose.msra.mxu0 %v772
  %776 = vmatprep.subr.mxu0 0.0
  %777 = vmatpush1.xpose.msra.mxu0 0.0
  %778 = vmatprep.subr.mxu0 0.0
  %779 = vmatpush1.xpose.msra.mxu0 0.0
  %780 = vmatprep.subr.mxu0 0.0
  %781 = vmatpush1.xpose.msra.mxu0 0.0
  %782 = vmatprep.subr.mxu0 0.0
  %783 = vmatpush1.xpose.msra.mxu0 0.0
  %784 = vmatprep.subr.mxu0 0.0
  %785 = vmatpush1.xpose.msra.mxu0 0.0
  %786 = vmatprep.subr.mxu0 0.0
  %787 = vmatpush1.xpose.msra.mxu0 0.0
  %788 = vmatprep.subr.mxu0 0.0
  %789 = vmatpush1.xpose.msra.mxu0 0.0
  %790 = vmatprep.subr.mxu0 0.0
  %791 = vmatpush1.xpose.msra.mxu0 0.0
  %792 = vmatprep.subr.mxu0 0.0
  %793 = vmatpush1.xpose.msra.mxu0 0.0
  %794 = vmatprep.subr.mxu0 0.0
  %795 = vmatpush1.xpose.msra.mxu0 0.0
  %796 = vmatprep.subr.mxu0 0.0
  %797 = vmatpush1.xpose.msra.mxu0 0.0
  %798 = vmatprep.subr.mxu0 0.0
  %799 = vmatpush1.xpose.msra.mxu0 0.0
  %800 = vmatprep.subr.mxu0 0.0
  %801 = vmatpush1.xpose.msra.mxu0 0.0
  %802 = vmatprep.subr.mxu0 0.0
  %803 = vmatpush1.xpose.msra.mxu0 0.0
  %804 = vmatprep.subr.mxu0 0.0
  %805 = vmatpush1.xpose.msra.mxu0 0.0
  %806 = vmatprep.subr.mxu0 0.0
  %807 = vmatpush1.xpose.msra.mxu0 0.0
  %808 = vmatprep.subr.mxu0 0.0
  %809 = vmatpush1.xpose.msra.mxu0 0.0
  %810 = vmatprep.subr.mxu0 0.0
  %811 = vmatpush1.xpose.msra.mxu0 0.0
  %812 = vmatprep.subr.mxu0 0.0
  %813 = vmatpush1.xpose.msra.mxu0 0.0
  %814 = vmatprep.subr.mxu0 0.0
  %815 = vmatpush1.xpose.msra.mxu0 0.0
  %816 = vmatprep.subr.mxu0 0.0
  %817 = vmatpush1.xpose.msra.mxu0 0.0
  %818 = vmatprep.subr.mxu0 0.0
  %819 = vmatpush1.xpose.msra.mxu0 0.0
  %820 = vmatprep.subr.mxu0 0.0
  %821 = vmatpush1.xpose.msra.mxu0 0.0
  %822 = vmatprep.subr.mxu0 0.0
  %823 = vmatpush1.xpose.msra.mxu0 0.0
  %824 = vmatprep.subr.mxu0 0.0
  %825 = vmatpush1.xpose.msra.mxu0 0.0
  %826 = vmatprep.subr.mxu0 0.0
  %827 = vmatpush1.xpose.msra.mxu0 0.0
  %828 = vmatprep.subr.mxu0 0.0
  %829 = vmatpush1.xpose.msra.mxu0 0.0
  %830 = vmatprep.subr.mxu0 0.0
  %831 = vmatpush1.xpose.msra.mxu0 0.0
  %832 = vmatprep.subr.mxu0 0.0
  %833 = vmatpush1.xpose.msra.mxu0 0.0
  %834 = vmatprep.subr.mxu0 0.0
  %835 = vmatpush1.xpose.msra.mxu0 0.0
  %836 = vmatprep.subr.mxu0 0.0
  %837 = vmatpush1.xpose.msra.mxu0 0.0
  %838 = vmatprep.mubr.f32.mxu0 0.0
  %839 = vmatmul.mubr.f32.gmra.mrb[0].mxu0 %v769
  %v840 = vpop.f32.mrb[0].mxu0
  %v841 = vadd.f32 0.0, %v840
  %v842 = vpop.f32.mrb[0].mxu0
  %843 = vdwg.mxu0
  %v844 = vmul.f32 %v841, 0.17677669
  %v845 = vsel %vm475, %v844, -inf
  %846 = vmax.xlane.f32.xlu0 %v845
  %v847 = vpop.xlane.xlu0 %846
  %v848 = vsub.f32 %v844, %v847
  %v849 = vmul.f32 %v848, 1.442695
  %v850 = vpow.pop %v849
  %v851 = vsel %vm475, %v850, 0.0
  %852 = vadd.xlane.f32.xlu0 %v851
  %v853 = vpop.xlane.xlu0 %852
  %v854 = vrcp.pop %v853
  %v855 = vmul.f32 %v850, %v854
  %856 = vrot.lane.b32.xlu0 %v231, 96
  %v857 = vpop.permute.xlu0 %856
  %v860 = vsel %vm475, %v855, 0
  %862 = vmatprep.subr.mxu0 0.0
  %863 = vmatpush1.msra.mxu0 %v857
  %864 = vmatprep.subr.mxu0 0.0
  %865 = vmatpush1.msra.mxu0 0.0
  %866 = vmatprep.subr.mxu0 0.0
  %867 = vmatpush1.msra.mxu0 0.0
  %868 = vmatprep.subr.mxu0 0.0
  %869 = vmatpush1.msra.mxu0 0.0
  %870 = vmatprep.subr.mxu0 0.0
  %871 = vmatpush1.msra.mxu0 0.0
  %872 = vmatprep.subr.mxu0 0.0
  %873 = vmatpush1.msra.mxu0 0.0
  %874 = vmatprep.subr.mxu0 0.0
  %875 = vmatpush1.msra.mxu0 0.0
  %876 = vmatprep.subr.mxu0 0.0
  %877 = vmatpush1.msra.mxu0 0.0
  %878 = vmatprep.subr.mxu0 0.0
  %879 = vmatpush1.msra.mxu0 0.0
  %880 = vmatprep.subr.mxu0 0.0
  %881 = vmatpush1.msra.mxu0 0.0
  %882 = vmatprep.subr.mxu0 0.0
  %883 = vmatpush1.msra.mxu0 0.0
  %884 = vmatprep.subr.mxu0 0.0
  %885 = vmatpush1.msra.mxu0 0.0
  %886 = vmatprep.subr.mxu0 0.0
  %887 = vmatpush1.msra.mxu0 0.0
  %888 = vmatprep.subr.mxu0 0.0
  %889 = vmatpush1.msra.mxu0 0.0
  %890 = vmatprep.subr.mxu0 0.0
  %891 = vmatpush1.msra.mxu0 0.0
  %892 = vmatprep.subr.mxu0 0.0
  %893 = vmatpush1.msra.mxu0 0.0
  %894 = vmatprep.subr.mxu0 0.0
  %895 = vmatpush1.msra.mxu0 0.0
  %896 = vmatprep.subr.mxu0 0.0
  %897 = vmatpush1.msra.mxu0 0.0
  %898 = vmatprep.subr.mxu0 0.0
  %899 = vmatpush1.msra.mxu0 0.0
  %900 = vmatprep.subr.mxu0 0.0
  %901 = vmatpush1.msra.mxu0 0.0
  %902 = vmatprep.subr.mxu0 0.0
  %903 = vmatpush1.msra.mxu0 0.0
  %904 = vmatprep.subr.mxu0 0.0
  %905 = vmatpush1.msra.mxu0 0.0
  %906 = vmatprep.subr.mxu0 0.0
  %907 = vmatpush1.msra.mxu0 0.0
  %908 = vmatprep.subr.mxu0 0.0
  %909 = vmatpush1.msra.mxu0 0.0
  %910 = vmatprep.subr.mxu0 0.0
  %911 = vmatpush1.msra.mxu0 0.0
  %912 = vmatprep.subr.mxu0 0.0
  %913 = vmatpush1.msra.mxu0 0.0
  %914 = vmatprep.subr.mxu0 0.0
  %915 = vmatpush1.msra.mxu0 0.0
  %916 = vmatprep.subr.mxu0 0.0
  %917 = vmatpush1.msra.mxu0 0.0
  %918 = vmatprep.subr.mxu0 0.0
  %919 = vmatpush1.msra.mxu0 0.0
  %920 = vmatprep.subr.mxu0 0.0
  %921 = vmatpush1.msra.mxu0 0.0
  %922 = vmatprep.subr.mxu0 0.0
  %923 = vmatpush1.msra.mxu0 0.0
  %924 = vmatprep.subr.mxu0 0.0
  %925 = vmatpush1.msra.mxu0 0.0
  %926 = vmatprep.mubr.f32.mxu0 0.0
  %927 = vmatmul.mubr.f32.gmra.mrb[0].mxu0 %v860
  %v928 = vpop.f32.mrb[0].mxu0
  %v929 = vadd.f32 0.0, %v928
  %v930 = vpop.f32.mrb[0].mxu0
  %931 = vdwg.mxu0
  %v933 = vlaneseq
  %v934 = vshrl.u32 %v933, 7
  %v935 = vsub.s32 0, %v934
  %v936 = vrot.slane %v767, %v935
  %v939 = vsel %vm160, %v929, 0
  %941 = vmatprep.subr.mxu0 0.0
  %942 = vmatpush1.msra.mxu0 %v763
  %943 = vmatprep.subr.mxu0 0.0
  %944 = vmatpush1.msra.mxu0 %v764
  %945 = vmatprep.subr.mxu0 0.0
  %946 = vmatpush1.msra.mxu0 %v765
  %947 = vmatprep.subr.mxu0 0.0
  %948 = vmatpush1.msra.mxu0 %v766
  %949 = vmatprep.subr.mxu0 0.0
  %950 = vmatpush1.msra.mxu0 0.0
  %951 = vmatprep.subr.mxu0 0.0
  %952 = vmatpush1.msra.mxu0 0.0
  %953 = vmatprep.subr.mxu0 0.0
  %954 = vmatpush1.msra.mxu0 0.0
  %955 = vmatprep.subr.mxu0 0.0
  %956 = vmatpush1.msra.mxu0 0.0
  %957 = vmatprep.subr.mxu0 0.0
  %958 = vmatpush1.msra.mxu0 0.0
  %959 = vmatprep.subr.mxu0 0.0
  %960 = vmatpush1.msra.mxu0 0.0
  %961 = vmatprep.subr.mxu0 0.0
  %962 = vmatpush1.msra.mxu0 0.0
  %963 = vmatprep.subr.mxu0 0.0
  %964 = vmatpush1.msra.mxu0 0.0
  %965 = vmatprep.subr.mxu0 0.0
  %966 = vmatpush1.msra.mxu0 0.0
  %967 = vmatprep.subr.mxu0 0.0
  %968 = vmatpush1.msra.mxu0 0.0
  %969 = vmatprep.subr.mxu0 0.0
  %970 = vmatpush1.msra.mxu0 0.0
  %971 = vmatprep.subr.mxu0 0.0
  %972 = vmatpush1.msra.mxu0 0.0
  %973 = vmatprep.subr.mxu0 0.0
  %974 = vmatpush1.msra.mxu0 0.0
  %975 = vmatprep.subr.mxu0 0.0
  %976 = vmatpush1.msra.mxu0 0.0
  %977 = vmatprep.subr.mxu0 0.0
  %978 = vmatpush1.msra.mxu0 0.0
  %979 = vmatprep.subr.mxu0 0.0
  %980 = vmatpush1.msra.mxu0 0.0
  %981 = vmatprep.subr.mxu0 0.0
  %982 = vmatpush1.msra.mxu0 0.0
  %983 = vmatprep.subr.mxu0 0.0
  %984 = vmatpush1.msra.mxu0 0.0
  %985 = vmatprep.subr.mxu0 0.0
  %986 = vmatpush1.msra.mxu0 0.0
  %987 = vmatprep.subr.mxu0 0.0
  %988 = vmatpush1.msra.mxu0 0.0
  %989 = vmatprep.subr.mxu0 0.0
  %990 = vmatpush1.msra.mxu0 0.0
  %991 = vmatprep.subr.mxu0 0.0
  %992 = vmatpush1.msra.mxu0 0.0
  %993 = vmatprep.subr.mxu0 0.0
  %994 = vmatpush1.msra.mxu0 0.0
  %995 = vmatprep.subr.mxu0 0.0
  %996 = vmatpush1.msra.mxu0 0.0
  %997 = vmatprep.subr.mxu0 0.0
  %998 = vmatpush1.msra.mxu0 0.0
  %999 = vmatprep.subr.mxu0 0.0
  %1000 = vmatpush1.msra.mxu0 0.0
  %1001 = vmatprep.subr.mxu0 0.0
  %1002 = vmatpush1.msra.mxu0 0.0
  %1003 = vmatprep.subr.mxu0 0.0
  %1004 = vmatpush1.msra.mxu0 0.0
  %1005 = vmatprep.mubr.f32.mxu0 0.0
  %1006 = vmatmul.mubr.f32.gmra.mrb[0].mxu0 %v939
  %v1007 = vpop.f32.mrb[0].mxu0
  %v1008 = vadd.f32 %v936, %v1007
  %v1009 = vpop.f32.mrb[0].mxu0
  %1010 = vdwg.mxu0
  %v1011 = vadd.f32 %v642, %v1008
  %v1012 = vld [vmem:[%s8] sm:$0x1]
  %v1013 = vld [vmem:[%s9] sm:$0x1]
  %v1014 = vsel %vm160, %v1011, 0.0
  %1015 = vadd.xlane.f32.xlu0 %v1014
  %v1016 = vpop.xlane.xlu0 %1015
  %v1017 = vmul.f32 %v1016, %v275
  %v1018 = vsub.f32 %v1011, %v1017
  %v1019 = vmul.f32 %v1018, %v1018
  %v1020 = vsel %vm160, %v1019, 0.0
  %1021 = vadd.xlane.f32.xlu0 %v1020
  %v1022 = vpop.xlane.xlu0 %1021
  %v1023 = vmul.f32 %v1022, %v282
  %v1025 = vlaneseq
  %v1026 = vshrl.u32 %v1025, 7
  %v1027 = vsub.s32 0, %v1026
  %v1028 = vrot.slane %v1012, %v1027
  %v1030 = vmul.f32 %v1028, %v1018
  %v1031 = vrsqrt.pop %v1023
  %v1032 = vmul.f32 %v1023, %v1031
  %vm1033 = vcmp.eq.f32.partialorder %v1023, inf
  %v1034 = vsel %vm1033, %v1023, %v1032
  %vm1035 = vcmp.eq.f32.partialorder %v1023, 0.0
  %v1036 = vand.u32 %v1023, 2147483648
  %v1037 = vsel %vm1035, %v1036, %v1034
  %v1038 = vadd.f32 %v1037, 1e-06
  %v1039 = vrcp.pop %v1038
  %v1040 = vmul.f32 %v1030, %v1039
  %v1042 = vlaneseq
  %v1043 = vshrl.u32 %v1042, 7
  %v1044 = vsub.s32 0, %v1043
  %v1045 = vrot.slane %v1013, %v1044
  %v1047 = vadd.f32 %v1040, %v1045
  %v1048 = vpack.c.bf16 %v1047, %v1047
  %v1049 = vld [vmem:[%s20] sm:$0xff]
  %v1050 = vld [vmem:[%s20 + $0x8] sm:$0xff]
  %v1051 = vld [vmem:[%s20 + $0x10] sm:$0xff]
  %v1052 = vld [vmem:[%s20 + $0x18] sm:$0xff]
  %v1053 = vld [vmem:[%s20 + $0x20] sm:$0xff]
  %v1054 = vld [vmem:[%s20 + $0x28] sm:$0xff]
  %v1055 = vld [vmem:[%s20 + $0x30] sm:$0xff]
  %v1056 = vld [vmem:[%s20 + $0x38] sm:$0xff]
  %v1057 = vld [vmem:[%s20 + $0x40] sm:$0xff]
  %v1058 = vld [vmem:[%s20 + $0x48] sm:$0xff]
  %v1059 = vld [vmem:[%s20 + $0x50] sm:$0xff]
  %v1060 = vld [vmem:[%s20 + $0x58] sm:$0xff]
  %v1061 = vld [vmem:[%s20 + $0x60] sm:$0xff]
  %v1062 = vld [vmem:[%s20 + $0x68] sm:$0xff]
  %v1063 = vld [vmem:[%s20 + $0x70] sm:$0xff]
  %v1064 = vld [vmem:[%s20 + $0x78] sm:$0xff]
  %v1065 = vld [vmem:[%s20 + $0x80] sm:$0xff]
  %v1066 = vld [vmem:[%s20 + $0x88] sm:$0xff]
  %v1067 = vld [vmem:[%s20 + $0x90] sm:$0xff]
  %v1068 = vld [vmem:[%s20 + $0x98] sm:$0xff]
  %v1069 = vld [vmem:[%s20 + $0xa0] sm:$0xff]
  %v1070 = vld [vmem:[%s20 + $0xa8] sm:$0xff]
  %v1071 = vld [vmem:[%s20 + $0xb0] sm:$0xff]
  %v1072 = vld [vmem:[%s20 + $0xb8] sm:$0xff]
  %v1073 = vld [vmem:[%s20 + $0xc0] sm:$0xff]
  %v1074 = vld [vmem:[%s20 + $0xc8] sm:$0xff]
  %v1075 = vld [vmem:[%s20 + $0xd0] sm:$0xff]
  %v1076 = vld [vmem:[%s20 + $0xd8] sm:$0xff]
  %v1077 = vld [vmem:[%s20 + $0xe0] sm:$0xff]
  %v1078 = vld [vmem:[%s20 + $0xe8] sm:$0xff]
  %v1079 = vld [vmem:[%s20 + $0xf0] sm:$0xff]
  %v1080 = vld [vmem:[%s20 + $0xf8] sm:$0xff]
  %v1081 = vld [vmem:[%s21] sm:$0xff]
  %v1082 = vld [vmem:[%s21 + $0x8] sm:$0xff]
  %v1085 = vlaneseq
  %v1086 = vshrl.u32 %v1085, 7
  %v1087 = vsub.s32 0, %v1086
  %v1088 = vrot.slane %v1081, %v1087
  %v1089 = vlaneseq
  %v1090 = vshrl.u32 %v1089, 7
  %v1091 = vsub.s32 1, %v1090
  %v1092 = vrot.slane %v1081, %v1091
  %v1093 = vlaneseq
  %v1094 = vshrl.u32 %v1093, 7
  %v1095 = vsub.s32 2, %v1094
  %v1096 = vrot.slane %v1081, %v1095
  %v1097 = vlaneseq
  %v1098 = vshrl.u32 %v1097, 7
  %v1099 = vsub.s32 3, %v1098
  %v1100 = vrot.slane %v1081, %v1099
  %v1101 = vlaneseq
  %v1102 = vshrl.u32 %v1101, 7
  %v1103 = vsub.s32 4, %v1102
  %v1104 = vrot.slane %v1081, %v1103
  %v1105 = vlaneseq
  %v1106 = vshrl.u32 %v1105, 7
  %v1107 = vsub.s32 5, %v1106
  %v1108 = vrot.slane %v1081, %v1107
  %v1109 = vlaneseq
  %v1110 = vshrl.u32 %v1109, 7
  %v1111 = vsub.s32 6, %v1110
  %v1112 = vrot.slane %v1081, %v1111
  %v1113 = vlaneseq
  %v1114 = vshrl.u32 %v1113, 7
  %v1115 = vsub.s32 7, %v1114
  %v1116 = vrot.slane %v1081, %v1115
  %v1117 = vlaneseq
  %v1118 = vshrl.u32 %v1117, 7
  %v1119 = vsub.s32 0, %v1118
  %v1120 = vrot.slane %v1082, %v1119
  %v1121 = vlaneseq
  %v1122 = vshrl.u32 %v1121, 7
  %v1123 = vsub.s32 1, %v1122
  %v1124 = vrot.slane %v1082, %v1123
  %v1125 = vlaneseq
  %v1126 = vshrl.u32 %v1125, 7
  %v1127 = vsub.s32 2, %v1126
  %v1128 = vrot.slane %v1082, %v1127
  %v1129 = vlaneseq
  %v1130 = vshrl.u32 %v1129, 7
  %v1131 = vsub.s32 3, %v1130
  %v1132 = vrot.slane %v1082, %v1131
  %v1133 = vlaneseq
  %v1134 = vshrl.u32 %v1133, 7
  %v1135 = vsub.s32 4, %v1134
  %v1136 = vrot.slane %v1082, %v1135
  %v1137 = vlaneseq
  %v1138 = vshrl.u32 %v1137, 7
  %v1139 = vsub.s32 5, %v1138
  %v1140 = vrot.slane %v1082, %v1139
  %v1141 = vlaneseq
  %v1142 = vshrl.u32 %v1141, 7
  %v1143 = vsub.s32 6, %v1142
  %v1144 = vrot.slane %v1082, %v1143
  %v1145 = vlaneseq
  %v1146 = vshrl.u32 %v1145, 7
  %v1147 = vsub.s32 7, %v1146
  %v1148 = vrot.slane %v1082, %v1147
  %v1197 = vunpack.c.l.b16 %v1049
  %v1198 = vunpack.c.h.b16 %v1049
  %v1199 = vunpack.c.l.b16 %v1050
  %v1200 = vunpack.c.h.b16 %v1050
  %v1201 = vunpack.c.l.b16 %v1051
  %v1202 = vunpack.c.h.b16 %v1051
  %v1203 = vunpack.c.l.b16 %v1052
  %v1204 = vunpack.c.h.b16 %v1052
  %v1205 = vunpack.c.l.b16 %v1053
  %v1206 = vunpack.c.h.b16 %v1053
  %v1207 = vunpack.c.l.b16 %v1054
  %v1208 = vunpack.c.h.b16 %v1054
  %v1209 = vunpack.c.l.b16 %v1055
  %v1210 = vunpack.c.h.b16 %v1055
  %v1211 = vunpack.c.l.b16 %v1056
  %v1212 = vunpack.c.h.b16 %v1056
  %v1213 = vunpack.c.l.b16 %v1057
  %v1214 = vunpack.c.h.b16 %v1057
  %v1215 = vunpack.c.l.b16 %v1058
  %v1216 = vunpack.c.h.b16 %v1058
  %v1217 = vunpack.c.l.b16 %v1059
  %v1218 = vunpack.c.h.b16 %v1059
  %v1219 = vunpack.c.l.b16 %v1060
  %v1220 = vunpack.c.h.b16 %v1060
  %v1221 = vunpack.c.l.b16 %v1061
  %v1222 = vunpack.c.h.b16 %v1061
  %v1223 = vunpack.c.l.b16 %v1062
  %v1224 = vunpack.c.h.b16 %v1062
  %v1225 = vunpack.c.l.b16 %v1063
  %v1226 = vunpack.c.h.b16 %v1063
  %v1227 = vunpack.c.l.b16 %v1064
  %v1228 = vunpack.c.h.b16 %v1064
  %v1229 = vunpack.c.l.b16 %v1065
  %v1230 = vunpack.c.h.b16 %v1065
  %v1231 = vunpack.c.l.b16 %v1066
  %v1232 = vunpack.c.h.b16 %v1066
  %v1233 = vunpack.c.l.b16 %v1067
  %v1234 = vunpack.c.h.b16 %v1067
  %v1235 = vunpack.c.l.b16 %v1068
  %v1236 = vunpack.c.h.b16 %v1068
  %v1237 = vunpack.c.l.b16 %v1069
  %v1238 = vunpack.c.h.b16 %v1069
  %v1239 = vunpack.c.l.b16 %v1070
  %v1240 = vunpack.c.h.b16 %v1070
  %v1241 = vunpack.c.l.b16 %v1071
  %v1242 = vunpack.c.h.b16 %v1071
  %v1243 = vunpack.c.l.b16 %v1072
  %v1244 = vunpack.c.h.b16 %v1072
  %v1245 = vunpack.c.l.b16 %v1073
  %v1246 = vunpack.c.h.b16 %v1073
  %v1247 = vunpack.c.l.b16 %v1074
  %v1248 = vunpack.c.h.b16 %v1074
  %v1249 = vunpack.c.l.b16 %v1075
  %v1250 = vunpack.c.h.b16 %v1075
  %v1251 = vunpack.c.l.b16 %v1076
  %v1252 = vunpack.c.h.b16 %v1076
  %v1253 = vunpack.c.l.b16 %v1077
  %v1254 = vunpack.c.h.b16 %v1077
  %v1255 = vunpack.c.l.b16 %v1078
  %v1256 = vunpack.c.h.b16 %v1078
  %v1257 = vunpack.c.l.b16 %v1079
  %v1258 = vunpack.c.h.b16 %v1079
  %v1259 = vunpack.c.l.b16 %v1080
  %v1260 = vunpack.c.h.b16 %v1080
  %v1261 = vpack.c.b16 %v1213, %v1197
  %v1262 = vpack.c.b16 %v1214, %v1198
  %v1263 = vpack.c.b16 %v1215, %v1199
  %v1264 = vpack.c.b16 %v1216, %v1200
  %v1265 = vpack.c.b16 %v1217, %v1201
  %v1266 = vpack.c.b16 %v1218, %v1202
  %v1267 = vpack.c.b16 %v1219, %v1203
  %v1268 = vpack.c.b16 %v1220, %v1204
  %v1269 = vpack.c.b16 %v1221, %v1205
  %v1270 = vpack.c.b16 %v1222, %v1206
  %v1271 = vpack.c.b16 %v1223, %v1207
  %v1272 = vpack.c.b16 %v1224, %v1208
  %v1273 = vpack.c.b16 %v1225, %v1209
  %v1274 = vpack.c.b16 %v1226, %v1210
  %v1275 = vpack.c.b16 %v1227, %v1211
  %v1276 = vpack.c.b16 %v1228, %v1212
  %v1277 = vpack.c.b16 %v1245, %v1229
  %v1278 = vpack.c.b16 %v1246, %v1230
  %v1279 = vpack.c.b16 %v1247, %v1231
  %v1280 = vpack.c.b16 %v1248, %v1232
  %v1281 = vpack.c.b16 %v1249, %v1233
  %v1282 = vpack.c.b16 %v1250, %v1234
  %v1283 = vpack.c.b16 %v1251, %v1235
  %v1284 = vpack.c.b16 %v1252, %v1236
  %v1285 = vpack.c.b16 %v1253, %v1237
  %v1286 = vpack.c.b16 %v1254, %v1238
  %v1287 = vpack.c.b16 %v1255, %v1239
  %v1288 = vpack.c.b16 %v1256, %v1240
  %v1289 = vpack.c.b16 %v1257, %v1241
  %v1290 = vpack.c.b16 %v1258, %v1242
  %v1291 = vpack.c.b16 %v1259, %v1243
  %v1292 = vpack.c.b16 %v1260, %v1244
  %v1326 = vsel %vm160, %v1048, 0
  %1328 = vmatprep.subr.bf16.mxu0 %v1262
  %1329 = vmatpush1.bf16.msra.mxu0 %v1261
  %1330 = vmatprep.subr.bf16.mxu0 %v1278
  %1331 = vmatpush1.bf16.msra.mxu0 %v1277
  %1332 = vmatprep.subr.bf16.mxu0 0
  %1333 = vmatpush1.bf16.msra.mxu0 0
  %1334 = vmatprep.subr.bf16.mxu0 0
  %1335 = vmatpush1.bf16.msra.mxu0 0
  %1336 = vmatprep.subr.bf16.mxu0 0
  %1337 = vmatpush1.bf16.msra.mxu0 0
  %1338 = vmatprep.subr.bf16.mxu0 0
  %1339 = vmatpush1.bf16.msra.mxu0 0
  %1340 = vmatprep.subr.bf16.mxu0 0
  %1341 = vmatpush1.bf16.msra.mxu0 0
  %1342 = vmatprep.subr.bf16.mxu0 0
  %1343 = vmatpush1.bf16.msra.mxu0 0
  %1344 = vmatprep.subr.bf16.mxu0 0
  %1345 = vmatpush1.bf16.msra.mxu0 0
  %1346 = vmatprep.subr.bf16.mxu0 0
  %1347 = vmatpush1.bf16.msra.mxu0 0
  %1348 = vmatprep.subr.bf16.mxu0 0
  %1349 = vmatpush1.bf16.msra.mxu0 0
  %1350 = vmatprep.subr.bf16.mxu0 0
  %1351 = vmatpush1.bf16.msra.mxu0 0
  %1352 = vmatprep.subr.bf16.mxu0 0
  %1353 = vmatpush1.bf16.msra.mxu0 0
  %1354 = vmatprep.subr.bf16.mxu0 0
  %1355 = vmatpush1.bf16.msra.mxu0 0
  %1356 = vmatprep.subr.bf16.mxu0 0
  %1357 = vmatpush1.bf16.msra.mxu0 0
  %1358 = vmatprep.subr.bf16.mxu0 0
  %1359 = vmatpush1.bf16.msra.mxu0 0
  %1360 = vmatprep.mubr.bf16.mxu0 0
  %1361 = vmatmul.mubr.bf16.gmra.mrb[0].mxu0 %v1326
  %v1362 = vpop.f32.mrb[0].mxu0
  %v1363 = vadd.f32 %v1088, %v1362
  %v1364 = vpop.f32.mrb[0].mxu0
  %v1365 = vadd.f32 %v1092, %v1364
  %v1366 = vpop.f32.mrb[0].mxu0
  %v1367 = vpop.f32.mrb[0].mxu0
  %1368 = vdwg.mxu0
  %1369 = vmatprep.subr.bf16.mxu0 %v1264
  %1370 = vmatpush1.bf16.msra.mxu0 %v1263
  %1371 = vmatprep.subr.bf16.mxu0 %v1280
  %1372 = vmatpush1.bf16.msra.mxu0 %v1279
  %1373 = vmatprep.subr.bf16.mxu0 0
  %1374 = vmatpush1.bf16.msra.mxu0 0
  %1375 = vmatprep.subr.bf16.mxu0 0
  %1376 = vmatpush1.bf16.msra.mxu0 0
  %1377 = vmatprep.subr.bf16.mxu0 0
  %1378 = vmatpush1.bf16.msra.mxu0 0
  %1379 = vmatprep.subr.bf16.mxu0 0
  %1380 = vmatpush1.bf16.msra.mxu0 0
  %1381 = vmatprep.subr.bf16.mxu0 0
  %1382 = vmatpush1.bf16.msra.mxu0 0
  %1383 = vmatprep.subr.bf16.mxu0 0
  %1384 = vmatpush1.bf16.msra.mxu0 0
  %1385 = vmatprep.subr.bf16.mxu0 0
  %1386 = vmatpush1.bf16.msra.mxu0 0
  %1387 = vmatprep.subr.bf16.mxu0 0
  %1388 = vmatpush1.bf16.msra.mxu0 0
  %1389 = vmatprep.subr.bf16.mxu0 0
  %1390 = vmatpush1.bf16.msra.mxu0 0
  %1391 = vmatprep.subr.bf16.mxu0 0
  %1392 = vmatpush1.bf16.msra.mxu0 0
  %1393 = vmatprep.subr.bf16.mxu0 0
  %1394 = vmatpush1.bf16.msra.mxu0 0
  %1395 = vmatprep.subr.bf16.mxu0 0
  %1396 = vmatpush1.bf16.msra.mxu0 0
  %1397 = vmatprep.subr.bf16.mxu0 0
  %1398 = vmatpush1.bf16.msra.mxu0 0
  %1399 = vmatprep.subr.bf16.mxu0 0
  %1400 = vmatpush1.bf16.msra.mxu0 0
  %1401 = vmatprep.mubr.bf16.mxu0 0
  %1402 = vmatmul.mubr.bf16.gmra.mrb[0].mxu0 %v1326
  %v1403 = vpop.f32.mrb[0].mxu0
  %v1404 = vadd.f32 %v1096, %v1403
  %v1405 = vpop.f32.mrb[0].mxu0
  %v1406 = vadd.f32 %v1100, %v1405
  %v1407 = vpop.f32.mrb[0].mxu0
  %v1408 = vpop.f32.mrb[0].mxu0
  %1409 = vdwg.mxu0
  %1410 = vmatprep.subr.bf16.mxu0 %v1266
  %1411 = vmatpush1.bf16.msra.mxu0 %v1265
  %1412 = vmatprep.subr.bf16.mxu0 %v1282
  %1413 = vmatpush1.bf16.msra.mxu0 %v1281
  %1414 = vmatprep.subr.bf16.mxu0 0
  %1415 = vmatpush1.bf16.msra.mxu0 0
  %1416 = vmatprep.subr.bf16.mxu0 0
  %1417 = vmatpush1.bf16.msra.mxu0 0
  %1418 = vmatprep.subr.bf16.mxu0 0
  %1419 = vmatpush1.bf16.msra.mxu0 0
  %1420 = vmatprep.subr.bf16.mxu0 0
  %1421 = vmatpush1.bf16.msra.mxu0 0
  %1422 = vmatprep.subr.bf16.mxu0 0
  %1423 = vmatpush1.bf16.msra.mxu0 0
  %1424 = vmatprep.subr.bf16.mxu0 0
  %1425 = vmatpush1.bf16.msra.mxu0 0
  %1426 = vmatprep.subr.bf16.mxu0 0
  %1427 = vmatpush1.bf16.msra.mxu0 0
  %1428 = vmatprep.subr.bf16.mxu0 0
  %1429 = vmatpush1.bf16.msra.mxu0 0
  %1430 = vmatprep.subr.bf16.mxu0 0
  %1431 = vmatpush1.bf16.msra.mxu0 0
  %1432 = vmatprep.subr.bf16.mxu0 0
  %1433 = vmatpush1.bf16.msra.mxu0 0
  %1434 = vmatprep.subr.bf16.mxu0 0
  %1435 = vmatpush1.bf16.msra.mxu0 0
  %1436 = vmatprep.subr.bf16.mxu0 0
  %1437 = vmatpush1.bf16.msra.mxu0 0
  %1438 = vmatprep.subr.bf16.mxu0 0
  %1439 = vmatpush1.bf16.msra.mxu0 0
  %1440 = vmatprep.subr.bf16.mxu0 0
  %1441 = vmatpush1.bf16.msra.mxu0 0
  %1442 = vmatprep.mubr.bf16.mxu0 0
  %1443 = vmatmul.mubr.bf16.gmra.mrb[0].mxu0 %v1326
  %v1444 = vpop.f32.mrb[0].mxu0
  %v1445 = vadd.f32 %v1104, %v1444
  %v1446 = vpop.f32.mrb[0].mxu0
  %v1447 = vadd.f32 %v1108, %v1446
  %v1448 = vpop.f32.mrb[0].mxu0
  %v1449 = vpop.f32.mrb[0].mxu0
  %1450 = vdwg.mxu0
  %1451 = vmatprep.subr.bf16.mxu0 %v1268
  %1452 = vmatpush1.bf16.msra.mxu0 %v1267
  %1453 = vmatprep.subr.bf16.mxu0 %v1284
  %1454 = vmatpush1.bf16.msra.mxu0 %v1283
  %1455 = vmatprep.subr.bf16.mxu0 0
  %1456 = vmatpush1.bf16.msra.mxu0 0
  %1457 = vmatprep.subr.bf16.mxu0 0
  %1458 = vmatpush1.bf16.msra.mxu0 0
  %1459 = vmatprep.subr.bf16.mxu0 0
  %1460 = vmatpush1.bf16.msra.mxu0 0
  %1461 = vmatprep.subr.bf16.mxu0 0
  %1462 = vmatpush1.bf16.msra.mxu0 0
  %1463 = vmatprep.subr.bf16.mxu0 0
  %1464 = vmatpush1.bf16.msra.mxu0 0
  %1465 = vmatprep.subr.bf16.mxu0 0
  %1466 = vmatpush1.bf16.msra.mxu0 0
  %1467 = vmatprep.subr.bf16.mxu0 0
  %1468 = vmatpush1.bf16.msra.mxu0 0
  %1469 = vmatprep.subr.bf16.mxu0 0
  %1470 = vmatpush1.bf16.msra.mxu0 0
  %1471 = vmatprep.subr.bf16.mxu0 0
  %1472 = vmatpush1.bf16.msra.mxu0 0
  %1473 = vmatprep.subr.bf16.mxu0 0
  %1474 = vmatpush1.bf16.msra.mxu0 0
  %1475 = vmatprep.subr.bf16.mxu0 0
  %1476 = vmatpush1.bf16.msra.mxu0 0
  %1477 = vmatprep.subr.bf16.mxu0 0
  %1478 = vmatpush1.bf16.msra.mxu0 0
  %1479 = vmatprep.subr.bf16.mxu0 0
  %1480 = vmatpush1.bf16.msra.mxu0 0
  %1481 = vmatprep.subr.bf16.mxu0 0
  %1482 = vmatpush1.bf16.msra.mxu0 0
  %1483 = vmatprep.mubr.bf16.mxu0 0
  %1484 = vmatmul.mubr.bf16.gmra.mrb[0].mxu0 %v1326
  %v1485 = vpop.f32.mrb[0].mxu0
  %v1486 = vadd.f32 %v1112, %v1485
  %v1487 = vpop.f32.mrb[0].mxu0
  %v1488 = vadd.f32 %v1116, %v1487
  %v1489 = vpop.f32.mrb[0].mxu0
  %v1490 = vpop.f32.mrb[0].mxu0
  %1491 = vdwg.mxu0
  %1492 = vmatprep.subr.bf16.mxu0 %v1270
  %1493 = vmatpush1.bf16.msra.mxu0 %v1269
  %1494 = vmatprep.subr.bf16.mxu0 %v1286
  %1495 = vmatpush1.bf16.msra.mxu0 %v1285
  %1496 = vmatprep.subr.bf16.mxu0 0
  %1497 = vmatpush1.bf16.msra.mxu0 0
  %1498 = vmatprep.subr.bf16.mxu0 0
  %1499 = vmatpush1.bf16.msra.mxu0 0
  %1500 = vmatprep.subr.bf16.mxu0 0
  %1501 = vmatpush1.bf16.msra.mxu0 0
  %1502 = vmatprep.subr.bf16.mxu0 0
  %1503 = vmatpush1.bf16.msra.mxu0 0
  %1504 = vmatprep.subr.bf16.mxu0 0
  %1505 = vmatpush1.bf16.msra.mxu0 0
  %1506 = vmatprep.subr.bf16.mxu0 0
  %1507 = vmatpush1.bf16.msra.mxu0 0
  %1508 = vmatprep.subr.bf16.mxu0 0
  %1509 = vmatpush1.bf16.msra.mxu0 0
  %1510 = vmatprep.subr.bf16.mxu0 0
  %1511 = vmatpush1.bf16.msra.mxu0 0
  %1512 = vmatprep.subr.bf16.mxu0 0
  %1513 = vmatpush1.bf16.msra.mxu0 0
  %1514 = vmatprep.subr.bf16.mxu0 0
  %1515 = vmatpush1.bf16.msra.mxu0 0
  %1516 = vmatprep.subr.bf16.mxu0 0
  %1517 = vmatpush1.bf16.msra.mxu0 0
  %1518 = vmatprep.subr.bf16.mxu0 0
  %1519 = vmatpush1.bf16.msra.mxu0 0
  %1520 = vmatprep.subr.bf16.mxu0 0
  %1521 = vmatpush1.bf16.msra.mxu0 0
  %1522 = vmatprep.subr.bf16.mxu0 0
  %1523 = vmatpush1.bf16.msra.mxu0 0
  %1524 = vmatprep.mubr.bf16.mxu0 0
  %1525 = vmatmul.mubr.bf16.gmra.mrb[0].mxu0 %v1326
  %v1526 = vpop.f32.mrb[0].mxu0
  %v1527 = vadd.f32 %v1120, %v1526
  %v1528 = vpop.f32.mrb[0].mxu0
  %v1529 = vadd.f32 %v1124, %v1528
  %v1530 = vpop.f32.mrb[0].mxu0
  %v1531 = vpop.f32.mrb[0].mxu0
  %1532 = vdwg.mxu0
  %1533 = vmatprep.subr.bf16.mxu0 %v1272
  %1534 = vmatpush1.bf16.msra.mxu0 %v1271
  %1535 = vmatprep.subr.bf16.mxu0 %v1288
  %1536 = vmatpush1.bf16.msra.mxu0 %v1287
  %1537 = vmatprep.subr.bf16.mxu0 0
  %1538 = vmatpush1.bf16.msra.mxu0 0
  %1539 = vmatprep.subr.bf16.mxu0 0
  %1540 = vmatpush1.bf16.msra.mxu0 0
  %1541 = vmatprep.subr.bf16.mxu0 0
  %1542 = vmatpush1.bf16.msra.mxu0 0
  %1543 = vmatprep.subr.bf16.mxu0 0
  %1544 = vmatpush1.bf16.msra.mxu0 0
  %1545 = vmatprep.subr.bf16.mxu0 0
  %1546 = vmatpush1.bf16.msra.mxu0 0
  %1547 = vmatprep.subr.bf16.mxu0 0
  %1548 = vmatpush1.bf16.msra.mxu0 0
  %1549 = vmatprep.subr.bf16.mxu0 0
  %1550 = vmatpush1.bf16.msra.mxu0 0
  %1551 = vmatprep.subr.bf16.mxu0 0
  %1552 = vmatpush1.bf16.msra.mxu0 0
  %1553 = vmatprep.subr.bf16.mxu0 0
  %1554 = vmatpush1.bf16.msra.mxu0 0
  %1555 = vmatprep.subr.bf16.mxu0 0
  %1556 = vmatpush1.bf16.msra.mxu0 0
  %1557 = vmatprep.subr.bf16.mxu0 0
  %1558 = vmatpush1.bf16.msra.mxu0 0
  %1559 = vmatprep.subr.bf16.mxu0 0
  %1560 = vmatpush1.bf16.msra.mxu0 0
  %1561 = vmatprep.subr.bf16.mxu0 0
  %1562 = vmatpush1.bf16.msra.mxu0 0
  %1563 = vmatprep.subr.bf16.mxu0 0
  %1564 = vmatpush1.bf16.msra.mxu0 0
  %1565 = vmatprep.mubr.bf16.mxu0 0
  %1566 = vmatmul.mubr.bf16.gmra.mrb[0].mxu0 %v1326
  %v1567 = vpop.f32.mrb[0].mxu0
  %v1568 = vadd.f32 %v1128, %v1567
  %v1569 = vpop.f32.mrb[0].mxu0
  %v1570 = vadd.f32 %v1132, %v1569
  %v1571 = vpop.f32.mrb[0].mxu0
  %v1572 = vpop.f32.mrb[0].mxu0
  %1573 = vdwg.mxu0
  %1574 = vmatprep.subr.bf16.mxu0 %v1274
  %1575 = vmatpush1.bf16.msra.mxu0 %v1273
  %1576 = vmatprep.subr.bf16.mxu0 %v1290
  %1577 = vmatpush1.bf16.msra.mxu0 %v1289
  %1578 = vmatprep.subr.bf16.mxu0 0
  %1579 = vmatpush1.bf16.msra.mxu0 0
  %1580 = vmatprep.subr.bf16.mxu0 0
  %1581 = vmatpush1.bf16.msra.mxu0 0
  %1582 = vmatprep.subr.bf16.mxu0 0
  %1583 = vmatpush1.bf16.msra.mxu0 0
  %1584 = vmatprep.subr.bf16.mxu0 0
  %1585 = vmatpush1.bf16.msra.mxu0 0
  %1586 = vmatprep.subr.bf16.mxu0 0
  %1587 = vmatpush1.bf16.msra.mxu0 0
  %1588 = vmatprep.subr.bf16.mxu0 0
  %1589 = vmatpush1.bf16.msra.mxu0 0
  %1590 = vmatprep.subr.bf16.mxu0 0
  %1591 = vmatpush1.bf16.msra.mxu0 0
  %1592 = vmatprep.subr.bf16.mxu0 0
  %1593 = vmatpush1.bf16.msra.mxu0 0
  %1594 = vmatprep.subr.bf16.mxu0 0
  %1595 = vmatpush1.bf16.msra.mxu0 0
  %1596 = vmatprep.subr.bf16.mxu0 0
  %1597 = vmatpush1.bf16.msra.mxu0 0
  %1598 = vmatprep.subr.bf16.mxu0 0
  %1599 = vmatpush1.bf16.msra.mxu0 0
  %1600 = vmatprep.subr.bf16.mxu0 0
  %1601 = vmatpush1.bf16.msra.mxu0 0
  %1602 = vmatprep.subr.bf16.mxu0 0
  %1603 = vmatpush1.bf16.msra.mxu0 0
  %1604 = vmatprep.subr.bf16.mxu0 0
  %1605 = vmatpush1.bf16.msra.mxu0 0
  %1606 = vmatprep.mubr.bf16.mxu0 0
  %1607 = vmatmul.mubr.bf16.gmra.mrb[0].mxu0 %v1326
  %v1608 = vpop.f32.mrb[0].mxu0
  %v1609 = vadd.f32 %v1136, %v1608
  %v1610 = vpop.f32.mrb[0].mxu0
  %v1611 = vadd.f32 %v1140, %v1610
  %v1612 = vpop.f32.mrb[0].mxu0
  %v1613 = vpop.f32.mrb[0].mxu0
  %1614 = vdwg.mxu0
  %1615 = vmatprep.subr.bf16.mxu0 %v1276
  %1616 = vmatpush1.bf16.msra.mxu0 %v1275
  %1617 = vmatprep.subr.bf16.mxu0 %v1292
  %1618 = vmatpush1.bf16.msra.mxu0 %v1291
  %1619 = vmatprep.subr.bf16.mxu0 0
  %1620 = vmatpush1.bf16.msra.mxu0 0
  %1621 = vmatprep.subr.bf16.mxu0 0
  %1622 = vmatpush1.bf16.msra.mxu0 0
  %1623 = vmatprep.subr.bf16.mxu0 0
  %1624 = vmatpush1.bf16.msra.mxu0 0
  %1625 = vmatprep.subr.bf16.mxu0 0
  %1626 = vmatpush1.bf16.msra.mxu0 0
  %1627 = vmatprep.subr.bf16.mxu0 0
  %1628 = vmatpush1.bf16.msra.mxu0 0
  %1629 = vmatprep.subr.bf16.mxu0 0
  %1630 = vmatpush1.bf16.msra.mxu0 0
  %1631 = vmatprep.subr.bf16.mxu0 0
  %1632 = vmatpush1.bf16.msra.mxu0 0
  %1633 = vmatprep.subr.bf16.mxu0 0
  %1634 = vmatpush1.bf16.msra.mxu0 0
  %1635 = vmatprep.subr.bf16.mxu0 0
  %1636 = vmatpush1.bf16.msra.mxu0 0
  %1637 = vmatprep.subr.bf16.mxu0 0
  %1638 = vmatpush1.bf16.msra.mxu0 0
  %1639 = vmatprep.subr.bf16.mxu0 0
  %1640 = vmatpush1.bf16.msra.mxu0 0
  %1641 = vmatprep.subr.bf16.mxu0 0
  %1642 = vmatpush1.bf16.msra.mxu0 0
  %1643 = vmatprep.subr.bf16.mxu0 0
  %1644 = vmatpush1.bf16.msra.mxu0 0
  %1645 = vmatprep.subr.bf16.mxu0 0
  %1646 = vmatpush1.bf16.msra.mxu0 0
  %1647 = vmatprep.mubr.bf16.mxu0 0
  %1648 = vmatmul.mubr.bf16.gmra.mrb[0].mxu0 %v1326
  %v1649 = vpop.f32.mrb[0].mxu0
  %v1650 = vadd.f32 %v1144, %v1649
  %v1651 = vpop.f32.mrb[0].mxu0
  %v1652 = vadd.f32 %v1148, %v1651
  %v1653 = vpop.f32.mrb[0].mxu0
  %v1654 = vpop.f32.mrb[0].mxu0
  %1655 = vdwg.mxu0
  %v1656 = vmax.f32 %v1363, 0.0
  %v1657 = vmax.f32 %v1365, 0.0
  %v1658 = vmax.f32 %v1404, 0.0
  %v1659 = vmax.f32 %v1406, 0.0
  %v1660 = vmax.f32 %v1445, 0.0
  %v1661 = vmax.f32 %v1447, 0.0
  %v1662 = vmax.f32 %v1486, 0.0
  %v1663 = vmax.f32 %v1488, 0.0
  %v1664 = vmax.f32 %v1527, 0.0
  %v1665 = vmax.f32 %v1529, 0.0
  %v1666 = vmax.f32 %v1568, 0.0
  %v1667 = vmax.f32 %v1570, 0.0
  %v1668 = vmax.f32 %v1609, 0.0
  %v1669 = vmax.f32 %v1611, 0.0
  %v1670 = vmax.f32 %v1650, 0.0
  %v1671 = vmax.f32 %v1652, 0.0
  %v1672 = vpack.c.bf16 %v1656, %v1656
  %v1673 = vpack.c.bf16 %v1657, %v1657
  %v1674 = vpack.c.bf16 %v1658, %v1658
  %v1675 = vpack.c.bf16 %v1659, %v1659
  %v1676 = vpack.c.bf16 %v1660, %v1660
  %v1677 = vpack.c.bf16 %v1661, %v1661
  %v1678 = vpack.c.bf16 %v1662, %v1662
  %v1679 = vpack.c.bf16 %v1663, %v1663
  %v1680 = vpack.c.bf16 %v1664, %v1664
  %v1681 = vpack.c.bf16 %v1665, %v1665
  %v1682 = vpack.c.bf16 %v1666, %v1666
  %v1683 = vpack.c.bf16 %v1667, %v1667
  %v1684 = vpack.c.bf16 %v1668, %v1668
  %v1685 = vpack.c.bf16 %v1669, %v1669
  %v1686 = vpack.c.bf16 %v1670, %v1670
  %v1687 = vpack.c.bf16 %v1671, %v1671
  %v1688 = vld [vmem:[%s22] sm:$0xf]
  %v1689 = vld [vmem:[%s22 + $0x4] sm:$0xf]
  %v1690 = vld [vmem:[%s22 + $0x8] sm:$0xf]
  %v1691 = vld [vmem:[%s22 + $0xc] sm:$0xf]
  %v1692 = vld [vmem:[%s22 + $0x10] sm:$0xf]
  %v1693 = vld [vmem:[%s22 + $0x14] sm:$0xf]
  %v1694 = vld [vmem:[%s22 + $0x18] sm:$0xf]
  %v1695 = vld [vmem:[%s22 + $0x1c] sm:$0xf]
  %v1696 = vld [vmem:[%s22 + $0x20] sm:$0xf]
  %v1697 = vld [vmem:[%s22 + $0x24] sm:$0xf]
  %v1698 = vld [vmem:[%s22 + $0x28] sm:$0xf]
  %v1699 = vld [vmem:[%s22 + $0x2c] sm:$0xf]
  %v1700 = vld [vmem:[%s22 + $0x30] sm:$0xf]
  %v1701 = vld [vmem:[%s22 + $0x34] sm:$0xf]
  %v1702 = vld [vmem:[%s22 + $0x38] sm:$0xf]
  %v1703 = vld [vmem:[%s22 + $0x3c] sm:$0xf]
  %v1704 = vld [vmem:[%s22 + $0x40] sm:$0xf]
  %v1705 = vld [vmem:[%s22 + $0x44] sm:$0xf]
  %v1706 = vld [vmem:[%s22 + $0x48] sm:$0xf]
  %v1707 = vld [vmem:[%s22 + $0x4c] sm:$0xf]
  %v1708 = vld [vmem:[%s22 + $0x50] sm:$0xf]
  %v1709 = vld [vmem:[%s22 + $0x54] sm:$0xf]
  %v1710 = vld [vmem:[%s22 + $0x58] sm:$0xf]
  %v1711 = vld [vmem:[%s22 + $0x5c] sm:$0xf]
  %v1712 = vld [vmem:[%s22 + $0x60] sm:$0xf]
  %v1713 = vld [vmem:[%s22 + $0x64] sm:$0xf]
  %v1714 = vld [vmem:[%s22 + $0x68] sm:$0xf]
  %v1715 = vld [vmem:[%s22 + $0x6c] sm:$0xf]
  %v1716 = vld [vmem:[%s22 + $0x70] sm:$0xf]
  %v1717 = vld [vmem:[%s22 + $0x74] sm:$0xf]
  %v1718 = vld [vmem:[%s22 + $0x78] sm:$0xf]
  %v1719 = vld [vmem:[%s22 + $0x7c] sm:$0xf]
  %v1720 = vld [vmem:[%s22 + $0x80] sm:$0xf]
  %v1721 = vld [vmem:[%s22 + $0x84] sm:$0xf]
  %v1722 = vld [vmem:[%s22 + $0x88] sm:$0xf]
  %v1723 = vld [vmem:[%s22 + $0x8c] sm:$0xf]
  %v1724 = vld [vmem:[%s22 + $0x90] sm:$0xf]
  %v1725 = vld [vmem:[%s22 + $0x94] sm:$0xf]
  %v1726 = vld [vmem:[%s22 + $0x98] sm:$0xf]
  %v1727 = vld [vmem:[%s22 + $0x9c] sm:$0xf]
  %v1728 = vld [vmem:[%s22 + $0xa0] sm:$0xf]
  %v1729 = vld [vmem:[%s22 + $0xa4] sm:$0xf]
  %v1730 = vld [vmem:[%s22 + $0xa8] sm:$0xf]
  %v1731 = vld [vmem:[%s22 + $0xac] sm:$0xf]
  %v1732 = vld [vmem:[%s22 + $0xb0] sm:$0xf]
  %v1733 = vld [vmem:[%s22 + $0xb4] sm:$0xf]
  %v1734 = vld [vmem:[%s22 + $0xb8] sm:$0xf]
  %v1735 = vld [vmem:[%s22 + $0xbc] sm:$0xf]
  %v1736 = vld [vmem:[%s22 + $0xc0] sm:$0xf]
  %v1737 = vld [vmem:[%s22 + $0xc4] sm:$0xf]
  %v1738 = vld [vmem:[%s22 + $0xc8] sm:$0xf]
  %v1739 = vld [vmem:[%s22 + $0xcc] sm:$0xf]
  %v1740 = vld [vmem:[%s22 + $0xd0] sm:$0xf]
  %v1741 = vld [vmem:[%s22 + $0xd4] sm:$0xf]
  %v1742 = vld [vmem:[%s22 + $0xd8] sm:$0xf]
  %v1743 = vld [vmem:[%s22 + $0xdc] sm:$0xf]
  %v1744 = vld [vmem:[%s22 + $0xe0] sm:$0xf]
  %v1745 = vld [vmem:[%s22 + $0xe4] sm:$0xf]
  %v1746 = vld [vmem:[%s22 + $0xe8] sm:$0xf]
  %v1747 = vld [vmem:[%s22 + $0xec] sm:$0xf]
  %v1748 = vld [vmem:[%s22 + $0xf0] sm:$0xf]
  %v1749 = vld [vmem:[%s22 + $0xf4] sm:$0xf]
  %v1750 = vld [vmem:[%s22 + $0xf8] sm:$0xf]
  %v1751 = vld [vmem:[%s22 + $0xfc] sm:$0xf]
  %v1752 = vld [vmem:[%s22 + $0x100] sm:$0xf]
  %v1753 = vld [vmem:[%s22 + $0x104] sm:$0xf]
  %v1754 = vld [vmem:[%s22 + $0x108] sm:$0xf]
  %v1755 = vld [vmem:[%s22 + $0x10c] sm:$0xf]
  %v1756 = vld [vmem:[%s22 + $0x110] sm:$0xf]
  %v1757 = vld [vmem:[%s22 + $0x114] sm:$0xf]
  %v1758 = vld [vmem:[%s22 + $0x118] sm:$0xf]
  %v1759 = vld [vmem:[%s22 + $0x11c] sm:$0xf]
  %v1760 = vld [vmem:[%s22 + $0x120] sm:$0xf]
  %v1761 = vld [vmem:[%s22 + $0x124] sm:$0xf]
  %v1762 = vld [vmem:[%s22 + $0x128] sm:$0xf]
  %v1763 = vld [vmem:[%s22 + $0x12c] sm:$0xf]
  %v1764 = vld [vmem:[%s22 + $0x130] sm:$0xf]
  %v1765 = vld [vmem:[%s22 + $0x134] sm:$0xf]
  %v1766 = vld [vmem:[%s22 + $0x138] sm:$0xf]
  %v1767 = vld [vmem:[%s22 + $0x13c] sm:$0xf]
  %v1768 = vld [vmem:[%s22 + $0x140] sm:$0xf]
  %v1769 = vld [vmem:[%s22 + $0x144] sm:$0xf]
  %v1770 = vld [vmem:[%s22 + $0x148] sm:$0xf]
  %v1771 = vld [vmem:[%s22 + $0x14c] sm:$0xf]
  %v1772 = vld [vmem:[%s22 + $0x150] sm:$0xf]
  %v1773 = vld [vmem:[%s22 + $0x154] sm:$0xf]
  %v1774 = vld [vmem:[%s22 + $0x158] sm:$0xf]
  %v1775 = vld [vmem:[%s22 + $0x15c] sm:$0xf]
  %v1776 = vld [vmem:[%s22 + $0x160] sm:$0xf]
  %v1777 = vld [vmem:[%s22 + $0x164] sm:$0xf]
  %v1778 = vld [vmem:[%s22 + $0x168] sm:$0xf]
  %v1779 = vld [vmem:[%s22 + $0x16c] sm:$0xf]
  %v1780 = vld [vmem:[%s22 + $0x170] sm:$0xf]
  %v1781 = vld [vmem:[%s22 + $0x174] sm:$0xf]
  %v1782 = vld [vmem:[%s22 + $0x178] sm:$0xf]
  %v1783 = vld [vmem:[%s22 + $0x17c] sm:$0xf]
  %v1784 = vld [vmem:[%s22 + $0x180] sm:$0xf]
  %v1785 = vld [vmem:[%s22 + $0x184] sm:$0xf]
  %v1786 = vld [vmem:[%s22 + $0x188] sm:$0xf]
  %v1787 = vld [vmem:[%s22 + $0x18c] sm:$0xf]
  %v1788 = vld [vmem:[%s22 + $0x190] sm:$0xf]
  %v1789 = vld [vmem:[%s22 + $0x194] sm:$0xf]
  %v1790 = vld [vmem:[%s22 + $0x198] sm:$0xf]
  %v1791 = vld [vmem:[%s22 + $0x19c] sm:$0xf]
  %v1792 = vld [vmem:[%s22 + $0x1a0] sm:$0xf]
  %v1793 = vld [vmem:[%s22 + $0x1a4] sm:$0xf]
  %v1794 = vld [vmem:[%s22 + $0x1a8] sm:$0xf]
  %v1795 = vld [vmem:[%s22 + $0x1ac] sm:$0xf]
  %v1796 = vld [vmem:[%s22 + $0x1b0] sm:$0xf]
  %v1797 = vld [vmem:[%s22 + $0x1b4] sm:$0xf]
  %v1798 = vld [vmem:[%s22 + $0x1b8] sm:$0xf]
  %v1799 = vld [vmem:[%s22 + $0x1bc] sm:$0xf]
  %v1800 = vld [vmem:[%s22 + $0x1c0] sm:$0xf]
  %v1801 = vld [vmem:[%s22 + $0x1c4] sm:$0xf]
  %v1802 = vld [vmem:[%s22 + $0x1c8] sm:$0xf]
  %v1803 = vld [vmem:[%s22 + $0x1cc] sm:$0xf]
  %v1804 = vld [vmem:[%s22 + $0x1d0] sm:$0xf]
  %v1805 = vld [vmem:[%s22 + $0x1d4] sm:$0xf]
  %v1806 = vld [vmem:[%s22 + $0x1d8] sm:$0xf]
  %v1807 = vld [vmem:[%s22 + $0x1dc] sm:$0xf]
  %v1808 = vld [vmem:[%s22 + $0x1e0] sm:$0xf]
  %v1809 = vld [vmem:[%s22 + $0x1e4] sm:$0xf]
  %v1810 = vld [vmem:[%s22 + $0x1e8] sm:$0xf]
  %v1811 = vld [vmem:[%s22 + $0x1ec] sm:$0xf]
  %v1812 = vld [vmem:[%s22 + $0x1f0] sm:$0xf]
  %v1813 = vld [vmem:[%s22 + $0x1f4] sm:$0xf]
  %v1814 = vld [vmem:[%s22 + $0x1f8] sm:$0xf]
  %v1815 = vld [vmem:[%s22 + $0x1fc] sm:$0xf]
  %v1816 = vld [vmem:[%s22 + $0x200] sm:$0xf]
  %v1817 = vld [vmem:[%s22 + $0x204] sm:$0xf]
  %v1818 = vld [vmem:[%s22 + $0x208] sm:$0xf]
  %v1819 = vld [vmem:[%s22 + $0x20c] sm:$0xf]
  %v1820 = vld [vmem:[%s22 + $0x210] sm:$0xf]
  %v1821 = vld [vmem:[%s22 + $0x214] sm:$0xf]
  %v1822 = vld [vmem:[%s22 + $0x218] sm:$0xf]
  %v1823 = vld [vmem:[%s22 + $0x21c] sm:$0xf]
  %v1824 = vld [vmem:[%s22 + $0x220] sm:$0xf]
  %v1825 = vld [vmem:[%s22 + $0x224] sm:$0xf]
  %v1826 = vld [vmem:[%s22 + $0x228] sm:$0xf]
  %v1827 = vld [vmem:[%s22 + $0x22c] sm:$0xf]
  %v1828 = vld [vmem:[%s22 + $0x230] sm:$0xf]
  %v1829 = vld [vmem:[%s22 + $0x234] sm:$0xf]
  %v1830 = vld [vmem:[%s22 + $0x238] sm:$0xf]
  %v1831 = vld [vmem:[%s22 + $0x23c] sm:$0xf]
  %v1832 = vld [vmem:[%s22 + $0x240] sm:$0xf]
  %v1833 = vld [vmem:[%s22 + $0x244] sm:$0xf]
  %v1834 = vld [vmem:[%s22 + $0x248] sm:$0xf]
  %v1835 = vld [vmem:[%s22 + $0x24c] sm:$0xf]
  %v1836 = vld [vmem:[%s22 + $0x250] sm:$0xf]
  %v1837 = vld [vmem:[%s22 + $0x254] sm:$0xf]
  %v1838 = vld [vmem:[%s22 + $0x258] sm:$0xf]
  %v1839 = vld [vmem:[%s22 + $0x25c] sm:$0xf]
  %v1840 = vld [vmem:[%s22 + $0x260] sm:$0xf]
  %v1841 = vld [vmem:[%s22 + $0x264] sm:$0xf]
  %v1842 = vld [vmem:[%s22 + $0x268] sm:$0xf]
  %v1843 = vld [vmem:[%s22 + $0x26c] sm:$0xf]
  %v1844 = vld [vmem:[%s22 + $0x270] sm:$0xf]
  %v1845 = vld [vmem:[%s22 + $0x274] sm:$0xf]
  %v1846 = vld [vmem:[%s22 + $0x278] sm:$0xf]
  %v1847 = vld [vmem:[%s22 + $0x27c] sm:$0xf]
  %v1848 = vld [vmem:[%s22 + $0x280] sm:$0xf]
  %v1849 = vld [vmem:[%s22 + $0x284] sm:$0xf]
  %v1850 = vld [vmem:[%s22 + $0x288] sm:$0xf]
  %v1851 = vld [vmem:[%s22 + $0x28c] sm:$0xf]
  %v1852 = vld [vmem:[%s22 + $0x290] sm:$0xf]
  %v1853 = vld [vmem:[%s22 + $0x294] sm:$0xf]
  %v1854 = vld [vmem:[%s22 + $0x298] sm:$0xf]
  %v1855 = vld [vmem:[%s22 + $0x29c] sm:$0xf]
  %v1856 = vld [vmem:[%s22 + $0x2a0] sm:$0xf]
  %v1857 = vld [vmem:[%s22 + $0x2a4] sm:$0xf]
  %v1858 = vld [vmem:[%s22 + $0x2a8] sm:$0xf]
  %v1859 = vld [vmem:[%s22 + $0x2ac] sm:$0xf]
  %v1860 = vld [vmem:[%s22 + $0x2b0] sm:$0xf]
  %v1861 = vld [vmem:[%s22 + $0x2b4] sm:$0xf]
  %v1862 = vld [vmem:[%s22 + $0x2b8] sm:$0xf]
  %v1863 = vld [vmem:[%s22 + $0x2bc] sm:$0xf]
  %v1864 = vld [vmem:[%s22 + $0x2c0] sm:$0xf]
  %v1865 = vld [vmem:[%s22 + $0x2c4] sm:$0xf]
  %v1866 = vld [vmem:[%s22 + $0x2c8] sm:$0xf]
  %v1867 = vld [vmem:[%s22 + $0x2cc] sm:$0xf]
  %v1868 = vld [vmem:[%s22 + $0x2d0] sm:$0xf]
  %v1869 = vld [vmem:[%s22 + $0x2d4] sm:$0xf]
  %v1870 = vld [vmem:[%s22 + $0x2d8] sm:$0xf]
  %v1871 = vld [vmem:[%s22 + $0x2dc] sm:$0xf]
  %v1872 = vld [vmem:[%s22 + $0x2e0] sm:$0xf]
  %v1873 = vld [vmem:[%s22 + $0x2e4] sm:$0xf]
  %v1874 = vld [vmem:[%s22 + $0x2e8] sm:$0xf]
  %v1875 = vld [vmem:[%s22 + $0x2ec] sm:$0xf]
  %v1876 = vld [vmem:[%s22 + $0x2f0] sm:$0xf]
  %v1877 = vld [vmem:[%s22 + $0x2f4] sm:$0xf]
  %v1878 = vld [vmem:[%s22 + $0x2f8] sm:$0xf]
  %v1879 = vld [vmem:[%s22 + $0x2fc] sm:$0xf]
  %v1880 = vld [vmem:[%s22 + $0x300] sm:$0xf]
  %v1881 = vld [vmem:[%s22 + $0x304] sm:$0xf]
  %v1882 = vld [vmem:[%s22 + $0x308] sm:$0xf]
  %v1883 = vld [vmem:[%s22 + $0x30c] sm:$0xf]
  %v1884 = vld [vmem:[%s22 + $0x310] sm:$0xf]
  %v1885 = vld [vmem:[%s22 + $0x314] sm:$0xf]
  %v1886 = vld [vmem:[%s22 + $0x318] sm:$0xf]
  %v1887 = vld [vmem:[%s22 + $0x31c] sm:$0xf]
  %v1888 = vld [vmem:[%s22 + $0x320] sm:$0xf]
  %v1889 = vld [vmem:[%s22 + $0x324] sm:$0xf]
  %v1890 = vld [vmem:[%s22 + $0x328] sm:$0xf]
  %v1891 = vld [vmem:[%s22 + $0x32c] sm:$0xf]
  %v1892 = vld [vmem:[%s22 + $0x330] sm:$0xf]
  %v1893 = vld [vmem:[%s22 + $0x334] sm:$0xf]
  %v1894 = vld [vmem:[%s22 + $0x338] sm:$0xf]
  %v1895 = vld [vmem:[%s22 + $0x33c] sm:$0xf]
  %v1896 = vld [vmem:[%s22 + $0x340] sm:$0xf]
  %v1897 = vld [vmem:[%s22 + $0x344] sm:$0xf]
  %v1898 = vld [vmem:[%s22 + $0x348] sm:$0xf]
  %v1899 = vld [vmem:[%s22 + $0x34c] sm:$0xf]
  %v1900 = vld [vmem:[%s22 + $0x350] sm:$0xf]
  %v1901 = vld [vmem:[%s22 + $0x354] sm:$0xf]
  %v1902 = vld [vmem:[%s22 + $0x358] sm:$0xf]
  %v1903 = vld [vmem:[%s22 + $0x35c] sm:$0xf]
  %v1904 = vld [vmem:[%s22 + $0x360] sm:$0xf]
  %v1905 = vld [vmem:[%s22 + $0x364] sm:$0xf]
  %v1906 = vld [vmem:[%s22 + $0x368] sm:$0xf]
  %v1907 = vld [vmem:[%s22 + $0x36c] sm:$0xf]
  %v1908 = vld [vmem:[%s22 + $0x370] sm:$0xf]
  %v1909 = vld [vmem:[%s22 + $0x374] sm:$0xf]
  %v1910 = vld [vmem:[%s22 + $0x378] sm:$0xf]
  %v1911 = vld [vmem:[%s22 + $0x37c] sm:$0xf]
  %v1912 = vld [vmem:[%s22 + $0x380] sm:$0xf]
  %v1913 = vld [vmem:[%s22 + $0x384] sm:$0xf]
  %v1914 = vld [vmem:[%s22 + $0x388] sm:$0xf]
  %v1915 = vld [vmem:[%s22 + $0x38c] sm:$0xf]
  %v1916 = vld [vmem:[%s22 + $0x390] sm:$0xf]
  %v1917 = vld [vmem:[%s22 + $0x394] sm:$0xf]
  %v1918 = vld [vmem:[%s22 + $0x398] sm:$0xf]
  %v1919 = vld [vmem:[%s22 + $0x39c] sm:$0xf]
  %v1920 = vld [vmem:[%s22 + $0x3a0] sm:$0xf]
  %v1921 = vld [vmem:[%s22 + $0x3a4] sm:$0xf]
  %v1922 = vld [vmem:[%s22 + $0x3a8] sm:$0xf]
  %v1923 = vld [vmem:[%s22 + $0x3ac] sm:$0xf]
  %v1924 = vld [vmem:[%s22 + $0x3b0] sm:$0xf]
  %v1925 = vld [vmem:[%s22 + $0x3b4] sm:$0xf]
  %v1926 = vld [vmem:[%s22 + $0x3b8] sm:$0xf]
  %v1927 = vld [vmem:[%s22 + $0x3bc] sm:$0xf]
  %v1928 = vld [vmem:[%s22 + $0x3c0] sm:$0xf]
  %v1929 = vld [vmem:[%s22 + $0x3c4] sm:$0xf]
  %v1930 = vld [vmem:[%s22 + $0x3c8] sm:$0xf]
  %v1931 = vld [vmem:[%s22 + $0x3cc] sm:$0xf]
  %v1932 = vld [vmem:[%s22 + $0x3d0] sm:$0xf]
  %v1933 = vld [vmem:[%s22 + $0x3d4] sm:$0xf]
  %v1934 = vld [vmem:[%s22 + $0x3d8] sm:$0xf]
  %v1935 = vld [vmem:[%s22 + $0x3dc] sm:$0xf]
  %v1936 = vld [vmem:[%s22 + $0x3e0] sm:$0xf]
  %v1937 = vld [vmem:[%s22 + $0x3e4] sm:$0xf]
  %v1938 = vld [vmem:[%s22 + $0x3e8] sm:$0xf]
  %v1939 = vld [vmem:[%s22 + $0x3ec] sm:$0xf]
  %v1940 = vld [vmem:[%s22 + $0x3f0] sm:$0xf]
  %v1941 = vld [vmem:[%s22 + $0x3f4] sm:$0xf]
  %v1942 = vld [vmem:[%s22 + $0x3f8] sm:$0xf]
  %v1943 = vld [vmem:[%s22 + $0x3fc] sm:$0xf]
  %v1944 = vld [vmem:[%s23] sm:$0x1]
  %v1946 = vlaneseq
  %v1947 = vshrl.u32 %v1946, 7
  %v1948 = vsub.s32 0, %v1947
  %v1949 = vrot.slane %v1944, %v1948
  %v2207 = vunpack.c.l.b16 %v1688
  %v2208 = vunpack.c.l.b16 %v1689
  %v2209 = vunpack.c.l.b16 %v1690
  %v2210 = vunpack.c.l.b16 %v1691
  %v2211 = vunpack.c.l.b16 %v1692
  %v2212 = vunpack.c.l.b16 %v1693
  %v2213 = vunpack.c.l.b16 %v1694
  %v2214 = vunpack.c.l.b16 %v1695
  %v2215 = vunpack.c.l.b16 %v1696
  %v2216 = vunpack.c.l.b16 %v1697
  %v2217 = vunpack.c.l.b16 %v1698
  %v2218 = vunpack.c.l.b16 %v1699
  %v2219 = vunpack.c.l.b16 %v1700
  %v2220 = vunpack.c.l.b16 %v1701
  %v2221 = vunpack.c.l.b16 %v1702
  %v2222 = vunpack.c.l.b16 %v1703
  %v2223 = vunpack.c.l.b16 %v1704
  %v2224 = vunpack.c.l.b16 %v1705
  %v2225 = vunpack.c.l.b16 %v1706
  %v2226 = vunpack.c.l.b16 %v1707
  %v2227 = vunpack.c.l.b16 %v1708
  %v2228 = vunpack.c.l.b16 %v1709
  %v2229 = vunpack.c.l.b16 %v1710
  %v2230 = vunpack.c.l.b16 %v1711
  %v2231 = vunpack.c.l.b16 %v1712
  %v2232 = vunpack.c.l.b16 %v1713
  %v2233 = vunpack.c.l.b16 %v1714
  %v2234 = vunpack.c.l.b16 %v1715
  %v2235 = vunpack.c.l.b16 %v1716
  %v2236 = vunpack.c.l.b16 %v1717
  %v2237 = vunpack.c.l.b16 %v1718
  %v2238 = vunpack.c.l.b16 %v1719
  %v2239 = vunpack.c.l.b16 %v1720
  %v2240 = vunpack.c.l.b16 %v1721
  %v2241 = vunpack.c.l.b16 %v1722
  %v2242 = vunpack.c.l.b16 %v1723
  %v2243 = vunpack.c.l.b16 %v1724
  %v2244 = vunpack.c.l.b16 %v1725
  %v2245 = vunpack.c.l.b16 %v1726
  %v2246 = vunpack.c.l.b16 %v1727
  %v2247 = vunpack.c.l.b16 %v1728
  %v2248 = vunpack.c.l.b16 %v1729
  %v2249 = vunpack.c.l.b16 %v1730
  %v2250 = vunpack.c.l.b16 %v1731
  %v2251 = vunpack.c.l.b16 %v1732
  %v2252 = vunpack.c.l.b16 %v1733
  %v2253 = vunpack.c.l.b16 %v1734
  %v2254 = vunpack.c.l.b16 %v1735
  %v2255 = vunpack.c.l.b16 %v1736
  %v2256 = vunpack.c.l.b16 %v1737
  %v2257 = vunpack.c.l.b16 %v1738
  %v2258 = vunpack.c.l.b16 %v1739
  %v2259 = vunpack.c.l.b16 %v1740
  %v2260 = vunpack.c.l.b16 %v1741
  %v2261 = vunpack.c.l.b16 %v1742
  %v2262 = vunpack.c.l.b16 %v1743
  %v2263 = vunpack.c.l.b16 %v1744
  %v2264 = vunpack.c.l.b16 %v1745
  %v2265 = vunpack.c.l.b16 %v1746
  %v2266 = vunpack.c.l.b16 %v1747
  %v2267 = vunpack.c.l.b16 %v1748
  %v2268 = vunpack.c.l.b16 %v1749
  %v2269 = vunpack.c.l.b16 %v1750
  %v2270 = vunpack.c.l.b16 %v1751
  %v2271 = vunpack.c.l.b16 %v1752
  %v2272 = vunpack.c.l.b16 %v1753
  %v2273 = vunpack.c.l.b16 %v1754
  %v2274 = vunpack.c.l.b16 %v1755
  %v2275 = vunpack.c.l.b16 %v1756
  %v2276 = vunpack.c.l.b16 %v1757
  %v2277 = vunpack.c.l.b16 %v1758
  %v2278 = vunpack.c.l.b16 %v1759
  %v2279 = vunpack.c.l.b16 %v1760
  %v2280 = vunpack.c.l.b16 %v1761
  %v2281 = vunpack.c.l.b16 %v1762
  %v2282 = vunpack.c.l.b16 %v1763
  %v2283 = vunpack.c.l.b16 %v1764
  %v2284 = vunpack.c.l.b16 %v1765
  %v2285 = vunpack.c.l.b16 %v1766
  %v2286 = vunpack.c.l.b16 %v1767
  %v2287 = vunpack.c.l.b16 %v1768
  %v2288 = vunpack.c.l.b16 %v1769
  %v2289 = vunpack.c.l.b16 %v1770
  %v2290 = vunpack.c.l.b16 %v1771
  %v2291 = vunpack.c.l.b16 %v1772
  %v2292 = vunpack.c.l.b16 %v1773
  %v2293 = vunpack.c.l.b16 %v1774
  %v2294 = vunpack.c.l.b16 %v1775
  %v2295 = vunpack.c.l.b16 %v1776
  %v2296 = vunpack.c.l.b16 %v1777
  %v2297 = vunpack.c.l.b16 %v1778
  %v2298 = vunpack.c.l.b16 %v1779
  %v2299 = vunpack.c.l.b16 %v1780
  %v2300 = vunpack.c.l.b16 %v1781
  %v2301 = vunpack.c.l.b16 %v1782
  %v2302 = vunpack.c.l.b16 %v1783
  %v2303 = vunpack.c.l.b16 %v1784
  %v2304 = vunpack.c.l.b16 %v1785
  %v2305 = vunpack.c.l.b16 %v1786
  %v2306 = vunpack.c.l.b16 %v1787
  %v2307 = vunpack.c.l.b16 %v1788
  %v2308 = vunpack.c.l.b16 %v1789
  %v2309 = vunpack.c.l.b16 %v1790
  %v2310 = vunpack.c.l.b16 %v1791
  %v2311 = vunpack.c.l.b16 %v1792
  %v2312 = vunpack.c.l.b16 %v1793
  %v2313 = vunpack.c.l.b16 %v1794
  %v2314 = vunpack.c.l.b16 %v1795
  %v2315 = vunpack.c.l.b16 %v1796
  %v2316 = vunpack.c.l.b16 %v1797
  %v2317 = vunpack.c.l.b16 %v1798
  %v2318 = vunpack.c.l.b16 %v1799
  %v2319 = vunpack.c.l.b16 %v1800
  %v2320 = vunpack.c.l.b16 %v1801
  %v2321 = vunpack.c.l.b16 %v1802
  %v2322 = vunpack.c.l.b16 %v1803
  %v2323 = vunpack.c.l.b16 %v1804
  %v2324 = vunpack.c.l.b16 %v1805
  %v2325 = vunpack.c.l.b16 %v1806
  %v2326 = vunpack.c.l.b16 %v1807
  %v2327 = vunpack.c.l.b16 %v1808
  %v2328 = vunpack.c.l.b16 %v1809
  %v2329 = vunpack.c.l.b16 %v1810
  %v2330 = vunpack.c.l.b16 %v1811
  %v2331 = vunpack.c.l.b16 %v1812
  %v2332 = vunpack.c.l.b16 %v1813
  %v2333 = vunpack.c.l.b16 %v1814
  %v2334 = vunpack.c.l.b16 %v1815
  %v2335 = vunpack.c.l.b16 %v1816
  %v2336 = vunpack.c.l.b16 %v1817
  %v2337 = vunpack.c.l.b16 %v1818
  %v2338 = vunpack.c.l.b16 %v1819
  %v2339 = vunpack.c.l.b16 %v1820
  %v2340 = vunpack.c.l.b16 %v1821
  %v2341 = vunpack.c.l.b16 %v1822
  %v2342 = vunpack.c.l.b16 %v1823
  %v2343 = vunpack.c.l.b16 %v1824
  %v2344 = vunpack.c.l.b16 %v1825
  %v2345 = vunpack.c.l.b16 %v1826
  %v2346 = vunpack.c.l.b16 %v1827
  %v2347 = vunpack.c.l.b16 %v1828
  %v2348 = vunpack.c.l.b16 %v1829
  %v2349 = vunpack.c.l.b16 %v1830
  %v2350 = vunpack.c.l.b16 %v1831
  %v2351 = vunpack.c.l.b16 %v1832
  %v2352 = vunpack.c.l.b16 %v1833
  %v2353 = vunpack.c.l.b16 %v1834
  %v2354 = vunpack.c.l.b16 %v1835
  %v2355 = vunpack.c.l.b16 %v1836
  %v2356 = vunpack.c.l.b16 %v1837
  %v2357 = vunpack.c.l.b16 %v1838
  %v2358 = vunpack.c.l.b16 %v1839
  %v2359 = vunpack.c.l.b16 %v1840
  %v2360 = vunpack.c.l.b16 %v1841
  %v2361 = vunpack.c.l.b16 %v1842
  %v2362 = vunpack.c.l.b16 %v1843
  %v2363 = vunpack.c.l.b16 %v1844
  %v2364 = vunpack.c.l.b16 %v1845
  %v2365 = vunpack.c.l.b16 %v1846
  %v2366 = vunpack.c.l.b16 %v1847
  %v2367 = vunpack.c.l.b16 %v1848
  %v2368 = vunpack.c.l.b16 %v1849
  %v2369 = vunpack.c.l.b16 %v1850
  %v2370 = vunpack.c.l.b16 %v1851
  %v2371 = vunpack.c.l.b16 %v1852
  %v2372 = vunpack.c.l.b16 %v1853
  %v2373 = vunpack.c.l.b16 %v1854
  %v2374 = vunpack.c.l.b16 %v1855
  %v2375 = vunpack.c.l.b16 %v1856
  %v2376 = vunpack.c.l.b16 %v1857
  %v2377 = vunpack.c.l.b16 %v1858
  %v2378 = vunpack.c.l.b16 %v1859
  %v2379 = vunpack.c.l.b16 %v1860
  %v2380 = vunpack.c.l.b16 %v1861
  %v2381 = vunpack.c.l.b16 %v1862
  %v2382 = vunpack.c.l.b16 %v1863
  %v2383 = vunpack.c.l.b16 %v1864
  %v2384 = vunpack.c.l.b16 %v1865
  %v2385 = vunpack.c.l.b16 %v1866
  %v2386 = vunpack.c.l.b16 %v1867
  %v2387 = vunpack.c.l.b16 %v1868
  %v2388 = vunpack.c.l.b16 %v1869
  %v2389 = vunpack.c.l.b16 %v1870
  %v2390 = vunpack.c.l.b16 %v1871
  %v2391 = vunpack.c.l.b16 %v1872
  %v2392 = vunpack.c.l.b16 %v1873
  %v2393 = vunpack.c.l.b16 %v1874
  %v2394 = vunpack.c.l.b16 %v1875
  %v2395 = vunpack.c.l.b16 %v1876
  %v2396 = vunpack.c.l.b16 %v1877
  %v2397 = vunpack.c.l.b16 %v1878
  %v2398 = vunpack.c.l.b16 %v1879
  %v2399 = vunpack.c.l.b16 %v1880
  %v2400 = vunpack.c.l.b16 %v1881
  %v2401 = vunpack.c.l.b16 %v1882
  %v2402 = vunpack.c.l.b16 %v1883
  %v2403 = vunpack.c.l.b16 %v1884
  %v2404 = vunpack.c.l.b16 %v1885
  %v2405 = vunpack.c.l.b16 %v1886
  %v2406 = vunpack.c.l.b16 %v1887
  %v2407 = vunpack.c.l.b16 %v1888
  %v2408 = vunpack.c.l.b16 %v1889
  %v2409 = vunpack.c.l.b16 %v1890
  %v2410 = vunpack.c.l.b16 %v1891
  %v2411 = vunpack.c.l.b16 %v1892
  %v2412 = vunpack.c.l.b16 %v1893
  %v2413 = vunpack.c.l.b16 %v1894
  %v2414 = vunpack.c.l.b16 %v1895
  %v2415 = vunpack.c.l.b16 %v1896
  %v2416 = vunpack.c.l.b16 %v1897
  %v2417 = vunpack.c.l.b16 %v1898
  %v2418 = vunpack.c.l.b16 %v1899
  %v2419 = vunpack.c.l.b16 %v1900
  %v2420 = vunpack.c.l.b16 %v1901
  %v2421 = vunpack.c.l.b16 %v1902
  %v2422 = vunpack.c.l.b16 %v1903
  %v2423 = vunpack.c.l.b16 %v1904
  %v2424 = vunpack.c.l.b16 %v1905
  %v2425 = vunpack.c.l.b16 %v1906
  %v2426 = vunpack.c.l.b16 %v1907
  %v2427 = vunpack.c.l.b16 %v1908
  %v2428 = vunpack.c.l.b16 %v1909
  %v2429 = vunpack.c.l.b16 %v1910
  %v2430 = vunpack.c.l.b16 %v1911
  %v2431 = vunpack.c.l.b16 %v1912
  %v2432 = vunpack.c.l.b16 %v1913
  %v2433 = vunpack.c.l.b16 %v1914
  %v2434 = vunpack.c.l.b16 %v1915
  %v2435 = vunpack.c.l.b16 %v1916
  %v2436 = vunpack.c.l.b16 %v1917
  %v2437 = vunpack.c.l.b16 %v1918
  %v2438 = vunpack.c.l.b16 %v1919
  %v2439 = vunpack.c.l.b16 %v1920
  %v2440 = vunpack.c.l.b16 %v1921
  %v2441 = vunpack.c.l.b16 %v1922
  %v2442 = vunpack.c.l.b16 %v1923
  %v2443 = vunpack.c.l.b16 %v1924
  %v2444 = vunpack.c.l.b16 %v1925
  %v2445 = vunpack.c.l.b16 %v1926
  %v2446 = vunpack.c.l.b16 %v1927
  %v2447 = vunpack.c.l.b16 %v1928
  %v2448 = vunpack.c.l.b16 %v1929
  %v2449 = vunpack.c.l.b16 %v1930
  %v2450 = vunpack.c.l.b16 %v1931
  %v2451 = vunpack.c.l.b16 %v1932
  %v2452 = vunpack.c.l.b16 %v1933
  %v2453 = vunpack.c.l.b16 %v1934
  %v2454 = vunpack.c.l.b16 %v1935
  %v2455 = vunpack.c.l.b16 %v1936
  %v2456 = vunpack.c.l.b16 %v1937
  %v2457 = vunpack.c.l.b16 %v1938
  %v2458 = vunpack.c.l.b16 %v1939
  %v2459 = vunpack.c.l.b16 %v1940
  %v2460 = vunpack.c.l.b16 %v1941
  %v2461 = vunpack.c.l.b16 %v1942
  %v2462 = vunpack.c.l.b16 %v1943
  %v2463 = vpack.c.b16 %v2208, %v2207
  %v2464 = vpack.c.b16 %v2210, %v2209
  %v2465 = vpack.c.b16 %v2212, %v2211
  %v2466 = vpack.c.b16 %v2214, %v2213
  %v2467 = vpack.c.b16 %v2216, %v2215
  %v2468 = vpack.c.b16 %v2218, %v2217
  %v2469 = vpack.c.b16 %v2220, %v2219
  %v2470 = vpack.c.b16 %v2222, %v2221
  %v2471 = vpack.c.b16 %v2224, %v2223
  %v2472 = vpack.c.b16 %v2226, %v2225
  %v2473 = vpack.c.b16 %v2228, %v2227
  %v2474 = vpack.c.b16 %v2230, %v2229
  %v2475 = vpack.c.b16 %v2232, %v2231
  %v2476 = vpack.c.b16 %v2234, %v2233
  %v2477 = vpack.c.b16 %v2236, %v2235
  %v2478 = vpack.c.b16 %v2238, %v2237
  %v2479 = vpack.c.b16 %v2240, %v2239
  %v2480 = vpack.c.b16 %v2242, %v2241
  %v2481 = vpack.c.b16 %v2244, %v2243
  %v2482 = vpack.c.b16 %v2246, %v2245
  %v2483 = vpack.c.b16 %v2248, %v2247
  %v2484 = vpack.c.b16 %v2250, %v2249
  %v2485 = vpack.c.b16 %v2252, %v2251
  %v2486 = vpack.c.b16 %v2254, %v2253
  %v2487 = vpack.c.b16 %v2256, %v2255
  %v2488 = vpack.c.b16 %v2258, %v2257
  %v2489 = vpack.c.b16 %v2260, %v2259
  %v2490 = vpack.c.b16 %v2262, %v2261
  %v2491 = vpack.c.b16 %v2264, %v2263
  %v2492 = vpack.c.b16 %v2266, %v2265
  %v2493 = vpack.c.b16 %v2268, %v2267
  %v2494 = vpack.c.b16 %v2270, %v2269
  %v2495 = vpack.c.b16 %v2272, %v2271
  %v2496 = vpack.c.b16 %v2274, %v2273
  %v2497 = vpack.c.b16 %v2276, %v2275
  %v2498 = vpack.c.b16 %v2278, %v2277
  %v2499 = vpack.c.b16 %v2280, %v2279
  %v2500 = vpack.c.b16 %v2282, %v2281
  %v2501 = vpack.c.b16 %v2284, %v2283
  %v2502 = vpack.c.b16 %v2286, %v2285
  %v2503 = vpack.c.b16 %v2288, %v2287
  %v2504 = vpack.c.b16 %v2290, %v2289
  %v2505 = vpack.c.b16 %v2292, %v2291
  %v2506 = vpack.c.b16 %v2294, %v2293
  %v2507 = vpack.c.b16 %v2296, %v2295
  %v2508 = vpack.c.b16 %v2298, %v2297
  %v2509 = vpack.c.b16 %v2300, %v2299
  %v2510 = vpack.c.b16 %v2302, %v2301
  %v2511 = vpack.c.b16 %v2304, %v2303
  %v2512 = vpack.c.b16 %v2306, %v2305
  %v2513 = vpack.c.b16 %v2308, %v2307
  %v2514 = vpack.c.b16 %v2310, %v2309
  %v2515 = vpack.c.b16 %v2312, %v2311
  %v2516 = vpack.c.b16 %v2314, %v2313
  %v2517 = vpack.c.b16 %v2316, %v2315
  %v2518 = vpack.c.b16 %v2318, %v2317
  %v2519 = vpack.c.b16 %v2320, %v2319
  %v2520 = vpack.c.b16 %v2322, %v2321
  %v2521 = vpack.c.b16 %v2324, %v2323
  %v2522 = vpack.c.b16 %v2326, %v2325
  %v2523 = vpack.c.b16 %v2328, %v2327
  %v2524 = vpack.c.b16 %v2330, %v2329
  %v2525 = vpack.c.b16 %v2332, %v2331
  %v2526 = vpack.c.b16 %v2334, %v2333
  %v2527 = vpack.c.b16 %v2336, %v2335
  %v2528 = vpack.c.b16 %v2338, %v2337
  %v2529 = vpack.c.b16 %v2340, %v2339
  %v2530 = vpack.c.b16 %v2342, %v2341
  %v2531 = vpack.c.b16 %v2344, %v2343
  %v2532 = vpack.c.b16 %v2346, %v2345
  %v2533 = vpack.c.b16 %v2348, %v2347
  %v2534 = vpack.c.b16 %v2350, %v2349
  %v2535 = vpack.c.b16 %v2352, %v2351
  %v2536 = vpack.c.b16 %v2354, %v2353
  %v2537 = vpack.c.b16 %v2356, %v2355
  %v2538 = vpack.c.b16 %v2358, %v2357
  %v2539 = vpack.c.b16 %v2360, %v2359
  %v2540 = vpack.c.b16 %v2362, %v2361
  %v2541 = vpack.c.b16 %v2364, %v2363
  %v2542 = vpack.c.b16 %v2366, %v2365
  %v2543 = vpack.c.b16 %v2368, %v2367
  %v2544 = vpack.c.b16 %v2370, %v2369
  %v2545 = vpack.c.b16 %v2372, %v2371
  %v2546 = vpack.c.b16 %v2374, %v2373
  %v2547 = vpack.c.b16 %v2376, %v2375
  %v2548 = vpack.c.b16 %v2378, %v2377
  %v2549 = vpack.c.b16 %v2380, %v2379
  %v2550 = vpack.c.b16 %v2382, %v2381
  %v2551 = vpack.c.b16 %v2384, %v2383
  %v2552 = vpack.c.b16 %v2386, %v2385
  %v2553 = vpack.c.b16 %v2388, %v2387
  %v2554 = vpack.c.b16 %v2390, %v2389
  %v2555 = vpack.c.b16 %v2392, %v2391
  %v2556 = vpack.c.b16 %v2394, %v2393
  %v2557 = vpack.c.b16 %v2396, %v2395
  %v2558 = vpack.c.b16 %v2398, %v2397
  %v2559 = vpack.c.b16 %v2400, %v2399
  %v2560 = vpack.c.b16 %v2402, %v2401
  %v2561 = vpack.c.b16 %v2404, %v2403
  %v2562 = vpack.c.b16 %v2406, %v2405
  %v2563 = vpack.c.b16 %v2408, %v2407
  %v2564 = vpack.c.b16 %v2410, %v2409
  %v2565 = vpack.c.b16 %v2412, %v2411
  %v2566 = vpack.c.b16 %v2414, %v2413
  %v2567 = vpack.c.b16 %v2416, %v2415
  %v2568 = vpack.c.b16 %v2418, %v2417
  %v2569 = vpack.c.b16 %v2420, %v2419
  %v2570 = vpack.c.b16 %v2422, %v2421
  %v2571 = vpack.c.b16 %v2424, %v2423
  %v2572 = vpack.c.b16 %v2426, %v2425
  %v2573 = vpack.c.b16 %v2428, %v2427
  %v2574 = vpack.c.b16 %v2430, %v2429
  %v2575 = vpack.c.b16 %v2432, %v2431
  %v2576 = vpack.c.b16 %v2434, %v2433
  %v2577 = vpack.c.b16 %v2436, %v2435
  %v2578 = vpack.c.b16 %v2438, %v2437
  %v2579 = vpack.c.b16 %v2440, %v2439
  %v2580 = vpack.c.b16 %v2442, %v2441
  %v2581 = vpack.c.b16 %v2444, %v2443
  %v2582 = vpack.c.b16 %v2446, %v2445
  %v2583 = vpack.c.b16 %v2448, %v2447
  %v2584 = vpack.c.b16 %v2450, %v2449
  %v2585 = vpack.c.b16 %v2452, %v2451
  %v2586 = vpack.c.b16 %v2454, %v2453
  %v2587 = vpack.c.b16 %v2456, %v2455
  %v2588 = vpack.c.b16 %v2458, %v2457
  %v2589 = vpack.c.b16 %v2460, %v2459
  %v2590 = vpack.c.b16 %v2462, %v2461
  %2719 = vmatprep.subr.bf16.mxu0 0
  %2720 = vmatpush1.bf16.msra.mxu0 %v2463
  %2721 = vmatprep.subr.bf16.mxu0 0
  %2722 = vmatpush1.bf16.msra.mxu0 %v2464
  %2723 = vmatprep.subr.bf16.mxu0 0
  %2724 = vmatpush1.bf16.msra.mxu0 %v2465
  %2725 = vmatprep.subr.bf16.mxu0 0
  %2726 = vmatpush1.bf16.msra.mxu0 %v2466
  %2727 = vmatprep.subr.bf16.mxu0 0
  %2728 = vmatpush1.bf16.msra.mxu0 %v2467
  %2729 = vmatprep.subr.bf16.mxu0 0
  %2730 = vmatpush1.bf16.msra.mxu0 %v2468
  %2731 = vmatprep.subr.bf16.mxu0 0
  %2732 = vmatpush1.bf16.msra.mxu0 %v2469
  %2733 = vmatprep.subr.bf16.mxu0 0
  %2734 = vmatpush1.bf16.msra.mxu0 %v2470
  %2735 = vmatprep.subr.bf16.mxu0 0
  %2736 = vmatpush1.bf16.msra.mxu0 %v2471
  %2737 = vmatprep.subr.bf16.mxu0 0
  %2738 = vmatpush1.bf16.msra.mxu0 %v2472
  %2739 = vmatprep.subr.bf16.mxu0 0
  %2740 = vmatpush1.bf16.msra.mxu0 %v2473
  %2741 = vmatprep.subr.bf16.mxu0 0
  %2742 = vmatpush1.bf16.msra.mxu0 %v2474
  %2743 = vmatprep.subr.bf16.mxu0 0
  %2744 = vmatpush1.bf16.msra.mxu0 %v2475
  %2745 = vmatprep.subr.bf16.mxu0 0
  %2746 = vmatpush1.bf16.msra.mxu0 %v2476
  %2747 = vmatprep.subr.bf16.mxu0 0
  %2748 = vmatpush1.bf16.msra.mxu0 %v2477
  %2749 = vmatprep.subr.bf16.mxu0 0
  %2750 = vmatpush1.bf16.msra.mxu0 %v2478
  %2751 = vmatprep.mubr.bf16.mxu0 %v1673
  %2752 = vmatmul.mubr.bf16.gmra.mrb[0].mxu0 %v1672
  %v2753 = vpop.f32.mrb[0].mxu0
  %v2754 = vadd.f32 %v1949, %v2753
  %v2755 = vpop.f32.mrb[0].mxu0
  %v2756 = vpop.f32.mrb[0].mxu0
  %v2757 = vpop.f32.mrb[0].mxu0
  %2758 = vdwg.mxu0
  %2759 = vmatprep.subr.bf16.mxu0 0
  %2760 = vmatpush1.bf16.msra.mxu0 %v2479
  %2761 = vmatprep.subr.bf16.mxu0 0
  %2762 = vmatpush1.bf16.msra.mxu0 %v2480
  %2763 = vmatprep.subr.bf16.mxu0 0
  %2764 = vmatpush1.bf16.msra.mxu0 %v2481
  %2765 = vmatprep.subr.bf16.mxu0 0
  %2766 = vmatpush1.bf16.msra.mxu0 %v2482
  %2767 = vmatprep.subr.bf16.mxu0 0
  %2768 = vmatpush1.bf16.msra.mxu0 %v2483
  %2769 = vmatprep.subr.bf16.mxu0 0
  %2770 = vmatpush1.bf16.msra.mxu0 %v2484
  %2771 = vmatprep.subr.bf16.mxu0 0
  %2772 = vmatpush1.bf16.msra.mxu0 %v2485
  %2773 = vmatprep.subr.bf16.mxu0 0
  %2774 = vmatpush1.bf16.msra.mxu0 %v2486
  %2775 = vmatprep.subr.bf16.mxu0 0
  %2776 = vmatpush1.bf16.msra.mxu0 %v2487
  %2777 = vmatprep.subr.bf16.mxu0 0
  %2778 = vmatpush1.bf16.msra.mxu0 %v2488
  %2779 = vmatprep.subr.bf16.mxu0 0
  %2780 = vmatpush1.bf16.msra.mxu0 %v2489
  %2781 = vmatprep.subr.bf16.mxu0 0
  %2782 = vmatpush1.bf16.msra.mxu0 %v2490
  %2783 = vmatprep.subr.bf16.mxu0 0
  %2784 = vmatpush1.bf16.msra.mxu0 %v2491
  %2785 = vmatprep.subr.bf16.mxu0 0
  %2786 = vmatpush1.bf16.msra.mxu0 %v2492
  %2787 = vmatprep.subr.bf16.mxu0 0
  %2788 = vmatpush1.bf16.msra.mxu0 %v2493
  %2789 = vmatprep.subr.bf16.mxu0 0
  %2790 = vmatpush1.bf16.msra.mxu0 %v2494
  %2791 = vmatprep.mubr.bf16.mxu0 %v1675
  %2792 = vmatmul.mubr.bf16.gmra.mrb[0].mxu0 %v1674
  %v2793 = vpop.f32.mrb[0].mxu0
  %v2794 = vadd.f32 %v2754, %v2793
  %v2795 = vpop.f32.mrb[0].mxu0
  %v2796 = vpop.f32.mrb[0].mxu0
  %v2797 = vpop.f32.mrb[0].mxu0
  %2798 = vdwg.mxu0
  %2799 = vmatprep.subr.bf16.mxu0 0
  %2800 = vmatpush1.bf16.msra.mxu0 %v2495
  %2801 = vmatprep.subr.bf16.mxu0 0
  %2802 = vmatpush1.bf16.msra.mxu0 %v2496
  %2803 = vmatprep.subr.bf16.mxu0 0
  %2804 = vmatpush1.bf16.msra.mxu0 %v2497
  %2805 = vmatprep.subr.bf16.mxu0 0
  %2806 = vmatpush1.bf16.msra.mxu0 %v2498
  %2807 = vmatprep.subr.bf16.mxu0 0
  %2808 = vmatpush1.bf16.msra.mxu0 %v2499
  %2809 = vmatprep.subr.bf16.mxu0 0
  %2810 = vmatpush1.bf16.msra.mxu0 %v2500
  %2811 = vmatprep.subr.bf16.mxu0 0
  %2812 = vmatpush1.bf16.msra.mxu0 %v2501
  %2813 = vmatprep.subr.bf16.mxu0 0
  %2814 = vmatpush1.bf16.msra.mxu0 %v2502
  %2815 = vmatprep.subr.bf16.mxu0 0
  %2816 = vmatpush1.bf16.msra.mxu0 %v2503
  %2817 = vmatprep.subr.bf16.mxu0 0
  %2818 = vmatpush1.bf16.msra.mxu0 %v2504
  %2819 = vmatprep.subr.bf16.mxu0 0
  %2820 = vmatpush1.bf16.msra.mxu0 %v2505
  %2821 = vmatprep.subr.bf16.mxu0 0
  %2822 = vmatpush1.bf16.msra.mxu0 %v2506
  %2823 = vmatprep.subr.bf16.mxu0 0
  %2824 = vmatpush1.bf16.msra.mxu0 %v2507
  %2825 = vmatprep.subr.bf16.mxu0 0
  %2826 = vmatpush1.bf16.msra.mxu0 %v2508
  %2827 = vmatprep.subr.bf16.mxu0 0
  %2828 = vmatpush1.bf16.msra.mxu0 %v2509
  %2829 = vmatprep.subr.bf16.mxu0 0
  %2830 = vmatpush1.bf16.msra.mxu0 %v2510
  %2831 = vmatprep.mubr.bf16.mxu0 %v1677
  %2832 = vmatmul.mubr.bf16.gmra.mrb[0].mxu0 %v1676
  %v2833 = vpop.f32.mrb[0].mxu0
  %v2834 = vadd.f32 %v2794, %v2833
  %v2835 = vpop.f32.mrb[0].mxu0
  %v2836 = vpop.f32.mrb[0].mxu0
  %v2837 = vpop.f32.mrb[0].mxu0
  %2838 = vdwg.mxu0
  %2839 = vmatprep.subr.bf16.mxu0 0
  %2840 = vmatpush1.bf16.msra.mxu0 %v2511
  %2841 = vmatprep.subr.bf16.mxu0 0
  %2842 = vmatpush1.bf16.msra.mxu0 %v2512
  %2843 = vmatprep.subr.bf16.mxu0 0
  %2844 = vmatpush1.bf16.msra.mxu0 %v2513
  %2845 = vmatprep.subr.bf16.mxu0 0
  %2846 = vmatpush1.bf16.msra.mxu0 %v2514
  %2847 = vmatprep.subr.bf16.mxu0 0
  %2848 = vmatpush1.bf16.msra.mxu0 %v2515
  %2849 = vmatprep.subr.bf16.mxu0 0
  %2850 = vmatpush1.bf16.msra.mxu0 %v2516
  %2851 = vmatprep.subr.bf16.mxu0 0
  %2852 = vmatpush1.bf16.msra.mxu0 %v2517
  %2853 = vmatprep.subr.bf16.mxu0 0
  %2854 = vmatpush1.bf16.msra.mxu0 %v2518
  %2855 = vmatprep.subr.bf16.mxu0 0
  %2856 = vmatpush1.bf16.msra.mxu0 %v2519
  %2857 = vmatprep.subr.bf16.mxu0 0
  %2858 = vmatpush1.bf16.msra.mxu0 %v2520
  %2859 = vmatprep.subr.bf16.mxu0 0
  %2860 = vmatpush1.bf16.msra.mxu0 %v2521
  %2861 = vmatprep.subr.bf16.mxu0 0
  %2862 = vmatpush1.bf16.msra.mxu0 %v2522
  %2863 = vmatprep.subr.bf16.mxu0 0
  %2864 = vmatpush1.bf16.msra.mxu0 %v2523
  %2865 = vmatprep.subr.bf16.mxu0 0
  %2866 = vmatpush1.bf16.msra.mxu0 %v2524
  %2867 = vmatprep.subr.bf16.mxu0 0
  %2868 = vmatpush1.bf16.msra.mxu0 %v2525
  %2869 = vmatprep.subr.bf16.mxu0 0
  %2870 = vmatpush1.bf16.msra.mxu0 %v2526
  %2871 = vmatprep.mubr.bf16.mxu0 %v1679
  %2872 = vmatmul.mubr.bf16.gmra.mrb[0].mxu0 %v1678
  %v2873 = vpop.f32.mrb[0].mxu0
  %v2874 = vadd.f32 %v2834, %v2873
  %v2875 = vpop.f32.mrb[0].mxu0
  %v2876 = vpop.f32.mrb[0].mxu0
  %v2877 = vpop.f32.mrb[0].mxu0
  %2878 = vdwg.mxu0
  %2879 = vmatprep.subr.bf16.mxu0 0
  %2880 = vmatpush1.bf16.msra.mxu0 %v2527
  %2881 = vmatprep.subr.bf16.mxu0 0
  %2882 = vmatpush1.bf16.msra.mxu0 %v2528
  %2883 = vmatprep.subr.bf16.mxu0 0
  %2884 = vmatpush1.bf16.msra.mxu0 %v2529
  %2885 = vmatprep.subr.bf16.mxu0 0
  %2886 = vmatpush1.bf16.msra.mxu0 %v2530
  %2887 = vmatprep.subr.bf16.mxu0 0
  %2888 = vmatpush1.bf16.msra.mxu0 %v2531
  %2889 = vmatprep.subr.bf16.mxu0 0
  %2890 = vmatpush1.bf16.msra.mxu0 %v2532
  %2891 = vmatprep.subr.bf16.mxu0 0
  %2892 = vmatpush1.bf16.msra.mxu0 %v2533
  %2893 = vmatprep.subr.bf16.mxu0 0
  %2894 = vmatpush1.bf16.msra.mxu0 %v2534
  %2895 = vmatprep.subr.bf16.mxu0 0
  %2896 = vmatpush1.bf16.msra.mxu0 %v2535
  %2897 = vmatprep.subr.bf16.mxu0 0
  %2898 = vmatpush1.bf16.msra.mxu0 %v2536
  %2899 = vmatprep.subr.bf16.mxu0 0
  %2900 = vmatpush1.bf16.msra.mxu0 %v2537
  %2901 = vmatprep.subr.bf16.mxu0 0
  %2902 = vmatpush1.bf16.msra.mxu0 %v2538
  %2903 = vmatprep.subr.bf16.mxu0 0
  %2904 = vmatpush1.bf16.msra.mxu0 %v2539
  %2905 = vmatprep.subr.bf16.mxu0 0
  %2906 = vmatpush1.bf16.msra.mxu0 %v2540
  %2907 = vmatprep.subr.bf16.mxu0 0
  %2908 = vmatpush1.bf16.msra.mxu0 %v2541
  %2909 = vmatprep.subr.bf16.mxu0 0
  %2910 = vmatpush1.bf16.msra.mxu0 %v2542
  %2911 = vmatprep.mubr.bf16.mxu0 %v1681
  %2912 = vmatmul.mubr.bf16.gmra.mrb[0].mxu0 %v1680
  %v2913 = vpop.f32.mrb[0].mxu0
  %v2914 = vadd.f32 %v2874, %v2913
  %v2915 = vpop.f32.mrb[0].mxu0
  %v2916 = vpop.f32.mrb[0].mxu0
  %v2917 = vpop.f32.mrb[0].mxu0
  %2918 = vdwg.mxu0
  %2919 = vmatprep.subr.bf16.mxu0 0
  %2920 = vmatpush1.bf16.msra.mxu0 %v2543
  %2921 = vmatprep.subr.bf16.mxu0 0
  %2922 = vmatpush1.bf16.msra.mxu0 %v2544
  %2923 = vmatprep.subr.bf16.mxu0 0
  %2924 = vmatpush1.bf16.msra.mxu0 %v2545
  %2925 = vmatprep.subr.bf16.mxu0 0
  %2926 = vmatpush1.bf16.msra.mxu0 %v2546
  %2927 = vmatprep.subr.bf16.mxu0 0
  %2928 = vmatpush1.bf16.msra.mxu0 %v2547
  %2929 = vmatprep.subr.bf16.mxu0 0
  %2930 = vmatpush1.bf16.msra.mxu0 %v2548
  %2931 = vmatprep.subr.bf16.mxu0 0
  %2932 = vmatpush1.bf16.msra.mxu0 %v2549
  %2933 = vmatprep.subr.bf16.mxu0 0
  %2934 = vmatpush1.bf16.msra.mxu0 %v2550
  %2935 = vmatprep.subr.bf16.mxu0 0
  %2936 = vmatpush1.bf16.msra.mxu0 %v2551
  %2937 = vmatprep.subr.bf16.mxu0 0
  %2938 = vmatpush1.bf16.msra.mxu0 %v2552
  %2939 = vmatprep.subr.bf16.mxu0 0
  %2940 = vmatpush1.bf16.msra.mxu0 %v2553
  %2941 = vmatprep.subr.bf16.mxu0 0
  %2942 = vmatpush1.bf16.msra.mxu0 %v2554
  %2943 = vmatprep.subr.bf16.mxu0 0
  %2944 = vmatpush1.bf16.msra.mxu0 %v2555
  %2945 = vmatprep.subr.bf16.mxu0 0
  %2946 = vmatpush1.bf16.msra.mxu0 %v2556
  %2947 = vmatprep.subr.bf16.mxu0 0
  %2948 = vmatpush1.bf16.msra.mxu0 %v2557
  %2949 = vmatprep.subr.bf16.mxu0 0
  %2950 = vmatpush1.bf16.msra.mxu0 %v2558
  %2951 = vmatprep.mubr.bf16.mxu0 %v1683
  %2952 = vmatmul.mubr.bf16.gmra.mrb[0].mxu0 %v1682
  %v2953 = vpop.f32.mrb[0].mxu0
  %v2954 = vadd.f32 %v2914, %v2953
  %v2955 = vpop.f32.mrb[0].mxu0
  %v2956 = vpop.f32.mrb[0].mxu0
  %v2957 = vpop.f32.mrb[0].mxu0
  %2958 = vdwg.mxu0
  %2959 = vmatprep.subr.bf16.mxu0 0
  %2960 = vmatpush1.bf16.msra.mxu0 %v2559
  %2961 = vmatprep.subr.bf16.mxu0 0
  %2962 = vmatpush1.bf16.msra.mxu0 %v2560
  %2963 = vmatprep.subr.bf16.mxu0 0
  %2964 = vmatpush1.bf16.msra.mxu0 %v2561
  %2965 = vmatprep.subr.bf16.mxu0 0
  %2966 = vmatpush1.bf16.msra.mxu0 %v2562
  %2967 = vmatprep.subr.bf16.mxu0 0
  %2968 = vmatpush1.bf16.msra.mxu0 %v2563
  %2969 = vmatprep.subr.bf16.mxu0 0
  %2970 = vmatpush1.bf16.msra.mxu0 %v2564
  %2971 = vmatprep.subr.bf16.mxu0 0
  %2972 = vmatpush1.bf16.msra.mxu0 %v2565
  %2973 = vmatprep.subr.bf16.mxu0 0
  %2974 = vmatpush1.bf16.msra.mxu0 %v2566
  %2975 = vmatprep.subr.bf16.mxu0 0
  %2976 = vmatpush1.bf16.msra.mxu0 %v2567
  %2977 = vmatprep.subr.bf16.mxu0 0
  %2978 = vmatpush1.bf16.msra.mxu0 %v2568
  %2979 = vmatprep.subr.bf16.mxu0 0
  %2980 = vmatpush1.bf16.msra.mxu0 %v2569
  %2981 = vmatprep.subr.bf16.mxu0 0
  %2982 = vmatpush1.bf16.msra.mxu0 %v2570
  %2983 = vmatprep.subr.bf16.mxu0 0
  %2984 = vmatpush1.bf16.msra.mxu0 %v2571
  %2985 = vmatprep.subr.bf16.mxu0 0
  %2986 = vmatpush1.bf16.msra.mxu0 %v2572
  %2987 = vmatprep.subr.bf16.mxu0 0
  %2988 = vmatpush1.bf16.msra.mxu0 %v2573
  %2989 = vmatprep.subr.bf16.mxu0 0
  %2990 = vmatpush1.bf16.msra.mxu0 %v2574
  %2991 = vmatprep.mubr.bf16.mxu0 %v1685
  %2992 = vmatmul.mubr.bf16.gmra.mrb[0].mxu0 %v1684
  %v2993 = vpop.f32.mrb[0].mxu0
  %v2994 = vadd.f32 %v2954, %v2993
  %v2995 = vpop.f32.mrb[0].mxu0
  %v2996 = vpop.f32.mrb[0].mxu0
  %v2997 = vpop.f32.mrb[0].mxu0
  %2998 = vdwg.mxu0
  %2999 = vmatprep.subr.bf16.mxu0 0
  %3000 = vmatpush1.bf16.msra.mxu0 %v2575
  %3001 = vmatprep.subr.bf16.mxu0 0
  %3002 = vmatpush1.bf16.msra.mxu0 %v2576
  %3003 = vmatprep.subr.bf16.mxu0 0
  %3004 = vmatpush1.bf16.msra.mxu0 %v2577
  %3005 = vmatprep.subr.bf16.mxu0 0
  %3006 = vmatpush1.bf16.msra.mxu0 %v2578
  %3007 = vmatprep.subr.bf16.mxu0 0
  %3008 = vmatpush1.bf16.msra.mxu0 %v2579
  %3009 = vmatprep.subr.bf16.mxu0 0
  %3010 = vmatpush1.bf16.msra.mxu0 %v2580
  %3011 = vmatprep.subr.bf16.mxu0 0
  %3012 = vmatpush1.bf16.msra.mxu0 %v2581
  %3013 = vmatprep.subr.bf16.mxu0 0
  %3014 = vmatpush1.bf16.msra.mxu0 %v2582
  %3015 = vmatprep.subr.bf16.mxu0 0
  %3016 = vmatpush1.bf16.msra.mxu0 %v2583
  %3017 = vmatprep.subr.bf16.mxu0 0
  %3018 = vmatpush1.bf16.msra.mxu0 %v2584
  %3019 = vmatprep.subr.bf16.mxu0 0
  %3020 = vmatpush1.bf16.msra.mxu0 %v2585
  %3021 = vmatprep.subr.bf16.mxu0 0
  %3022 = vmatpush1.bf16.msra.mxu0 %v2586
  %3023 = vmatprep.subr.bf16.mxu0 0
  %3024 = vmatpush1.bf16.msra.mxu0 %v2587
  %3025 = vmatprep.subr.bf16.mxu0 0
  %3026 = vmatpush1.bf16.msra.mxu0 %v2588
  %3027 = vmatprep.subr.bf16.mxu0 0
  %3028 = vmatpush1.bf16.msra.mxu0 %v2589
  %3029 = vmatprep.subr.bf16.mxu0 0
  %3030 = vmatpush1.bf16.msra.mxu0 %v2590
  %3031 = vmatprep.mubr.bf16.mxu0 %v1687
  %3032 = vmatmul.mubr.bf16.gmra.mrb[0].mxu0 %v1686
  %v3033 = vpop.f32.mrb[0].mxu0
  %v3034 = vadd.f32 %v2994, %v3033
  %v3035 = vpop.f32.mrb[0].mxu0
  %v3036 = vpop.f32.mrb[0].mxu0
  %v3037 = vpop.f32.mrb[0].mxu0
  %3038 = vdwg.mxu0
  %v3039 = vadd.f32 %v1011, %v3034
  %3040 = vxpose.xlu0.b32.start [1/16] %v3039, 128
  %3041 = vxpose.xlu0.b32.cont [2/16] 0.0, 128
  %3042 = vxpose.xlu0.b32.cont [3/16] 0.0, 128
  %3043 = vxpose.xlu0.b32.cont [4/16] 0.0, 128
  %3044 = vxpose.xlu0.b32.cont [5/16] 0.0, 128
  %3045 = vxpose.xlu0.b32.cont [6/16] 0.0, 128
  %3046 = vxpose.xlu0.b32.cont [7/16] 0.0, 128
  %3047 = vxpose.xlu0.b32.cont [8/16] 0.0, 128
  %3048 = vxpose.xlu0.b32.cont [9/16] 0.0, 128
  %3049 = vxpose.xlu0.b32.cont [10/16] 0.0, 128
  %3050 = vxpose.xlu0.b32.cont [11/16] 0.0, 128
  %3051 = vxpose.xlu0.b32.cont [12/16] 0.0, 128
  %3052 = vxpose.xlu0.b32.cont [13/16] 0.0, 128
  %3053 = vxpose.xlu0.b32.cont [14/16] 0.0, 128
  %3054 = vxpose.xlu0.b32.cont [15/16] 0.0, 128
  %3055 = vxpose.xlu0.b32.end [16/16] 0.0, 128
  %v3056 = vpop.trf.xlu0
  %v3057 = vpop.trf.xlu0
  %v3058 = vpop.trf.xlu0
  %v3059 = vpop.trf.xlu0
  %v3060 = vpop.trf.xlu0
  %v3061 = vpop.trf.xlu0
  %v3062 = vpop.trf.xlu0
  %v3063 = vpop.trf.xlu0
  %v3064 = vpop.trf.xlu0
  %v3065 = vpop.trf.xlu0
  %v3066 = vpop.trf.xlu0
  %v3067 = vpop.trf.xlu0
  %v3068 = vpop.trf.xlu0
  %v3069 = vpop.trf.xlu0
  %v3070 = vpop.trf.xlu0
  %v3071 = vpop.trf.xlu0
  %3072 = vst.msk [vmem:[%s24] sm:$0xff] %vm475, %v3056
  %3073 = vst.msk [vmem:[%s24 + $0x8] sm:$0xff] %vm475, %v3057
  %3074 = vst.msk [vmem:[%s24 + $0x10] sm:$0xff] %vm475, %v3058
  %3075 = vst.msk [vmem:[%s24 + $0x18] sm:$0xff] %vm475, %v3059
  // Predicated region
  $region94: #{mat_transformer_cell.1} parent=0 // pred_check
    _
  $region95: #{mat_transformer_cell.1} parent=0 // pred_check_branch
    %3077 = sbr.rel (0) target = $region97
  $region96: #{mat_transformer_cell.1} parent=0 // pred_region
    _
  $region97: #{mat_transformer_cell.1} parent=0 // pred_fallthru
    _
  // Predicated region
  $region98: #{mat_transformer_cell.1} parent=0 // pred_check
    _
  $region99: #{mat_transformer_cell.1} parent=0 // pred_check_branch
    %3079 = sbr.rel (0) target = $region101
  $region100: #{mat_transformer_cell.1} parent=0 // pred_region
    _
  $region101: #{mat_transformer_cell.1} parent=0 // pred_fallthru
    _

</llo_original>
